<compile_context>
chip_gen: v5e
topology: v5e:2x2
jax: 0.10.0
libtpu: 0.0.40
codegen_flags: <defaults>
</compile_context>

<pallas_src>
import functools

import jax
import jax.numpy as jnp
from jax.experimental import pallas as pl
from jax.experimental.pallas import tpu as pltpu

_TILE = 1024                    # A-tile edge: 1024x1024 int8 = 1 MiB per grid step
_MIN_PAD = 256                  # minimum node padding granularity
_LANES = 128                    # lane width for lane-dense outputs
_VMEM_LIMIT = 48 * 1024 * 1024  # fits v7x's 64 MiB physical VMEM with headroom


def _round_up(x, m):
    return (x + m - 1) // m * m


def _epilogue(out, activation, out_valid):
    """Activation applied to a (tm, F_out) f32 tile (always f32 math)."""
    if activation == "relu":
        return jnp.maximum(out, 0.0)
    if activation == "log_softmax":
        if out_valid < out.shape[-1]:
            # mask padded class lanes so they don't contribute to the reduction
            lane = jax.lax.broadcasted_iota(jnp.int32, out.shape, 1)
            out = jnp.where(lane < out_valid, out, -1e30)
        m = jnp.max(out, axis=-1, keepdims=True)
        lse = m + jnp.log(jnp.sum(jnp.exp(out - m), axis=-1, keepdims=True))
        return out - lse
    return out


# --------------------------------------------------------------------------- #
# Small row-tiled projection kernel:  Z = X @ W   (only used when f_out < f_in) #
# --------------------------------------------------------------------------- #
def _proj_kernel(x_ref, w_ref, o_ref):
    o_ref[...] = jnp.dot(
        x_ref[...], w_ref[...], preferred_element_type=jnp.float32
    ).astype(o_ref.dtype)


def _proj(x_bf16, w_bf16, out_dtype, tm):
    n_pad, f_in = x_bf16.shape
    f_out = w_bf16.shape[1]
    return pl.pallas_call(
        _proj_kernel,
        out_shape=jax.ShapeDtypeStruct((n_pad, f_out), out_dtype),
        grid_spec=pltpu.PrefetchScalarGridSpec(
            num_scalar_prefetch=0,
            grid=(n_pad // tm,),
            in_specs=[
                pl.BlockSpec((tm, f_in), lambda i: (i, 0)),
                pl.BlockSpec((f_in, f_out), lambda i: (0, 0)),
            ],
            out_specs=pl.BlockSpec((tm, f_out), lambda i: (i, 0)),
        ),
        compiler_params=pltpu.CompilerParams(
            dimension_semantics=("parallel",),
            vmem_limit_bytes=_VMEM_LIMIT,
        ),
    )(x_bf16, w_bf16)


# --------------------------------------------------------------------------- #
# Fused aggregation kernels (K-reduction over the neighbor dimension)          #
#   A is raw 0/1 int8; 1/deg + root projection + bias applied in finalize.     #
# --------------------------------------------------------------------------- #
def _sage_agg_post_kernel(a_ref, xn_ref, dinv_ref, xr_ref, wl_ref, wr_ref,
                          b_ref, o_ref, acc_ref, *, activation, out_valid):
    """acc += A_tile @ X_tile ; finalize: o = act((acc/deg) @ Wl + Xrow @ Wr + b)."""
    k = pl.program_id(1)

    @pl.when(k == 0)
    def _():
        acc_ref[...] = jnp.zeros_like(acc_ref)

    acc_ref[...] += jnp.dot(a_ref[...].astype(jnp.bfloat16), xn_ref[...],
                            preferred_element_type=jnp.float32)

    @pl.when(k == pl.num_programs(1) - 1)
    def _():
        mean = acc_ref[...] * dinv_ref[...]                      # exact f32 1/deg
        out = (
            jnp.dot(mean.astype(jnp.bfloat16), wl_ref[...],
                    preferred_element_type=jnp.float32)
            + jnp.dot(xr_ref[...], wr_ref[...],
                      preferred_element_type=jnp.float32)
            + b_ref[...]
        )
        o_ref[...] = _epilogue(out, activation, out_valid).astype(o_ref.dtype)


def _sage_agg_pre_kernel(a_ref, zn_ref, dinv_ref, xr_ref, wr_ref,
                         b_ref, o_ref, acc_ref, *, activation, out_valid):
    """Z = X @ Wl precomputed.  acc += A_tile @ Z_tile ;
    finalize: o = act(acc/deg + Xrow @ Wr + b)."""
    k = pl.program_id(1)

    @pl.when(k == 0)
    def _():
        acc_ref[...] = jnp.zeros_like(acc_ref)

    acc_ref[...] += jnp.dot(a_ref[...].astype(jnp.bfloat16), zn_ref[...],
                            preferred_element_type=jnp.float32)

    @pl.when(k == pl.num_programs(1) - 1)
    def _():
        out = (
            acc_ref[...] * dinv_ref[...]
            + jnp.dot(xr_ref[...], wr_ref[...],
                      preferred_element_type=jnp.float32)
            + b_ref[...]
        )
        o_ref[...] = _epilogue(out, activation, out_valid).astype(o_ref.dtype)


def _sage_layer(a_int8, inv_deg, h_bf16, w_l, w_r, bias, *,
                activation, out_valid, t, out_dtype):
    """One SAGEConv layer on padded arrays:
    act( (A @ H / deg) @ Wl + H @ Wr + b )."""
    n_pad = a_int8.shape[0]
    f_in = h_bf16.shape[1]
    f_out = w_l.shape[1]

    wl_b = w_l.astype(jnp.bfloat16)
    wr_b = w_r.astype(jnp.bfloat16)
    b_row = bias.reshape(1, f_out).astype(jnp.float32)

    grid = (n_pad // t, n_pad // t)

    if f_out < f_in:
        # Pre-project so the N^2 aggregation matmul is only f_out wide.
        z = _proj(h_bf16, wl_b, jnp.bfloat16, t)
        kernel = functools.partial(_sage_agg_pre_kernel,
                                   activation=activation, out_valid=out_valid)
        in_specs = [
            pl.BlockSpec((t, t), lambda i, k: (i, k)),         # A tile (int8 0/1)
            pl.BlockSpec((t, f_out), lambda i, k: (k, 0)),     # Z rows (neighbors)
            pl.BlockSpec((t, 1), lambda i, k: (i, 0)),         # 1/deg column
            pl.BlockSpec((t, f_in), lambda i, k: (i, 0)),      # H rows (root term)
            pl.BlockSpec((f_in, f_out), lambda i, k: (0, 0)),  # Wr (resident)
            pl.BlockSpec((1, f_out), lambda i, k: (0, 0)),     # bias
        ]
        operands = (a_int8, z, inv_deg, h_bf16, wr_b, b_row)
        acc_width = f_out
    else:
        kernel = functools.partial(_sage_agg_post_kernel,
                                   activation=activation, out_valid=out_valid)
        in_specs = [
            pl.BlockSpec((t, t), lambda i, k: (i, k)),         # A tile (int8 0/1)
            pl.BlockSpec((t, f_in), lambda i, k: (k, 0)),      # X rows (neighbors)
            pl.BlockSpec((t, 1), lambda i, k: (i, 0)),         # 1/deg column
            pl.BlockSpec((t, f_in), lambda i, k: (i, 0)),      # X rows (root term)
            pl.BlockSpec((f_in, f_out), lambda i, k: (0, 0)),  # Wl (resident)
            pl.BlockSpec((f_in, f_out), lambda i, k: (0, 0)),  # Wr (resident)
            pl.BlockSpec((1, f_out), lambda i, k: (0, 0)),     # bias
        ]
        operands = (a_int8, h_bf16, inv_deg, h_bf16, wl_b, wr_b, b_row)
        acc_width = f_in

    return pl.pallas_call(
        kernel,
        out_shape=jax.ShapeDtypeStruct((n_pad, f_out), out_dtype),
        grid_spec=pltpu.PrefetchScalarGridSpec(
            num_scalar_prefetch=0,
            grid=grid,
            in_specs=in_specs,
            out_specs=pl.BlockSpec((t, f_out), lambda i, k: (i, 0)),
            scratch_shapes=[pltpu.VMEM((t, acc_width), jnp.float32)],
        ),
        compiler_params=pltpu.CompilerParams(
            dimension_semantics=("parallel", "arbitrary"),
            vmem_limit_bytes=_VMEM_LIMIT,
        ),
    )(*operands)


# --------------------------------------------------------------------------- #
# Model                                                                        #
# --------------------------------------------------------------------------- #
def init_sage_params(key, dims):
    """Deterministic parameter init. dims = [(in, out), ...] per layer."""
    params = {}
    for li, (fin, fout) in enumerate(dims, start=1):
        key, k1, k2 = jax.random.split(key, 3)
        scale = 1.0 / jnp.sqrt(jnp.float32(fin))
        w_l = jax.random.normal(k1, (fin, fout), jnp.float32) * scale  # lin_l (neighbors)
        w_r = jax.random.normal(k2, (fin, fout), jnp.float32) * scale  # lin_r (root)
        b = jnp.zeros((fout,), jnp.float32)
        params[f"conv{li}"] = (w_l, w_r, b)
    return params


def graphsage_forward(params, x, edge_index):
    """Full GraphSAGE forward (eval mode)."""
    n, f_in = x.shape
    wl1, wr1, b1 = params["conv1"]
    wl2, wr2, b2 = params["conv2"]
    wl3, wr3, b3 = params["conv3"]
    num_classes = wl3.shape[1]
    c_pad = _round_up(num_classes, _LANES)

    # Tile choice: single full-extent tile for small graphs, 1024x1024 otherwise
    # (1 MiB int8 A per grid step -> amortizes per-step overhead on v5e/v6e/v7x).
    n_pad0 = _round_up(n, _MIN_PAD)
    t = min(_TILE, n_pad0)
    n_pad = _round_up(n_pad0, t)

    # Dense adjacency with RAW edge counts (messages src -> dst), stored once in
    # int8 (0/1 for simple graphs; exact up to 127 multi-edges).  Degree for the
    # mean is a cheap length-N scatter; normalization happens in f32 in-kernel.
    src, dst = edge_index[0], edge_index[1]
    adj = (
        jnp.zeros((n_pad, n_pad), jnp.int8)
        .at[dst, src]
        .add(jnp.ones_like(src, dtype=jnp.int8))
    )
    deg = jnp.zeros((n_pad, 1), jnp.float32).at[dst].add(1.0)
    inv_deg = 1.0 / jnp.clip(deg, 1.0, None)                 # exact f32 per-row scale

    x_pad = jnp.zeros((n_pad, f_in), jnp.bfloat16).at[:n, :].set(
        x.astype(jnp.bfloat16)
    )

    # Pad conv3's class dimension to a lane-dense 128; padded lanes are masked in
    # the in-kernel log_softmax and sliced away below.
    wl3p = jnp.zeros((wl3.shape[0], c_pad), jnp.float32).at[:, :num_classes].set(wl3)
    wr3p = jnp.zeros((wr3.shape[0], c_pad), jnp.float32).at[:, :num_classes].set(wr3)
    b3p = jnp.zeros((c_pad,), jnp.float32).at[:num_classes].set(b3)

    # Intermediate layers are emitted in bf16 (next layer feeds the MXU in bf16
    # anyway); the final log_softmax layer stays f32.
    h = _sage_layer(adj, inv_deg, x_pad, wl1, wr1, b1,
                    activation="relu", out_valid=wl1.shape[1],
                    t=t, out_dtype=jnp.bfloat16)
    # TODO(synk): nn.Dropout(0.7) is identity in eval mode; training-mode masking
    # with pltpu.prng_random_bits is omitted here.
    h = _sage_layer(adj, inv_deg, h, wl2, wr2, b2,
                    activation="relu", out_valid=wl2.shape[1],
                    t=t, out_dtype=jnp.bfloat16)
    h = _sage_layer(adj, inv_deg, h, wl3p, wr3p, b3p,
                    activation="log_softmax", out_valid=num_classes,
                    t=t, out_dtype=jnp.float32)
    return h[:n, :num_classes]


if __name__ == "__main__":
    num_nodes = 8
    num_features = 32
    num_classes = 16

    key = jax.random.PRNGKey(0)
    key, kx = jax.random.split(key)
    x = jax.random.normal(kx, (num_nodes, num_features), jnp.float32)

    # deterministic bidirectional ring graph
    src = jnp.arange(num_nodes, dtype=jnp.int32)
    dst = (src + 1) % num_nodes
    edge_index = jnp.stack(
        [jnp.concatenate([src, dst]), jnp.concatenate([dst, src])], axis=0
    )  # shape (2, 2*num_nodes)

    params = init_sage_params(
        key, [(num_features, 256), (256, 128), (128, num_classes)]
    )

    out = jax.jit(graphsage_forward)(params, x, edge_index)
    out = jax.block_until_ready(out)

    # pure-JAX f32 reference for semantics
    def ref_forward(params, x, edge_index):
        n = x.shape[0]
        adj = jnp.zeros((n, n), jnp.float32).at[edge_index[1], edge_index[0]].add(1.0)
        deg = jnp.clip(jnp.sum(adj, axis=1, keepdims=True), 1.0, None)
        a = adj / deg
        h = x
        for li, act in ((1, "relu"), (2, "relu"), (3, None)):
            wl, wr, b = params[f"conv{li}"]
            h = (a @ h) @ wl + h @ wr + b
            if act == "relu":
                h = jnp.maximum(h, 0.0)
        return jax.nn.log_softmax(h, axis=1)

    ref = ref_forward(params, x, edge_index)

    assert out.shape == (num_nodes, num_classes)
    # rows of log_softmax must sum (in prob space) to 1
    assert jnp.allclose(jnp.sum(jnp.exp(out), axis=1), 1.0, atol=1e-3)
    # bf16 MXU inputs / bf16 intermediate storage -> loose tolerance vs. f32 ref
    assert jnp.allclose(out, ref, atol=0.2), float(jnp.max(jnp.abs(out - ref)))
    print("KERNEL_OK")
</pallas_src>

<mosaic_0001>
module attributes {stable_mosaic.version = 11 : i64} {
  func.func @_sage_agg_post_kernel(%arg0: i32, %arg1: i32, %arg2: memref<256x256xi8, #tpu.memory_space<vmem>>, %arg3: memref<256x32xbf16, #tpu.memory_space<vmem>>, %arg4: memref<256x1xf32, #tpu.memory_space<vmem>>, %arg5: memref<256x32xbf16, #tpu.memory_space<vmem>>, %arg6: memref<32x256xbf16, #tpu.memory_space<vmem>>, %arg7: memref<32x256xbf16, #tpu.memory_space<vmem>>, %arg8: memref<1x256xf32, #tpu.memory_space<vmem>>, %arg9: memref<256x256xbf16, #tpu.memory_space<vmem>>, %arg10: memref<256x32xf32, #tpu.memory_space<vmem>>) attributes {dimension_semantics = [#tpu.dimension_semantics<parallel>, #tpu.dimension_semantics<arbitrary>], iteration_bounds = array<i64: 1, 1>, scalar_prefetch = 0 : i64, scratch_operands = 1 : i64, tpu.core_type = #tpu.core_type<tc>, window_params = [{transform_indices = @transform_0, window_bounds = array<i64: 256, 256>}, {transform_indices = @transform_1, window_bounds = array<i64: 256, 32>}, {transform_indices = @transform_2, window_bounds = array<i64: 256, 1>}, {transform_indices = @transform_3, window_bounds = array<i64: 256, 32>}, {pipeline_mode = #tpu.pipeline_mode<synchronous>, transform_indices = @transform_4, window_bounds = array<i64: 32, 256>}, {pipeline_mode = #tpu.pipeline_mode<synchronous>, transform_indices = @transform_5, window_bounds = array<i64: 32, 256>}, {pipeline_mode = #tpu.pipeline_mode<synchronous>, transform_indices = @transform_6, window_bounds = array<i64: 1, 256>}, {transform_indices = @transform_7, window_bounds = array<i64: 256, 256>}]} {
    %c0_i32 = arith.constant 0 : i32
    %0 = arith.cmpi eq, %arg1, %c0_i32 : i32
    %1 = arith.extui %0 : i1 to i32
    %c0_i32_0 = arith.constant 0 : i32
    %2 = arith.cmpi ne, %1, %c0_i32_0 : i32
    scf.if %2 {
      %cst_10 = arith.constant 0.000000e+00 : f32
      %13 = vector.broadcast %cst_10 : f32 to vector<256x32xf32>
      %c0_11 = arith.constant 0 : index
      %c0_12 = arith.constant 0 : index
      %14 = vector.load %arg10[%c0_11, %c0_12] : memref<256x32xf32, #tpu.memory_space<vmem>>, vector<256x32xf32>
      tpu.vector_store %arg10[%c0_11, %c0_12], %13 {strides = array<i32>} : memref<256x32xf32, #tpu.memory_space<vmem>>, vector<256x32xf32>,
    } else {
    }
    %c0 = arith.constant 0 : index
    %c0_1 = arith.constant 0 : index
    %3 = vector.load %arg10[%c0, %c0_1] : memref<256x32xf32, #tpu.memory_space<vmem>>, vector<256x32xf32>
    %c0_2 = arith.constant 0 : index
    %c0_3 = arith.constant 0 : index
    %4 = vector.load %arg2[%c0_2, %c0_3] : memref<256x256xi8, #tpu.memory_space<vmem>>, vector<256x256xi8>
    %5 = arith.sitofp %4 : vector<256x256xi8> to vector<256x256xbf16>
    %c0_4 = arith.constant 0 : index
    %c0_5 = arith.constant 0 : index
    %6 = vector.load %arg3[%c0_4, %c0_5] : memref<256x32xbf16, #tpu.memory_space<vmem>>, vector<256x32xbf16>
    %cst = arith.constant dense<0.000000e+00> : vector<256x32xf32>
    %7 = tpu.matmul %5, %6, %cst {dimension_numbers = #tpu.dot_dimension_numbers<[1], [0], [0], [1], [0, 0, 1, 1], [], []>} : vector<256x256xbf16>, vector<256x32xbf16>, vector<256x32xf32> -> vector<256x32xf32>
    %8 = arith.addf %3, %7 : vector<256x32xf32>
    %c0_6 = arith.constant 0 : index
    %c0_7 = arith.constant 0 : index
    %9 = vector.load %arg10[%c0_6, %c0_7] : memref<256x32xf32, #tpu.memory_space<vmem>>, vector<256x32xf32>
    tpu.vector_store %arg10[%c0_6, %c0_7], %8 {strides = array<i32>} : memref<256x32xf32, #tpu.memory_space<vmem>>, vector<256x32xf32>,
    %c0_i32_8 = arith.constant 0 : i32
    %10 = arith.cmpi eq, %arg1, %c0_i32_8 : i32
    %11 = arith.extui %10 : i1 to i32
    %c0_i32_9 = arith.constant 0 : i32
    %12 = arith.cmpi ne, %11, %c0_i32_9 : i32
    scf.if %12 {
      %c0_10 = arith.constant 0 : index
      %c0_11 = arith.constant 0 : index
      %13 = vector.load %arg10[%c0_10, %c0_11] : memref<256x32xf32, #tpu.memory_space<vmem>>, vector<256x32xf32>
      %c0_12 = arith.constant 0 : index
      %c0_13 = arith.constant 0 : index
      %14 = vector.load %arg4[%c0_12, %c0_13] : memref<256x1xf32, #tpu.memory_space<vmem>>, vector<256x1xf32>
      %15 = vector.broadcast %14 : vector<256x1xf32> to vector<256x32xf32>
      %16 = arith.mulf %13, %15 : vector<256x32xf32>
      %17 = arith.truncf %16 : vector<256x32xf32> to vector<256x32xbf16>
      %c0_14 = arith.constant 0 : index
      %c0_15 = arith.constant 0 : index
      %18 = vector.load %arg6[%c0_14, %c0_15] : memref<32x256xbf16, #tpu.memory_space<vmem>>, vector<32x256xbf16>
      %cst_16 = arith.constant dense<0.000000e+00> : vector<256x256xf32>
      %19 = tpu.matmul %17, %18, %cst_16 {dimension_numbers = #tpu.dot_dimension_numbers<[1], [0], [0], [1], [0, 0, 1, 1], [], []>} : vector<256x32xbf16>, vector<32x256xbf16>, vector<256x256xf32> -> vector<256x256xf32>
      %c0_17 = arith.constant 0 : index
      %c0_18 = arith.constant 0 : index
      %20 = vector.load %arg5[%c0_17, %c0_18] : memref<256x32xbf16, #tpu.memory_space<vmem>>, vector<256x32xbf16>
      %c0_19 = arith.constant 0 : index
      %c0_20 = arith.constant 0 : index
      %21 = vector.load %arg7[%c0_19, %c0_20] : memref<32x256xbf16, #tpu.memory_space<vmem>>, vector<32x256xbf16>
      %cst_21 = arith.constant dense<0.000000e+00> : vector<256x256xf32>
      %22 = tpu.matmul %20, %21, %cst_21 {dimension_numbers = #tpu.dot_dimension_numbers<[1], [0], [0], [1], [0, 0, 1, 1], [], []>} : vector<256x32xbf16>, vector<32x256xbf16>, vector<256x256xf32> -> vector<256x256xf32>
      %23 = arith.addf %19, %22 : vector<256x256xf32>
      %c0_22 = arith.constant 0 : index
      %c0_23 = arith.constant 0 : index
      %24 = vector.load %arg8[%c0_22, %c0_23] : memref<1x256xf32, #tpu.memory_space<vmem>>, vector<1x256xf32>
      %25 = vector.broadcast %24 : vector<1x256xf32> to vector<256x256xf32>
      %26 = arith.addf %23, %25 : vector<256x256xf32>
      %cst_24 = arith.constant 0.000000e+00 : f32
      %27 = vector.broadcast %cst_24 : f32 to vector<256x256xf32>
      %28 = arith.maximumf %26, %27 : vector<256x256xf32>
      %29 = arith.truncf %28 : vector<256x256xf32> to vector<256x256xbf16>
      %c0_25 = arith.constant 0 : index
      %c0_26 = arith.constant 0 : index
      %30 = vector.load %arg9[%c0_25, %c0_26] : memref<256x256xbf16, #tpu.memory_space<vmem>>, vector<256x256xbf16>
      tpu.vector_store %arg9[%c0_25, %c0_26], %29 {strides = array<i32>} : memref<256x256xbf16, #tpu.memory_space<vmem>>, vector<256x256xbf16>,
    } else {
    }
    return
  }
  func.func @transform_0(%arg0: i32, %arg1: i32) -> (i32, i32) {
    %c0_i32 = arith.constant 0 : i32
    return %arg0, %arg1 : i32, i32
  }
  func.func @transform_1(%arg0: i32, %arg1: i32) -> (i32, i32) {
    %c0_i32 = arith.constant 0 : i32
    %c0_i32_0 = arith.constant 0 : i32
    return %arg1, %c0_i32 : i32, i32
  }
  func.func @transform_2(%arg0: i32, %arg1: i32) -> (i32, i32) {
    %c0_i32 = arith.constant 0 : i32
    %c0_i32_0 = arith.constant 0 : i32
    return %arg0, %c0_i32 : i32, i32
  }
  func.func @transform_3(%arg0: i32, %arg1: i32) -> (i32, i32) {
    %c0_i32 = arith.constant 0 : i32
    %c0_i32_0 = arith.constant 0 : i32
    return %arg0, %c0_i32 : i32, i32
  }
  func.func @transform_4(%arg0: i32, %arg1: i32) -> (i32, i32) {
    %c0_i32 = arith.constant 0 : i32
    %c0_i32_0 = arith.constant 0 : i32
    %c0_i32_1 = arith.constant 0 : i32
    return %c0_i32, %c0_i32_0 : i32, i32
  }
  func.func @transform_5(%arg0: i32, %arg1: i32) -> (i32, i32) {
    %c0_i32 = arith.constant 0 : i32
    %c0_i32_0 = arith.constant 0 : i32
    %c0_i32_1 = arith.constant 0 : i32
    return %c0_i32, %c0_i32_0 : i32, i32
  }
  func.func @transform_6(%arg0: i32, %arg1: i32) -> (i32, i32) {
    %c0_i32 = arith.constant 0 : i32
    %c0_i32_0 = arith.constant 0 : i32
    %c0_i32_1 = arith.constant 0 : i32
    return %c0_i32, %c0_i32_0 : i32, i32
  }
  func.func @transform_7(%arg0: i32, %arg1: i32) -> (i32, i32) {
    %c0_i32 = arith.constant 0 : i32
    %c0_i32_0 = arith.constant 0 : i32
    return %arg0, %c0_i32 : i32, i32
  }
}

module attributes {stable_mosaic.version = 11 : i64} {
  func.func @_sage_agg_pre_kernel(%arg0: i32, %arg1: i32, %arg2: memref<256x256xi8, #tpu.memory_space<vmem>>, %arg3: memref<256x128xbf16, #tpu.memory_space<vmem>>, %arg4: memref<256x1xf32, #tpu.memory_space<vmem>>, %arg5: memref<256x256xbf16, #tpu.memory_space<vmem>>, %arg6: memref<256x128xbf16, #tpu.memory_space<vmem>>, %arg7: memref<1x128xf32, #tpu.memory_space<vmem>>, %arg8: memref<256x128xbf16, #tpu.memory_space<vmem>>, %arg9: memref<256x128xf32, #tpu.memory_space<vmem>>) attributes {dimension_semantics = [#tpu.dimension_semantics<parallel>, #tpu.dimension_semantics<arbitrary>], iteration_bounds = array<i64: 1, 1>, scalar_prefetch = 0 : i64, scratch_operands = 1 : i64, tpu.core_type = #tpu.core_type<tc>, window_params = [{transform_indices = @transform_0, window_bounds = array<i64: 256, 256>}, {transform_indices = @transform_1, window_bounds = array<i64: 256, 128>}, {transform_indices = @transform_2, window_bounds = array<i64: 256, 1>}, {transform_indices = @transform_3, window_bounds = array<i64: 256, 256>}, {pipeline_mode = #tpu.pipeline_mode<synchronous>, transform_indices = @transform_4, window_bounds = array<i64: 256, 128>}, {pipeline_mode = #tpu.pipeline_mode<synchronous>, transform_indices = @transform_5, window_bounds = array<i64: 1, 128>}, {transform_indices = @transform_6, window_bounds = array<i64: 256, 128>}]} {
    %c0_i32 = arith.constant 0 : i32
    %0 = arith.cmpi eq, %arg1, %c0_i32 : i32
    %1 = arith.extui %0 : i1 to i32
    %c0_i32_0 = arith.constant 0 : i32
    %2 = arith.cmpi ne, %1, %c0_i32_0 : i32
    scf.if %2 {
      %cst_10 = arith.constant 0.000000e+00 : f32
      %13 = vector.broadcast %cst_10 : f32 to vector<256x128xf32>
      %c0_11 = arith.constant 0 : index
      %c0_12 = arith.constant 0 : index
      %14 = vector.load %arg9[%c0_11, %c0_12] : memref<256x128xf32, #tpu.memory_space<vmem>>, vector<256x128xf32>
      tpu.vector_store %arg9[%c0_11, %c0_12], %13 {strides = array<i32>} : memref<256x128xf32, #tpu.memory_space<vmem>>, vector<256x128xf32>,
    } else {
    }
    %c0 = arith.constant 0 : index
    %c0_1 = arith.constant 0 : index
    %3 = vector.load %arg9[%c0, %c0_1] : memref<256x128xf32, #tpu.memory_space<vmem>>, vector<256x128xf32>
    %c0_2 = arith.constant 0 : index
    %c0_3 = arith.constant 0 : index
    %4 = vector.load %arg2[%c0_2, %c0_3] : memref<256x256xi8, #tpu.memory_space<vmem>>, vector<256x256xi8>
    %5 = arith.sitofp %4 : vector<256x256xi8> to vector<256x256xbf16>
    %c0_4 = arith.constant 0 : index
    %c0_5 = arith.constant 0 : index
    %6 = vector.load %arg3[%c0_4, %c0_5] : memref<256x128xbf16, #tpu.memory_space<vmem>>, vector<256x128xbf16>
    %cst = arith.constant dense<0.000000e+00> : vector<256x128xf32>
    %7 = tpu.matmul %5, %6, %cst {dimension_numbers = #tpu.dot_dimension_numbers<[1], [0], [0], [1], [0, 0, 1, 1], [], []>} : vector<256x256xbf16>, vector<256x128xbf16>, vector<256x128xf32> -> vector<256x128xf32>
    %8 = arith.addf %3, %7 : vector<256x128xf32>
    %c0_6 = arith.constant 0 : index
    %c0_7 = arith.constant 0 : index
    %9 = vector.load %arg9[%c0_6, %c0_7] : memref<256x128xf32, #tpu.memory_space<vmem>>, vector<256x128xf32>
    tpu.vector_store %arg9[%c0_6, %c0_7], %8 {strides = array<i32>} : memref<256x128xf32, #tpu.memory_space<vmem>>, vector<256x128xf32>,
    %c0_i32_8 = arith.constant 0 : i32
    %10 = arith.cmpi eq, %arg1, %c0_i32_8 : i32
    %11 = arith.extui %10 : i1 to i32
    %c0_i32_9 = arith.constant 0 : i32
    %12 = arith.cmpi ne, %11, %c0_i32_9 : i32
    scf.if %12 {
      %c0_10 = arith.constant 0 : index
      %c0_11 = arith.constant 0 : index
      %13 = vector.load %arg9[%c0_10, %c0_11] : memref<256x128xf32, #tpu.memory_space<vmem>>, vector<256x128xf32>
      %c0_12 = arith.constant 0 : index
      %c0_13 = arith.constant 0 : index
      %14 = vector.load %arg4[%c0_12, %c0_13] : memref<256x1xf32, #tpu.memory_space<vmem>>, vector<256x1xf32>
      %15 = vector.broadcast %14 : vector<256x1xf32> to vector<256x128xf32>
      %16 = arith.mulf %13, %15 : vector<256x128xf32>
      %c0_14 = arith.constant 0 : index
      %c0_15 = arith.constant 0 : index
      %17 = vector.load %arg5[%c0_14, %c0_15] : memref<256x256xbf16, #tpu.memory_space<vmem>>, vector<256x256xbf16>
      %c0_16 = arith.constant 0 : index
      %c0_17 = arith.constant 0 : index
      %18 = vector.load %arg6[%c0_16, %c0_17] : memref<256x128xbf16, #tpu.memory_space<vmem>>, vector<256x128xbf16>
      %cst_18 = arith.constant dense<0.000000e+00> : vector<256x128xf32>
      %19 = tpu.matmul %17, %18, %cst_18 {dimension_numbers = #tpu.dot_dimension_numbers<[1], [0], [0], [1], [0, 0, 1, 1], [], []>} : vector<256x256xbf16>, vector<256x128xbf16>, vector<256x128xf32> -> vector<256x128xf32>
      %20 = arith.addf %16, %19 : vector<256x128xf32>
      %c0_19 = arith.constant 0 : index
      %c0_20 = arith.constant 0 : index
      %21 = vector.load %arg7[%c0_19, %c0_20] : memref<1x128xf32, #tpu.memory_space<vmem>>, vector<1x128xf32>
      %22 = vector.broadcast %21 : vector<1x128xf32> to vector<256x128xf32>
      %23 = arith.addf %20, %22 : vector<256x128xf32>
      %cst_21 = arith.constant 0.000000e+00 : f32
      %24 = vector.broadcast %cst_21 : f32 to vector<256x128xf32>
      %25 = arith.maximumf %23, %24 : vector<256x128xf32>
      %26 = arith.truncf %25 : vector<256x128xf32> to vector<256x128xbf16>
      %c0_22 = arith.constant 0 : index
      %c0_23 = arith.constant 0 : index
      %27 = vector.load %arg8[%c0_22, %c0_23] : memref<256x128xbf16, #tpu.memory_space<vmem>>, vector<256x128xbf16>
      tpu.vector_store %arg8[%c0_22, %c0_23], %26 {strides = array<i32>} : memref<256x128xbf16, #tpu.memory_space<vmem>>, vector<256x128xbf16>,
    } else {
    }
    return
  }
  func.func @transform_0(%arg0: i32, %arg1: i32) -> (i32, i32) {
    %c0_i32 = arith.constant 0 : i32
    return %arg0, %arg1 : i32, i32
  }
  func.func @transform_1(%arg0: i32, %arg1: i32) -> (i32, i32) {
    %c0_i32 = arith.constant 0 : i32
    %c0_i32_0 = arith.constant 0 : i32
    return %arg1, %c0_i32 : i32, i32
  }
  func.func @transform_2(%arg0: i32, %arg1: i32) -> (i32, i32) {
    %c0_i32 = arith.constant 0 : i32
    %c0_i32_0 = arith.constant 0 : i32
    return %arg0, %c0_i32 : i32, i32
  }
  func.func @transform_3(%arg0: i32, %arg1: i32) -> (i32, i32) {
    %c0_i32 = arith.constant 0 : i32
    %c0_i32_0 = arith.constant 0 : i32
    return %arg0, %c0_i32 : i32, i32
  }
  func.func @transform_4(%arg0: i32, %arg1: i32) -> (i32, i32) {
    %c0_i32 = arith.constant 0 : i32
    %c0_i32_0 = arith.constant 0 : i32
    %c0_i32_1 = arith.constant 0 : i32
    return %c0_i32, %c0_i32_0 : i32, i32
  }
  func.func @transform_5(%arg0: i32, %arg1: i32) -> (i32, i32) {
    %c0_i32 = arith.constant 0 : i32
    %c0_i32_0 = arith.constant 0 : i32
    %c0_i32_1 = arith.constant 0 : i32
    return %c0_i32, %c0_i32_0 : i32, i32
  }
  func.func @transform_6(%arg0: i32, %arg1: i32) -> (i32, i32) {
    %c0_i32 = arith.constant 0 : i32
    %c0_i32_0 = arith.constant 0 : i32
    return %arg0, %c0_i32 : i32, i32
  }
}

module attributes {stable_mosaic.version = 11 : i64} {
  func.func @_proj_kernel(%arg0: i32, %arg1: memref<256x256xbf16, #tpu.memory_space<vmem>>, %arg2: memref<256x128xbf16, #tpu.memory_space<vmem>>, %arg3: memref<256x128xbf16, #tpu.memory_space<vmem>>) attributes {dimension_semantics = [#tpu.dimension_semantics<parallel>], iteration_bounds = array<i64: 1>, scalar_prefetch = 0 : i64, scratch_operands = 0 : i64, tpu.core_type = #tpu.core_type<tc>, window_params = [{transform_indices = @transform_0, window_bounds = array<i64: 256, 256>}, {pipeline_mode = #tpu.pipeline_mode<synchronous>, transform_indices = @transform_1, window_bounds = array<i64: 256, 128>}, {transform_indices = @transform_2, window_bounds = array<i64: 256, 128>}]} {
    %c0 = arith.constant 0 : index
    %c0_0 = arith.constant 0 : index
    %0 = vector.load %arg1[%c0, %c0_0] : memref<256x256xbf16, #tpu.memory_space<vmem>>, vector<256x256xbf16>
    %c0_1 = arith.constant 0 : index
    %c0_2 = arith.constant 0 : index
    %1 = vector.load %arg2[%c0_1, %c0_2] : memref<256x128xbf16, #tpu.memory_space<vmem>>, vector<256x128xbf16>
    %cst = arith.constant dense<0.000000e+00> : vector<256x128xf32>
    %2 = tpu.matmul %0, %1, %cst {dimension_numbers = #tpu.dot_dimension_numbers<[1], [0], [0], [1], [0, 0, 1, 1], [], []>} : vector<256x256xbf16>, vector<256x128xbf16>, vector<256x128xf32> -> vector<256x128xf32>
    %3 = arith.truncf %2 : vector<256x128xf32> to vector<256x128xbf16>
    %c0_3 = arith.constant 0 : index
    %c0_4 = arith.constant 0 : index
    %4 = vector.load %arg3[%c0_3, %c0_4] : memref<256x128xbf16, #tpu.memory_space<vmem>>, vector<256x128xbf16>
    tpu.vector_store %arg3[%c0_3, %c0_4], %3 {strides = array<i32>} : memref<256x128xbf16, #tpu.memory_space<vmem>>, vector<256x128xbf16>,
    return
  }
  func.func @transform_0(%arg0: i32) -> (i32, i32) {
    %c0_i32 = arith.constant 0 : i32
    %c0_i32_0 = arith.constant 0 : i32
    return %arg0, %c0_i32 : i32, i32
  }
  func.func @transform_1(%arg0: i32) -> (i32, i32) {
    %c0_i32 = arith.constant 0 : i32
    %c0_i32_0 = arith.constant 0 : i32
    %c0_i32_1 = arith.constant 0 : i32
    return %c0_i32, %c0_i32_0 : i32, i32
  }
  func.func @transform_2(%arg0: i32) -> (i32, i32) {
    %c0_i32 = arith.constant 0 : i32
    %c0_i32_0 = arith.constant 0 : i32
    return %arg0, %c0_i32 : i32, i32
  }
}

module attributes {stable_mosaic.version = 11 : i64} {
  func.func @_sage_agg_post_kernel(%arg0: i32, %arg1: i32, %arg2: memref<256x256xi8, #tpu.memory_space<vmem>>, %arg3: memref<256x128xbf16, #tpu.memory_space<vmem>>, %arg4: memref<256x1xf32, #tpu.memory_space<vmem>>, %arg5: memref<256x128xbf16, #tpu.memory_space<vmem>>, %arg6: memref<128x128xbf16, #tpu.memory_space<vmem>>, %arg7: memref<128x128xbf16, #tpu.memory_space<vmem>>, %arg8: memref<1x128xf32, #tpu.memory_space<vmem>>, %arg9: memref<256x128xf32, #tpu.memory_space<vmem>>, %arg10: memref<256x128xf32, #tpu.memory_space<vmem>>) attributes {dimension_semantics = [#tpu.dimension_semantics<parallel>, #tpu.dimension_semantics<arbitrary>], iteration_bounds = array<i64: 1, 1>, scalar_prefetch = 0 : i64, scratch_operands = 1 : i64, tpu.core_type = #tpu.core_type<tc>, window_params = [{transform_indices = @transform_0, window_bounds = array<i64: 256, 256>}, {transform_indices = @transform_1, window_bounds = array<i64: 256, 128>}, {transform_indices = @transform_2, window_bounds = array<i64: 256, 1>}, {transform_indices = @transform_3, window_bounds = array<i64: 256, 128>}, {pipeline_mode = #tpu.pipeline_mode<synchronous>, transform_indices = @transform_4, window_bounds = array<i64: 128, 128>}, {pipeline_mode = #tpu.pipeline_mode<synchronous>, transform_indices = @transform_5, window_bounds = array<i64: 128, 128>}, {pipeline_mode = #tpu.pipeline_mode<synchronous>, transform_indices = @transform_6, window_bounds = array<i64: 1, 128>}, {transform_indices = @transform_7, window_bounds = array<i64: 256, 128>}]} {
    %c0_i32 = arith.constant 0 : i32
    %0 = arith.cmpi eq, %arg1, %c0_i32 : i32
    %1 = arith.extui %0 : i1 to i32
    %c0_i32_0 = arith.constant 0 : i32
    %2 = arith.cmpi ne, %1, %c0_i32_0 : i32
    scf.if %2 {
      %cst_10 = arith.constant 0.000000e+00 : f32
      %13 = vector.broadcast %cst_10 : f32 to vector<256x128xf32>
      %c0_11 = arith.constant 0 : index
      %c0_12 = arith.constant 0 : index
      %14 = vector.load %arg10[%c0_11, %c0_12] : memref<256x128xf32, #tpu.memory_space<vmem>>, vector<256x128xf32>
      tpu.vector_store %arg10[%c0_11, %c0_12], %13 {strides = array<i32>} : memref<256x128xf32, #tpu.memory_space<vmem>>, vector<256x128xf32>,
    } else {
    }
    %c0 = arith.constant 0 : index
    %c0_1 = arith.constant 0 : index
    %3 = vector.load %arg10[%c0, %c0_1] : memref<256x128xf32, #tpu.memory_space<vmem>>, vector<256x128xf32>
    %c0_2 = arith.constant 0 : index
    %c0_3 = arith.constant 0 : index
    %4 = vector.load %arg2[%c0_2, %c0_3] : memref<256x256xi8, #tpu.memory_space<vmem>>, vector<256x256xi8>
    %5 = arith.sitofp %4 : vector<256x256xi8> to vector<256x256xbf16>
    %c0_4 = arith.constant 0 : index
    %c0_5 = arith.constant 0 : index
    %6 = vector.load %arg3[%c0_4, %c0_5] : memref<256x128xbf16, #tpu.memory_space<vmem>>, vector<256x128xbf16>
    %cst = arith.constant dense<0.000000e+00> : vector<256x128xf32>
    %7 = tpu.matmul %5, %6, %cst {dimension_numbers = #tpu.dot_dimension_numbers<[1], [0], [0], [1], [0, 0, 1, 1], [], []>} : vector<256x256xbf16>, vector<256x128xbf16>, vector<256x128xf32> -> vector<256x128xf32>
    %8 = arith.addf %3, %7 : vector<256x128xf32>
    %c0_6 = arith.constant 0 : index
    %c0_7 = arith.constant 0 : index
    %9 = vector.load %arg10[%c0_6, %c0_7] : memref<256x128xf32, #tpu.memory_space<vmem>>, vector<256x128xf32>
    tpu.vector_store %arg10[%c0_6, %c0_7], %8 {strides = array<i32>} : memref<256x128xf32, #tpu.memory_space<vmem>>, vector<256x128xf32>,
    %c0_i32_8 = arith.constant 0 : i32
    %10 = arith.cmpi eq, %arg1, %c0_i32_8 : i32
    %11 = arith.extui %10 : i1 to i32
    %c0_i32_9 = arith.constant 0 : i32
    %12 = arith.cmpi ne, %11, %c0_i32_9 : i32
    scf.if %12 {
      %c0_10 = arith.constant 0 : index
      %c0_11 = arith.constant 0 : index
      %13 = vector.load %arg10[%c0_10, %c0_11] : memref<256x128xf32, #tpu.memory_space<vmem>>, vector<256x128xf32>
      %c0_12 = arith.constant 0 : index
      %c0_13 = arith.constant 0 : index
      %14 = vector.load %arg4[%c0_12, %c0_13] : memref<256x1xf32, #tpu.memory_space<vmem>>, vector<256x1xf32>
      %15 = vector.broadcast %14 : vector<256x1xf32> to vector<256x128xf32>
      %16 = arith.mulf %13, %15 : vector<256x128xf32>
      %17 = arith.truncf %16 : vector<256x128xf32> to vector<256x128xbf16>
      %c0_14 = arith.constant 0 : index
      %c0_15 = arith.constant 0 : index
      %18 = vector.load %arg6[%c0_14, %c0_15] : memref<128x128xbf16, #tpu.memory_space<vmem>>, vector<128x128xbf16>
      %cst_16 = arith.constant dense<0.000000e+00> : vector<256x128xf32>
      %19 = tpu.matmul %17, %18, %cst_16 {dimension_numbers = #tpu.dot_dimension_numbers<[1], [0], [0], [1], [0, 0, 1, 1], [], []>} : vector<256x128xbf16>, vector<128x128xbf16>, vector<256x128xf32> -> vector<256x128xf32>
      %c0_17 = arith.constant 0 : index
      %c0_18 = arith.constant 0 : index
      %20 = vector.load %arg5[%c0_17, %c0_18] : memref<256x128xbf16, #tpu.memory_space<vmem>>, vector<256x128xbf16>
      %c0_19 = arith.constant 0 : index
      %c0_20 = arith.constant 0 : index
      %21 = vector.load %arg7[%c0_19, %c0_20] : memref<128x128xbf16, #tpu.memory_space<vmem>>, vector<128x128xbf16>
      %cst_21 = arith.constant dense<0.000000e+00> : vector<256x128xf32>
      %22 = tpu.matmul %20, %21, %cst_21 {dimension_numbers = #tpu.dot_dimension_numbers<[1], [0], [0], [1], [0, 0, 1, 1], [], []>} : vector<256x128xbf16>, vector<128x128xbf16>, vector<256x128xf32> -> vector<256x128xf32>
      %23 = arith.addf %19, %22 : vector<256x128xf32>
      %c0_22 = arith.constant 0 : index
      %c0_23 = arith.constant 0 : index
      %24 = vector.load %arg8[%c0_22, %c0_23] : memref<1x128xf32, #tpu.memory_space<vmem>>, vector<1x128xf32>
      %25 = vector.broadcast %24 : vector<1x128xf32> to vector<256x128xf32>
      %26 = arith.addf %23, %25 : vector<256x128xf32>
      %27 = tpu.iota {dimensions = array<i32: 1>} : vector<256x128xi32>
      %c16_i32 = arith.constant 16 : i32
      %28 = vector.broadcast %c16_i32 : i32 to vector<256x128xi32>
      %29 = arith.cmpi slt, %27, %28 : vector<256x128xi32>
      %cst_24 = arith.constant -1.000000e+30 : f32
      %30 = vector.broadcast %cst_24 : f32 to vector<256x128xf32>
      %31 = arith.select %29, %26, %30 : vector<256x128xi1>, vector<256x128xf32>
      %cst_25 = arith.constant dense<0xFF800000> : vector<256xf32>
      %32 = vector.multi_reduction <maximumf>, %31, %cst_25 [1] : vector<256x128xf32> to vector<256xf32>
      %33 = vector.shape_cast %32 : vector<256xf32> to vector<256x1xf32>
      %34 = vector.broadcast %33 : vector<256x1xf32> to vector<256x128xf32>
      %35 = arith.subf %31, %34 : vector<256x128xf32>
      %36 = math.exp %35 : vector<256x128xf32>
      %cst_26 = arith.constant dense<0.000000e+00> : vector<256xf32>
      %37 = vector.multi_reduction <add>, %36, %cst_26 [1] : vector<256x128xf32> to vector<256xf32>
      %38 = vector.shape_cast %37 : vector<256xf32> to vector<256x1xf32>
      %39 = math.log %38 : vector<256x1xf32>
      %40 = arith.addf %33, %39 : vector<256x1xf32>
      %41 = vector.broadcast %40 : vector<256x1xf32> to vector<256x128xf32>
      %42 = arith.subf %31, %41 : vector<256x128xf32>
      %c0_27 = arith.constant 0 : index
      %c0_28 = arith.constant 0 : index
      %43 = vector.load %arg9[%c0_27, %c0_28] : memref<256x128xf32, #tpu.memory_space<vmem>>, vector<256x128xf32>
      tpu.vector_store %arg9[%c0_27, %c0_28], %42 {strides = array<i32>} : memref<256x128xf32, #tpu.memory_space<vmem>>, vector<256x128xf32>,
    } else {
    }
    return
  }
  func.func @transform_0(%arg0: i32, %arg1: i32) -> (i32, i32) {
    %c0_i32 = arith.constant 0 : i32
    return %arg0, %arg1 : i32, i32
  }
  func.func @transform_1(%arg0: i32, %arg1: i32) -> (i32, i32) {
    %c0_i32 = arith.constant 0 : i32
    %c0_i32_0 = arith.constant 0 : i32
    return %arg1, %c0_i32 : i32, i32
  }
  func.func @transform_2(%arg0: i32, %arg1: i32) -> (i32, i32) {
    %c0_i32 = arith.constant 0 : i32
    %c0_i32_0 = arith.constant 0 : i32
    return %arg0, %c0_i32 : i32, i32
  }
  func.func @transform_3(%arg0: i32, %arg1: i32) -> (i32, i32) {
    %c0_i32 = arith.constant 0 : i32
    %c0_i32_0 = arith.constant 0 : i32
    return %arg0, %c0_i32 : i32, i32
  }
  func.func @transform_4(%arg0: i32, %arg1: i32) -> (i32, i32) {
    %c0_i32 = arith.constant 0 : i32
    %c0_i32_0 = arith.constant 0 : i32
    %c0_i32_1 = arith.constant 0 : i32
    return %c0_i32, %c0_i32_0 : i32, i32
  }
  func.func @transform_5(%arg0: i32, %arg1: i32) -> (i32, i32) {
    %c0_i32 = arith.constant 0 : i32
    %c0_i32_0 = arith.constant 0 : i32
    %c0_i32_1 = arith.constant 0 : i32
    return %c0_i32, %c0_i32_0 : i32, i32
  }
  func.func @transform_6(%arg0: i32, %arg1: i32) -> (i32, i32) {
    %c0_i32 = arith.constant 0 : i32
    %c0_i32_0 = arith.constant 0 : i32
    %c0_i32_1 = arith.constant 0 : i32
    return %c0_i32, %c0_i32_0 : i32, i32
  }
  func.func @transform_7(%arg0: i32, %arg1: i32) -> (i32, i32) {
    %c0_i32 = arith.constant 0 : i32
    %c0_i32_0 = arith.constant 0 : i32
    return %arg0, %c0_i32 : i32, i32
  }
}

</mosaic_0001>

<llo_original>
// kernel: graphsage_forward.5
$region0: #{graphsage_forward.5}
  #allocation0 [shape = 'u32[]', space=smem, size = 0x4, offset = 0x4, fixed_abs, tag = 'smem constant byte address 0x4 - core index']
  #allocation1 [shape = 'u32[72,128]{1,0:T(1,128)}', space=vmem, size = 0x9000, scoped, tag = 'internal scratch']
  %s0 = inlined_call_operand.vmem [shape: bf16[256,256], index: 0, kind: input, shape index: {}]
  %s1 = inlined_call_operand.vmem [shape: bf16[256,128], index: 1, kind: input, shape index: {}]
  %s2 = inlined_call_operand.vmem [shape: bf16[256,128], index: 2, kind: output, shape index: {}]
  %s3 = sld [smem:[#allocation0]]
  $region18: #{graphsage_forward.5} parent=0
    _
  %s5 = ssub.s32 1, %s3
  %s6 = scalar_select 0, %s5, %s3
  // Predicated region
  $region2: #{graphsage_forward.5} parent=0 // pred_check
    _
  $region3: #{graphsage_forward.5} parent=0 // pred_check_branch
    %8 = sbr.rel (0) target = $region5
  $region4: #{graphsage_forward.5} parent=0 // pred_region
    _
  $region5: #{graphsage_forward.5} parent=0 // pred_fallthru
    _
  // Predicated region
  $region6: #{graphsage_forward.5} parent=0 // pred_check
    _
  $region7: #{graphsage_forward.5} parent=0 // pred_check_branch
    %10 = sbr.rel (0) target = $region9
  $region8: #{graphsage_forward.5} parent=0 // pred_region
    _
  $region9: #{graphsage_forward.5} parent=0 // pred_fallthru
    _
  %v11 = vld [vmem:[%s0] sm:$0xff]
  %v12 = vld [vmem:[%s0 + $0x8] sm:$0xff]
  %v13 = vld [vmem:[%s0 + $0x10] sm:$0xff]
  %v14 = vld [vmem:[%s0 + $0x18] sm:$0xff]
  %v15 = vld [vmem:[%s0 + $0x20] sm:$0xff]
  %v16 = vld [vmem:[%s0 + $0x28] sm:$0xff]
  %v17 = vld [vmem:[%s0 + $0x30] sm:$0xff]
  %v18 = vld [vmem:[%s0 + $0x38] sm:$0xff]
  %v19 = vld [vmem:[%s0 + $0x40] sm:$0xff]
  %v20 = vld [vmem:[%s0 + $0x48] sm:$0xff]
  %v21 = vld [vmem:[%s0 + $0x50] sm:$0xff]
  %v22 = vld [vmem:[%s0 + $0x58] sm:$0xff]
  %v23 = vld [vmem:[%s0 + $0x60] sm:$0xff]
  %v24 = vld [vmem:[%s0 + $0x68] sm:$0xff]
  %v25 = vld [vmem:[%s0 + $0x70] sm:$0xff]
  %v26 = vld [vmem:[%s0 + $0x78] sm:$0xff]
  %v27 = vld [vmem:[%s0 + $0x80] sm:$0xff]
  %v28 = vld [vmem:[%s0 + $0x88] sm:$0xff]
  %v29 = vld [vmem:[%s0 + $0x90] sm:$0xff]
  %v30 = vld [vmem:[%s0 + $0x98] sm:$0xff]
  %v31 = vld [vmem:[%s0 + $0xa0] sm:$0xff]
  %v32 = vld [vmem:[%s0 + $0xa8] sm:$0xff]
  %v33 = vld [vmem:[%s0 + $0xb0] sm:$0xff]
  %v34 = vld [vmem:[%s0 + $0xb8] sm:$0xff]
  %v35 = vld [vmem:[%s0 + $0xc0] sm:$0xff]
  %v36 = vld [vmem:[%s0 + $0xc8] sm:$0xff]
  %v37 = vld [vmem:[%s0 + $0xd0] sm:$0xff]
  %v38 = vld [vmem:[%s0 + $0xd8] sm:$0xff]
  %v39 = vld [vmem:[%s0 + $0xe0] sm:$0xff]
  %v40 = vld [vmem:[%s0 + $0xe8] sm:$0xff]
  %v41 = vld [vmem:[%s0 + $0xf0] sm:$0xff]
  %v42 = vld [vmem:[%s0 + $0xf8] sm:$0xff]
  %v43 = vld [vmem:[%s1] sm:$0xf]
  %v44 = vld [vmem:[%s1 + $0x4] sm:$0xf]
  %v45 = vld [vmem:[%s1 + $0x8] sm:$0xf]
  %v46 = vld [vmem:[%s1 + $0xc] sm:$0xf]
  %v47 = vld [vmem:[%s1 + $0x10] sm:$0xf]
  %v48 = vld [vmem:[%s1 + $0x14] sm:$0xf]
  %v49 = vld [vmem:[%s1 + $0x18] sm:$0xf]
  %v50 = vld [vmem:[%s1 + $0x1c] sm:$0xf]
  %v51 = vld [vmem:[%s1 + $0x20] sm:$0xf]
  %v52 = vld [vmem:[%s1 + $0x24] sm:$0xf]
  %v53 = vld [vmem:[%s1 + $0x28] sm:$0xf]
  %v54 = vld [vmem:[%s1 + $0x2c] sm:$0xf]
  %v55 = vld [vmem:[%s1 + $0x30] sm:$0xf]
  %v56 = vld [vmem:[%s1 + $0x34] sm:$0xf]
  %v57 = vld [vmem:[%s1 + $0x38] sm:$0xf]
  %v58 = vld [vmem:[%s1 + $0x3c] sm:$0xf]
  %v59 = vld [vmem:[%s1 + $0x40] sm:$0xf]
  %v60 = vld [vmem:[%s1 + $0x44] sm:$0xf]
  %v61 = vld [vmem:[%s1 + $0x48] sm:$0xf]
  %v62 = vld [vmem:[%s1 + $0x4c] sm:$0xf]
  %v63 = vld [vmem:[%s1 + $0x50] sm:$0xf]
  %v64 = vld [vmem:[%s1 + $0x54] sm:$0xf]
  %v65 = vld [vmem:[%s1 + $0x58] sm:$0xf]
  %v66 = vld [vmem:[%s1 + $0x5c] sm:$0xf]
  %v67 = vld [vmem:[%s1 + $0x60] sm:$0xf]
  %v68 = vld [vmem:[%s1 + $0x64] sm:$0xf]
  %v69 = vld [vmem:[%s1 + $0x68] sm:$0xf]
  %v70 = vld [vmem:[%s1 + $0x6c] sm:$0xf]
  %v71 = vld [vmem:[%s1 + $0x70] sm:$0xf]
  %v72 = vld [vmem:[%s1 + $0x74] sm:$0xf]
  %v73 = vld [vmem:[%s1 + $0x78] sm:$0xf]
  %v74 = vld [vmem:[%s1 + $0x7c] sm:$0xf]
  %v107 = vunpack.c.l.b16 %v11
  %v108 = vunpack.c.h.b16 %v11
  %v109 = vunpack.c.l.b16 %v12
  %v110 = vunpack.c.h.b16 %v12
  %v111 = vunpack.c.l.b16 %v13
  %v112 = vunpack.c.h.b16 %v13
  %v113 = vunpack.c.l.b16 %v14
  %v114 = vunpack.c.h.b16 %v14
  %v115 = vunpack.c.l.b16 %v15
  %v116 = vunpack.c.h.b16 %v15
  %v117 = vunpack.c.l.b16 %v16
  %v118 = vunpack.c.h.b16 %v16
  %v119 = vunpack.c.l.b16 %v17
  %v120 = vunpack.c.h.b16 %v17
  %v121 = vunpack.c.l.b16 %v18
  %v122 = vunpack.c.h.b16 %v18
  %v123 = vunpack.c.l.b16 %v19
  %v124 = vunpack.c.h.b16 %v19
  %v125 = vunpack.c.l.b16 %v20
  %v126 = vunpack.c.h.b16 %v20
  %v127 = vunpack.c.l.b16 %v21
  %v128 = vunpack.c.h.b16 %v21
  %v129 = vunpack.c.l.b16 %v22
  %v130 = vunpack.c.h.b16 %v22
  %v131 = vunpack.c.l.b16 %v23
  %v132 = vunpack.c.h.b16 %v23
  %v133 = vunpack.c.l.b16 %v24
  %v134 = vunpack.c.h.b16 %v24
  %v135 = vunpack.c.l.b16 %v25
  %v136 = vunpack.c.h.b16 %v25
  %v137 = vunpack.c.l.b16 %v26
  %v138 = vunpack.c.h.b16 %v26
  %v139 = vunpack.c.l.b16 %v27
  %v140 = vunpack.c.h.b16 %v27
  %v141 = vunpack.c.l.b16 %v28
  %v142 = vunpack.c.h.b16 %v28
  %v143 = vunpack.c.l.b16 %v29
  %v144 = vunpack.c.h.b16 %v29
  %v145 = vunpack.c.l.b16 %v30
  %v146 = vunpack.c.h.b16 %v30
  %v147 = vunpack.c.l.b16 %v31
  %v148 = vunpack.c.h.b16 %v31
  %v149 = vunpack.c.l.b16 %v32
  %v150 = vunpack.c.h.b16 %v32
  %v151 = vunpack.c.l.b16 %v33
  %v152 = vunpack.c.h.b16 %v33
  %v153 = vunpack.c.l.b16 %v34
  %v154 = vunpack.c.h.b16 %v34
  %v155 = vunpack.c.l.b16 %v35
  %v156 = vunpack.c.h.b16 %v35
  %v157 = vunpack.c.l.b16 %v36
  %v158 = vunpack.c.h.b16 %v36
  %v159 = vunpack.c.l.b16 %v37
  %v160 = vunpack.c.h.b16 %v37
  %v161 = vunpack.c.l.b16 %v38
  %v162 = vunpack.c.h.b16 %v38
  %v163 = vunpack.c.l.b16 %v39
  %v164 = vunpack.c.h.b16 %v39
  %v165 = vunpack.c.l.b16 %v40
  %v166 = vunpack.c.h.b16 %v40
  %v167 = vunpack.c.l.b16 %v41
  %v168 = vunpack.c.h.b16 %v41
  %v169 = vunpack.c.l.b16 %v42
  %v170 = vunpack.c.h.b16 %v42
  %v171 = vpack.c.b16 %v109, %v107
  %v172 = vpack.c.b16 %v110, %v108
  %v173 = vpack.c.b16 %v113, %v111
  %v174 = vpack.c.b16 %v114, %v112
  %v175 = vpack.c.b16 %v117, %v115
  %v176 = vpack.c.b16 %v118, %v116
  %v177 = vpack.c.b16 %v121, %v119
  %v178 = vpack.c.b16 %v122, %v120
  %v179 = vpack.c.b16 %v125, %v123
  %v180 = vpack.c.b16 %v126, %v124
  %v181 = vpack.c.b16 %v129, %v127
  %v182 = vpack.c.b16 %v130, %v128
  %v183 = vpack.c.b16 %v133, %v131
  %v184 = vpack.c.b16 %v134, %v132
  %v185 = vpack.c.b16 %v137, %v135
  %v186 = vpack.c.b16 %v138, %v136
  %v187 = vpack.c.b16 %v141, %v139
  %v188 = vpack.c.b16 %v142, %v140
  %v189 = vpack.c.b16 %v145, %v143
  %v190 = vpack.c.b16 %v146, %v144
  %v191 = vpack.c.b16 %v149, %v147
  %v192 = vpack.c.b16 %v150, %v148
  %v193 = vpack.c.b16 %v153, %v151
  %v194 = vpack.c.b16 %v154, %v152
  %v195 = vpack.c.b16 %v157, %v155
  %v196 = vpack.c.b16 %v158, %v156
  %v197 = vpack.c.b16 %v161, %v159
  %v198 = vpack.c.b16 %v162, %v160
  %v199 = vpack.c.b16 %v165, %v163
  %v200 = vpack.c.b16 %v166, %v164
  %v201 = vpack.c.b16 %v169, %v167
  %v202 = vpack.c.b16 %v170, %v168
  %v267 = vunpack.c.l.b16 %v43
  %v268 = vunpack.c.l.b16 %v44
  %v269 = vunpack.c.l.b16 %v45
  %v270 = vunpack.c.l.b16 %v46
  %v271 = vunpack.c.l.b16 %v47
  %v272 = vunpack.c.l.b16 %v48
  %v273 = vunpack.c.l.b16 %v49
  %v274 = vunpack.c.l.b16 %v50
  %v275 = vunpack.c.l.b16 %v51
  %v276 = vunpack.c.l.b16 %v52
  %v277 = vunpack.c.l.b16 %v53
  %v278 = vunpack.c.l.b16 %v54
  %v279 = vunpack.c.l.b16 %v55
  %v280 = vunpack.c.l.b16 %v56
  %v281 = vunpack.c.l.b16 %v57
  %v282 = vunpack.c.l.b16 %v58
  %v283 = vunpack.c.l.b16 %v59
  %v284 = vunpack.c.l.b16 %v60
  %v285 = vunpack.c.l.b16 %v61
  %v286 = vunpack.c.l.b16 %v62
  %v287 = vunpack.c.l.b16 %v63
  %v288 = vunpack.c.l.b16 %v64
  %v289 = vunpack.c.l.b16 %v65
  %v290 = vunpack.c.l.b16 %v66
  %v291 = vunpack.c.l.b16 %v67
  %v292 = vunpack.c.l.b16 %v68
  %v293 = vunpack.c.l.b16 %v69
  %v294 = vunpack.c.l.b16 %v70
  %v295 = vunpack.c.l.b16 %v71
  %v296 = vunpack.c.l.b16 %v72
  %v297 = vunpack.c.l.b16 %v73
  %v298 = vunpack.c.l.b16 %v74
  %v299 = vpack.c.b16 %v268, %v267
  %v300 = vpack.c.b16 %v270, %v269
  %v301 = vpack.c.b16 %v272, %v271
  %v302 = vpack.c.b16 %v274, %v273
  %v303 = vpack.c.b16 %v276, %v275
  %v304 = vpack.c.b16 %v278, %v277
  %v305 = vpack.c.b16 %v280, %v279
  %v306 = vpack.c.b16 %v282, %v281
  %v307 = vpack.c.b16 %v284, %v283
  %v308 = vpack.c.b16 %v286, %v285
  %v309 = vpack.c.b16 %v288, %v287
  %v310 = vpack.c.b16 %v290, %v289
  %v311 = vpack.c.b16 %v292, %v291
  %v312 = vpack.c.b16 %v294, %v293
  %v313 = vpack.c.b16 %v296, %v295
  %v314 = vpack.c.b16 %v298, %v297
  %331 = vmatpush.bf16.msra.mxu0 %v306
  %332 = vmatpush.bf16.msra.mxu0 %v305
  %333 = vmatpush.bf16.msra.mxu0 %v304
  %334 = vmatpush.bf16.msra.mxu0 %v303
  %335 = vmatpush.bf16.msra.mxu0 %v302
  %336 = vmatpush.bf16.msra.mxu0 %v301
  %337 = vmatpush.bf16.msra.mxu0 %v300
  %338 = vmatpush.bf16.msra.mxu0 %v299
  %339 = vmatmul.bf16.gmra.mxu0 %v171
  %v340 = vpop.f32.mrf.mxu0
  %v341 = vadd.f32 0.0, %v340
  %v342 = vpop.f32.mrf.mxu0
  %v343 = vadd.f32 0.0, %v342
  %344 = vmatmul.bf16.gmra.mxu0 %v173
  %v345 = vpop.f32.mrf.mxu0
  %v346 = vadd.f32 0.0, %v345
  %v347 = vpop.f32.mrf.mxu0
  %v348 = vadd.f32 0.0, %v347
  %349 = vmatmul.bf16.gmra.mxu0 %v175
  %v350 = vpop.f32.mrf.mxu0
  %v351 = vadd.f32 0.0, %v350
  %v352 = vpop.f32.mrf.mxu0
  %v353 = vadd.f32 0.0, %v352
  %354 = vmatmul.bf16.gmra.mxu0 %v177
  %v355 = vpop.f32.mrf.mxu0
  %v356 = vadd.f32 0.0, %v355
  %v357 = vpop.f32.mrf.mxu0
  %v358 = vadd.f32 0.0, %v357
  %359 = vmatmul.bf16.gmra.mxu0 %v179
  %v360 = vpop.f32.mrf.mxu0
  %v361 = vadd.f32 0.0, %v360
  %v362 = vpop.f32.mrf.mxu0
  %v363 = vadd.f32 0.0, %v362
  %364 = vmatmul.bf16.gmra.mxu0 %v181
  %v365 = vpop.f32.mrf.mxu0
  %v366 = vadd.f32 0.0, %v365
  %v367 = vpop.f32.mrf.mxu0
  %v368 = vadd.f32 0.0, %v367
  %369 = vmatmul.bf16.gmra.mxu0 %v183
  %v370 = vpop.f32.mrf.mxu0
  %v371 = vadd.f32 0.0, %v370
  %v372 = vpop.f32.mrf.mxu0
  %v373 = vadd.f32 0.0, %v372
  %374 = vmatmul.bf16.gmra.mxu0 %v185
  %v375 = vpop.f32.mrf.mxu0
  %v376 = vadd.f32 0.0, %v375
  %v377 = vpop.f32.mrf.mxu0
  %v378 = vadd.f32 0.0, %v377
  %379 = vmatmul.bf16.gmra.mxu0 %v187
  %v380 = vpop.f32.mrf.mxu0
  %v381 = vadd.f32 0.0, %v380
  %v382 = vpop.f32.mrf.mxu0
  %v383 = vadd.f32 0.0, %v382
  %384 = vmatmul.bf16.gmra.mxu0 %v189
  %v385 = vpop.f32.mrf.mxu0
  %v386 = vadd.f32 0.0, %v385
  %v387 = vpop.f32.mrf.mxu0
  %v388 = vadd.f32 0.0, %v387
  %389 = vmatmul.bf16.gmra.mxu0 %v191
  %v390 = vpop.f32.mrf.mxu0
  %v391 = vadd.f32 0.0, %v390
  %v392 = vpop.f32.mrf.mxu0
  %v393 = vadd.f32 0.0, %v392
  %394 = vmatmul.bf16.gmra.mxu0 %v193
  %v395 = vpop.f32.mrf.mxu0
  %v396 = vadd.f32 0.0, %v395
  %v397 = vpop.f32.mrf.mxu0
  %v398 = vadd.f32 0.0, %v397
  %399 = vmatmul.bf16.gmra.mxu0 %v195
  %v400 = vpop.f32.mrf.mxu0
  %v401 = vadd.f32 0.0, %v400
  %v402 = vpop.f32.mrf.mxu0
  %v403 = vadd.f32 0.0, %v402
  %404 = vmatmul.bf16.gmra.mxu0 %v197
  %v405 = vpop.f32.mrf.mxu0
  %v406 = vadd.f32 0.0, %v405
  %v407 = vpop.f32.mrf.mxu0
  %v408 = vadd.f32 0.0, %v407
  %409 = vmatmul.bf16.gmra.mxu0 %v199
  %v410 = vpop.f32.mrf.mxu0
  %v411 = vadd.f32 0.0, %v410
  %v412 = vpop.f32.mrf.mxu0
  %v413 = vadd.f32 0.0, %v412
  %414 = vmatmul.bf16.gmra.mxu0 %v201
  %v415 = vpop.f32.mrf.mxu0
  %v416 = vadd.f32 0.0, %v415
  %v417 = vpop.f32.mrf.mxu0
  %v418 = vadd.f32 0.0, %v417
  %419 = vdwg.mxu0
  %420 = vmatpush.bf16.msra.mxu0 %v314
  %421 = vmatpush.bf16.msra.mxu0 %v313
  %422 = vmatpush.bf16.msra.mxu0 %v312
  %423 = vmatpush.bf16.msra.mxu0 %v311
  %424 = vmatpush.bf16.msra.mxu0 %v310
  %425 = vmatpush.bf16.msra.mxu0 %v309
  %426 = vmatpush.bf16.msra.mxu0 %v308
  %427 = vmatpush.bf16.msra.mxu0 %v307
  %428 = vmatmul.bf16.gmra.mxu0 %v172
  %v429 = vpop.f32.mrf.mxu0
  %v430 = vadd.f32 %v341, %v429
  %v431 = vpop.f32.mrf.mxu0
  %v432 = vadd.f32 %v343, %v431
  %433 = vmatmul.bf16.gmra.mxu0 %v174
  %v434 = vpop.f32.mrf.mxu0
  %v435 = vadd.f32 %v346, %v434
  %v436 = vpop.f32.mrf.mxu0
  %v437 = vadd.f32 %v348, %v436
  %438 = vmatmul.bf16.gmra.mxu0 %v176
  %v439 = vpop.f32.mrf.mxu0
  %v440 = vadd.f32 %v351, %v439
  %v441 = vpop.f32.mrf.mxu0
  %v442 = vadd.f32 %v353, %v441
  %443 = vmatmul.bf16.gmra.mxu0 %v178
  %v444 = vpop.f32.mrf.mxu0
  %v445 = vadd.f32 %v356, %v444
  %v446 = vpop.f32.mrf.mxu0
  %v447 = vadd.f32 %v358, %v446
  %448 = vmatmul.bf16.gmra.mxu0 %v180
  %v449 = vpop.f32.mrf.mxu0
  %v450 = vadd.f32 %v361, %v449
  %v451 = vpop.f32.mrf.mxu0
  %v452 = vadd.f32 %v363, %v451
  %453 = vmatmul.bf16.gmra.mxu0 %v182
  %v454 = vpop.f32.mrf.mxu0
  %v455 = vadd.f32 %v366, %v454
  %v456 = vpop.f32.mrf.mxu0
  %v457 = vadd.f32 %v368, %v456
  %458 = vmatmul.bf16.gmra.mxu0 %v184
  %v459 = vpop.f32.mrf.mxu0
  %v460 = vadd.f32 %v371, %v459
  %v461 = vpop.f32.mrf.mxu0
  %v462 = vadd.f32 %v373, %v461
  %463 = vmatmul.bf16.gmra.mxu0 %v186
  %v464 = vpop.f32.mrf.mxu0
  %v465 = vadd.f32 %v376, %v464
  %v466 = vpop.f32.mrf.mxu0
  %v467 = vadd.f32 %v378, %v466
  %468 = vmatmul.bf16.gmra.mxu0 %v188
  %v469 = vpop.f32.mrf.mxu0
  %v470 = vadd.f32 %v381, %v469
  %v471 = vpop.f32.mrf.mxu0
  %v472 = vadd.f32 %v383, %v471
  %473 = vmatmul.bf16.gmra.mxu0 %v190
  %v474 = vpop.f32.mrf.mxu0
  %v475 = vadd.f32 %v386, %v474
  %v476 = vpop.f32.mrf.mxu0
  %v477 = vadd.f32 %v388, %v476
  %478 = vmatmul.bf16.gmra.mxu0 %v192
  %v479 = vpop.f32.mrf.mxu0
  %v480 = vadd.f32 %v391, %v479
  %v481 = vpop.f32.mrf.mxu0
  %v482 = vadd.f32 %v393, %v481
  %483 = vmatmul.bf16.gmra.mxu0 %v194
  %v484 = vpop.f32.mrf.mxu0
  %v485 = vadd.f32 %v396, %v484
  %v486 = vpop.f32.mrf.mxu0
  %v487 = vadd.f32 %v398, %v486
  %488 = vmatmul.bf16.gmra.mxu0 %v196
  %v489 = vpop.f32.mrf.mxu0
  %v490 = vadd.f32 %v401, %v489
  %v491 = vpop.f32.mrf.mxu0
  %v492 = vadd.f32 %v403, %v491
  %493 = vmatmul.bf16.gmra.mxu0 %v198
  %v494 = vpop.f32.mrf.mxu0
  %v495 = vadd.f32 %v406, %v494
  %v496 = vpop.f32.mrf.mxu0
  %v497 = vadd.f32 %v408, %v496
  %498 = vmatmul.bf16.gmra.mxu0 %v200
  %v499 = vpop.f32.mrf.mxu0
  %v500 = vadd.f32 %v411, %v499
  %v501 = vpop.f32.mrf.mxu0
  %v502 = vadd.f32 %v413, %v501
  %503 = vmatmul.bf16.gmra.mxu0 %v202
  %v504 = vpop.f32.mrf.mxu0
  %v505 = vadd.f32 %v416, %v504
  %v506 = vpop.f32.mrf.mxu0
  %v507 = vadd.f32 %v418, %v506
  %508 = vdwg.mxu0
  %v509 = vpack.c.bf16 %v430, %v430
  %v510 = vpack.c.bf16 %v432, %v432
  %v511 = vpack.c.bf16 %v435, %v435
  %v512 = vpack.c.bf16 %v437, %v437
  %v513 = vpack.c.bf16 %v440, %v440
  %v514 = vpack.c.bf16 %v442, %v442
  %v515 = vpack.c.bf16 %v445, %v445
  %v516 = vpack.c.bf16 %v447, %v447
  %v517 = vpack.c.bf16 %v450, %v450
  %v518 = vpack.c.bf16 %v452, %v452
  %v519 = vpack.c.bf16 %v455, %v455
  %v520 = vpack.c.bf16 %v457, %v457
  %v521 = vpack.c.bf16 %v460, %v460
  %v522 = vpack.c.bf16 %v462, %v462
  %v523 = vpack.c.bf16 %v465, %v465
  %v524 = vpack.c.bf16 %v467, %v467
  %v525 = vpack.c.bf16 %v470, %v470
  %v526 = vpack.c.bf16 %v472, %v472
  %v527 = vpack.c.bf16 %v475, %v475
  %v528 = vpack.c.bf16 %v477, %v477
  %v529 = vpack.c.bf16 %v480, %v480
  %v530 = vpack.c.bf16 %v482, %v482
  %v531 = vpack.c.bf16 %v485, %v485
  %v532 = vpack.c.bf16 %v487, %v487
  %v533 = vpack.c.bf16 %v490, %v490
  %v534 = vpack.c.bf16 %v492, %v492
  %v535 = vpack.c.bf16 %v495, %v495
  %v536 = vpack.c.bf16 %v497, %v497
  %v537 = vpack.c.bf16 %v500, %v500
  %v538 = vpack.c.bf16 %v502, %v502
  %v539 = vpack.c.bf16 %v505, %v505
  %v540 = vpack.c.bf16 %v507, %v507
  %541 = vst [vmem:[%s2] sm:$0xf] %v509
  %542 = vst [vmem:[%s2 + $0x4] sm:$0xf] %v510
  %543 = vst [vmem:[%s2 + $0x8] sm:$0xf] %v511
  %544 = vst [vmem:[%s2 + $0xc] sm:$0xf] %v512
  %545 = vst [vmem:[%s2 + $0x10] sm:$0xf] %v513
  %546 = vst [vmem:[%s2 + $0x14] sm:$0xf] %v514
  %547 = vst [vmem:[%s2 + $0x18] sm:$0xf] %v515
  %548 = vst [vmem:[%s2 + $0x1c] sm:$0xf] %v516
  %549 = vst [vmem:[%s2 + $0x20] sm:$0xf] %v517
  %550 = vst [vmem:[%s2 + $0x24] sm:$0xf] %v518
  %551 = vst [vmem:[%s2 + $0x28] sm:$0xf] %v519
  %552 = vst [vmem:[%s2 + $0x2c] sm:$0xf] %v520
  %553 = vst [vmem:[%s2 + $0x30] sm:$0xf] %v521
  %554 = vst [vmem:[%s2 + $0x34] sm:$0xf] %v522
  %555 = vst [vmem:[%s2 + $0x38] sm:$0xf] %v523
  %556 = vst [vmem:[%s2 + $0x3c] sm:$0xf] %v524
  %557 = vst [vmem:[%s2 + $0x40] sm:$0xf] %v525
  %558 = vst [vmem:[%s2 + $0x44] sm:$0xf] %v526
  %559 = vst [vmem:[%s2 + $0x48] sm:$0xf] %v527
  %560 = vst [vmem:[%s2 + $0x4c] sm:$0xf] %v528
  %561 = vst [vmem:[%s2 + $0x50] sm:$0xf] %v529
  %562 = vst [vmem:[%s2 + $0x54] sm:$0xf] %v530
  %563 = vst [vmem:[%s2 + $0x58] sm:$0xf] %v531
  %564 = vst [vmem:[%s2 + $0x5c] sm:$0xf] %v532
  %565 = vst [vmem:[%s2 + $0x60] sm:$0xf] %v533
  %566 = vst [vmem:[%s2 + $0x64] sm:$0xf] %v534
  %567 = vst [vmem:[%s2 + $0x68] sm:$0xf] %v535
  %568 = vst [vmem:[%s2 + $0x6c] sm:$0xf] %v536
  %569 = vst [vmem:[%s2 + $0x70] sm:$0xf] %v537
  %570 = vst [vmem:[%s2 + $0x74] sm:$0xf] %v538
  %571 = vst [vmem:[%s2 + $0x78] sm:$0xf] %v539
  %572 = vst [vmem:[%s2 + $0x7c] sm:$0xf] %v540
  // Predicated region
  $region10: #{graphsage_forward.5} parent=0 // pred_check
    _
  $region11: #{graphsage_forward.5} parent=0 // pred_check_branch
    %574 = sbr.rel (0) target = $region13
  $region12: #{graphsage_forward.5} parent=0 // pred_region
    _
  $region13: #{graphsage_forward.5} parent=0 // pred_fallthru
    _
  // Predicated region
  $region14: #{graphsage_forward.5} parent=0 // pred_check
    _
  $region15: #{graphsage_forward.5} parent=0 // pred_check_branch
    %576 = sbr.rel (0) target = $region17
  $region16: #{graphsage_forward.5} parent=0 // pred_region
    _
  $region17: #{graphsage_forward.5} parent=0 // pred_fallthru
    _

// kernel: graphsage_forward.4
$region0: #{graphsage_forward.4}
  #allocation0 [shape = 'u32[]', space=smem, size = 0x4, offset = 0x4, fixed_abs, tag = 'smem constant byte address 0x4 - core index']
  #allocation1 [shape = 'u32[72,128]{1,0:T(1,128)}', space=vmem, size = 0x9000, scoped, tag = 'internal scratch']
  #allocation2 [shape = 'f32[256,32]{1,0:T(8,128)}', space=vmem, size = 0x20000, scoped, tag = 'scratch operand']
  %s0 = inlined_call_operand.vmem [shape: s8[256,256], index: 0, kind: input, shape index: {}]
  %s1 = inlined_call_operand.vmem [shape: bf16[256,32], index: 1, kind: input, shape index: {}, may-alias: {1,3}]
  %s2 = inlined_call_operand.vmem [shape: f32[256,1], index: 2, kind: input, shape index: {}]
  %s3 = inlined_call_operand.vmem [shape: bf16[256,32], index: 3, kind: input, shape index: {}, may-alias: {1,3}]
  %s4 = inlined_call_operand.vmem [shape: bf16[32,256], index: 4, kind: input, shape index: {}]
  %s5 = inlined_call_operand.vmem [shape: bf16[32,256], index: 5, kind: input, shape index: {}]
  %s6 = inlined_call_operand.vmem [shape: f32[1,256], index: 6, kind: input, shape index: {}]
  %s7 = inlined_call_operand.vmem [shape: bf16[256,256], index: 7, kind: output, shape index: {}]
  %s8 = sld [smem:[#allocation0]]
  $region46: #{graphsage_forward.4} parent=0
    _
  %s10 = ssub.s32 1, %s8
  %s11 = scalar_select 0, %s10, %s8
  // Predicated region
  $region2: #{graphsage_forward.4} parent=0 // pred_check
    _
  $region3: #{graphsage_forward.4} parent=0 // pred_check_branch
    %13 = sbr.rel (0) target = $region5
  $region4: #{graphsage_forward.4} parent=0 // pred_region
    _
  $region5: #{graphsage_forward.4} parent=0 // pred_fallthru
    _
  // Predicated region
  $region6: #{graphsage_forward.4} parent=0 // pred_check
    _
  $region7: #{graphsage_forward.4} parent=0 // pred_check_branch
    %15 = sbr.rel (0) target = $region9
  $region8: #{graphsage_forward.4} parent=0 // pred_region
    _
  $region9: #{graphsage_forward.4} parent=0 // pred_fallthru
    _
  // Predicated region
  $region10: #{graphsage_forward.4} parent=0 // pred_check
    _
  $region11: #{graphsage_forward.4} parent=0 // pred_check_branch
    %17 = sbr.rel (0) target = $region13
  $region12: #{graphsage_forward.4} parent=0 // pred_region
    _
  $region13: #{graphsage_forward.4} parent=0 // pred_fallthru
    _
  // Predicated region
  $region14: #{graphsage_forward.4} parent=0 // pred_check
    _
  $region15: #{graphsage_forward.4} parent=0 // pred_check_branch
    %19 = sbr.rel (0) target = $region17
  $region16: #{graphsage_forward.4} parent=0 // pred_region
    _
  $region17: #{graphsage_forward.4} parent=0 // pred_fallthru
    _
  // Predicated region
  $region18: #{graphsage_forward.4} parent=0 // pred_check
    _
  $region19: #{graphsage_forward.4} parent=0 // pred_check_branch
    %21 = sbr.rel (0) target = $region21
  $region20: #{graphsage_forward.4} parent=0 // pred_region
    _
  $region21: #{graphsage_forward.4} parent=0 // pred_fallthru
    _
  // Predicated region
  $region22: #{graphsage_forward.4} parent=0 // pred_check
    _
  $region23: #{graphsage_forward.4} parent=0 // pred_check_branch
    %23 = sbr.rel (0) target = $region25
  $region24: #{graphsage_forward.4} parent=0 // pred_region
    _
  $region25: #{graphsage_forward.4} parent=0 // pred_fallthru
    _
  // Predicated region
  $region26: #{graphsage_forward.4} parent=0 // pred_check
    _
  $region27: #{graphsage_forward.4} parent=0 // pred_check_branch
    %25 = sbr.rel (0) target = $region29
  $region28: #{graphsage_forward.4} parent=0 // pred_region
    _
  $region29: #{graphsage_forward.4} parent=0 // pred_fallthru
    _
  %p27 = scmp.eq.s32.totalorder 0, 0
  // Predicated region
  $region30: #{graphsage_forward.4} parent=0 // pred_check
    %p28 = pneg %p27
  $region31: #{graphsage_forward.4} parent=0 // pred_check_branch
    %30 = sbr.rel (%p28) target = $region33
  $region32: #{graphsage_forward.4} parent=0 // pred_region
    %vm31 = vcmask 261120
    %32 = vst.msk [vmem:[#allocation2] sm:$0xff] %vm31, 0.0
    %33 = vst.msk [vmem:[#allocation2 + $0x8] sm:$0xff] %vm31, 0.0
    %34 = vst.msk [vmem:[#allocation2 + $0x10] sm:$0xff] %vm31, 0.0
    %35 = vst.msk [vmem:[#allocation2 + $0x18] sm:$0xff] %vm31, 0.0
    %36 = vst.msk [vmem:[#allocation2 + $0x20] sm:$0xff] %vm31, 0.0
    %37 = vst.msk [vmem:[#allocation2 + $0x28] sm:$0xff] %vm31, 0.0
    %38 = vst.msk [vmem:[#allocation2 + $0x30] sm:$0xff] %vm31, 0.0
    %39 = vst.msk [vmem:[#allocation2 + $0x38] sm:$0xff] %vm31, 0.0
    %40 = vst.msk [vmem:[#allocation2 + $0x40] sm:$0xff] %vm31, 0.0
    %41 = vst.msk [vmem:[#allocation2 + $0x48] sm:$0xff] %vm31, 0.0
    %42 = vst.msk [vmem:[#allocation2 + $0x50] sm:$0xff] %vm31, 0.0
    %43 = vst.msk [vmem:[#allocation2 + $0x58] sm:$0xff] %vm31, 0.0
    %44 = vst.msk [vmem:[#allocation2 + $0x60] sm:$0xff] %vm31, 0.0
    %45 = vst.msk [vmem:[#allocation2 + $0x68] sm:$0xff] %vm31, 0.0
    %46 = vst.msk [vmem:[#allocation2 + $0x70] sm:$0xff] %vm31, 0.0
    %47 = vst.msk [vmem:[#allocation2 + $0x78] sm:$0xff] %vm31, 0.0
    %48 = vst.msk [vmem:[#allocation2 + $0x80] sm:$0xff] %vm31, 0.0
    %49 = vst.msk [vmem:[#allocation2 + $0x88] sm:$0xff] %vm31, 0.0
    %50 = vst.msk [vmem:[#allocation2 + $0x90] sm:$0xff] %vm31, 0.0
    %51 = vst.msk [vmem:[#allocation2 + $0x98] sm:$0xff] %vm31, 0.0
    %52 = vst.msk [vmem:[#allocation2 + $0xa0] sm:$0xff] %vm31, 0.0
    %53 = vst.msk [vmem:[#allocation2 + $0xa8] sm:$0xff] %vm31, 0.0
    %54 = vst.msk [vmem:[#allocation2 + $0xb0] sm:$0xff] %vm31, 0.0
    %55 = vst.msk [vmem:[#allocation2 + $0xb8] sm:$0xff] %vm31, 0.0
    %56 = vst.msk [vmem:[#allocation2 + $0xc0] sm:$0xff] %vm31, 0.0
    %57 = vst.msk [vmem:[#allocation2 + $0xc8] sm:$0xff] %vm31, 0.0
    %58 = vst.msk [vmem:[#allocation2 + $0xd0] sm:$0xff] %vm31, 0.0
    %59 = vst.msk [vmem:[#allocation2 + $0xd8] sm:$0xff] %vm31, 0.0
    %60 = vst.msk [vmem:[#allocation2 + $0xe0] sm:$0xff] %vm31, 0.0
    %61 = vst.msk [vmem:[#allocation2 + $0xe8] sm:$0xff] %vm31, 0.0
    %62 = vst.msk [vmem:[#allocation2 + $0xf0] sm:$0xff] %vm31, 0.0
    %63 = vst.msk [vmem:[#allocation2 + $0xf8] sm:$0xff] %vm31, 0.0
  $region33: #{graphsage_forward.4} parent=0 // pred_fallthru
    _
  %v64 = vld [vmem:[#allocation2] sm:$0xff]
  %v65 = vld [vmem:[#allocation2 + $0x8] sm:$0xff]
  %v66 = vld [vmem:[#allocation2 + $0x10] sm:$0xff]
  %v67 = vld [vmem:[#allocation2 + $0x18] sm:$0xff]
  %v68 = vld [vmem:[#allocation2 + $0x20] sm:$0xff]
  %v69 = vld [vmem:[#allocation2 + $0x28] sm:$0xff]
  %v70 = vld [vmem:[#allocation2 + $0x30] sm:$0xff]
  %v71 = vld [vmem:[#allocation2 + $0x38] sm:$0xff]
  %v72 = vld [vmem:[#allocation2 + $0x40] sm:$0xff]
  %v73 = vld [vmem:[#allocation2 + $0x48] sm:$0xff]
  %v74 = vld [vmem:[#allocation2 + $0x50] sm:$0xff]
  %v75 = vld [vmem:[#allocation2 + $0x58] sm:$0xff]
  %v76 = vld [vmem:[#allocation2 + $0x60] sm:$0xff]
  %v77 = vld [vmem:[#allocation2 + $0x68] sm:$0xff]
  %v78 = vld [vmem:[#allocation2 + $0x70] sm:$0xff]
  %v79 = vld [vmem:[#allocation2 + $0x78] sm:$0xff]
  %v80 = vld [vmem:[#allocation2 + $0x80] sm:$0xff]
  %v81 = vld [vmem:[#allocation2 + $0x88] sm:$0xff]
  %v82 = vld [vmem:[#allocation2 + $0x90] sm:$0xff]
  %v83 = vld [vmem:[#allocation2 + $0x98] sm:$0xff]
  %v84 = vld [vmem:[#allocation2 + $0xa0] sm:$0xff]
  %v85 = vld [vmem:[#allocation2 + $0xa8] sm:$0xff]
  %v86 = vld [vmem:[#allocation2 + $0xb0] sm:$0xff]
  %v87 = vld [vmem:[#allocation2 + $0xb8] sm:$0xff]
  %v88 = vld [vmem:[#allocation2 + $0xc0] sm:$0xff]
  %v89 = vld [vmem:[#allocation2 + $0xc8] sm:$0xff]
  %v90 = vld [vmem:[#allocation2 + $0xd0] sm:$0xff]
  %v91 = vld [vmem:[#allocation2 + $0xd8] sm:$0xff]
  %v92 = vld [vmem:[#allocation2 + $0xe0] sm:$0xff]
  %v93 = vld [vmem:[#allocation2 + $0xe8] sm:$0xff]
  %v94 = vld [vmem:[#allocation2 + $0xf0] sm:$0xff]
  %v95 = vld [vmem:[#allocation2 + $0xf8] sm:$0xff]
  %v96 = vld [vmem:[%s0] sm:$0xf]
  %v97 = vld [vmem:[%s0 + $0x4] sm:$0xf]
  %v98 = vld [vmem:[%s0 + $0x8] sm:$0xf]
  %v99 = vld [vmem:[%s0 + $0xc] sm:$0xf]
  %v100 = vld [vmem:[%s0 + $0x10] sm:$0xf]
  %v101 = vld [vmem:[%s0 + $0x14] sm:$0xf]
  %v102 = vld [vmem:[%s0 + $0x18] sm:$0xf]
  %v103 = vld [vmem:[%s0 + $0x1c] sm:$0xf]
  %v104 = vld [vmem:[%s0 + $0x20] sm:$0xf]
  %v105 = vld [vmem:[%s0 + $0x24] sm:$0xf]
  %v106 = vld [vmem:[%s0 + $0x28] sm:$0xf]
  %v107 = vld [vmem:[%s0 + $0x2c] sm:$0xf]
  %v108 = vld [vmem:[%s0 + $0x30] sm:$0xf]
  %v109 = vld [vmem:[%s0 + $0x34] sm:$0xf]
  %v110 = vld [vmem:[%s0 + $0x38] sm:$0xf]
  %v111 = vld [vmem:[%s0 + $0x3c] sm:$0xf]
  %v112 = vld [vmem:[%s0 + $0x40] sm:$0xf]
  %v113 = vld [vmem:[%s0 + $0x44] sm:$0xf]
  %v114 = vld [vmem:[%s0 + $0x48] sm:$0xf]
  %v115 = vld [vmem:[%s0 + $0x4c] sm:$0xf]
  %v116 = vld [vmem:[%s0 + $0x50] sm:$0xf]
  %v117 = vld [vmem:[%s0 + $0x54] sm:$0xf]
  %v118 = vld [vmem:[%s0 + $0x58] sm:$0xf]
  %v119 = vld [vmem:[%s0 + $0x5c] sm:$0xf]
  %v120 = vld [vmem:[%s0 + $0x60] sm:$0xf]
  %v121 = vld [vmem:[%s0 + $0x64] sm:$0xf]
  %v122 = vld [vmem:[%s0 + $0x68] sm:$0xf]
  %v123 = vld [vmem:[%s0 + $0x6c] sm:$0xf]
  %v124 = vld [vmem:[%s0 + $0x70] sm:$0xf]
  %v125 = vld [vmem:[%s0 + $0x74] sm:$0xf]
  %v126 = vld [vmem:[%s0 + $0x78] sm:$0xf]
  %v127 = vld [vmem:[%s0 + $0x7c] sm:$0xf]
  %v128 = vunpack.c.0.s8 %v96
  %v129 = vunpack.c.1.s8 %v96
  %v130 = vunpack.c.0.s8 %v97
  %v131 = vunpack.c.1.s8 %v97
  %v132 = vunpack.c.0.s8 %v98
  %v133 = vunpack.c.1.s8 %v98
  %v134 = vunpack.c.0.s8 %v99
  %v135 = vunpack.c.1.s8 %v99
  %v136 = vunpack.c.0.s8 %v100
  %v137 = vunpack.c.1.s8 %v100
  %v138 = vunpack.c.0.s8 %v101
  %v139 = vunpack.c.1.s8 %v101
  %v140 = vunpack.c.0.s8 %v102
  %v141 = vunpack.c.1.s8 %v102
  %v142 = vunpack.c.0.s8 %v103
  %v143 = vunpack.c.1.s8 %v103
  %v144 = vunpack.c.0.s8 %v104
  %v145 = vunpack.c.1.s8 %v104
  %v146 = vunpack.c.0.s8 %v105
  %v147 = vunpack.c.1.s8 %v105
  %v148 = vunpack.c.0.s8 %v106
  %v149 = vunpack.c.1.s8 %v106
  %v150 = vunpack.c.0.s8 %v107
  %v151 = vunpack.c.1.s8 %v107
  %v152 = vunpack.c.0.s8 %v108
  %v153 = vunpack.c.1.s8 %v108
  %v154 = vunpack.c.0.s8 %v109
  %v155 = vunpack.c.1.s8 %v109
  %v156 = vunpack.c.0.s8 %v110
  %v157 = vunpack.c.1.s8 %v110
  %v158 = vunpack.c.0.s8 %v111
  %v159 = vunpack.c.1.s8 %v111
  %v160 = vunpack.c.0.s8 %v112
  %v161 = vunpack.c.1.s8 %v112
  %v162 = vunpack.c.0.s8 %v113
  %v163 = vunpack.c.1.s8 %v113
  %v164 = vunpack.c.0.s8 %v114
  %v165 = vunpack.c.1.s8 %v114
  %v166 = vunpack.c.0.s8 %v115
  %v167 = vunpack.c.1.s8 %v115
  %v168 = vunpack.c.0.s8 %v116
  %v169 = vunpack.c.1.s8 %v116
  %v170 = vunpack.c.0.s8 %v117
  %v171 = vunpack.c.1.s8 %v117
  %v172 = vunpack.c.0.s8 %v118
  %v173 = vunpack.c.1.s8 %v118
  %v174 = vunpack.c.0.s8 %v119
  %v175 = vunpack.c.1.s8 %v119
  %v176 = vunpack.c.0.s8 %v120
  %v177 = vunpack.c.1.s8 %v120
  %v178 = vunpack.c.0.s8 %v121
  %v179 = vunpack.c.1.s8 %v121
  %v180 = vunpack.c.0.s8 %v122
  %v181 = vunpack.c.1.s8 %v122
  %v182 = vunpack.c.0.s8 %v123
  %v183 = vunpack.c.1.s8 %v123
  %v184 = vunpack.c.0.s8 %v124
  %v185 = vunpack.c.1.s8 %v124
  %v186 = vunpack.c.0.s8 %v125
  %v187 = vunpack.c.1.s8 %v125
  %v188 = vunpack.c.0.s8 %v126
  %v189 = vunpack.c.1.s8 %v126
  %v190 = vunpack.c.0.s8 %v127
  %v191 = vunpack.c.1.s8 %v127
  %v192 = vcvt.s32.f32 %v128
  %v193 = vcvt.s32.f32 %v129
  %v194 = vcvt.s32.f32 %v130
  %v195 = vcvt.s32.f32 %v131
  %v196 = vcvt.s32.f32 %v132
  %v197 = vcvt.s32.f32 %v133
  %v198 = vcvt.s32.f32 %v134
  %v199 = vcvt.s32.f32 %v135
  %v200 = vcvt.s32.f32 %v136
  %v201 = vcvt.s32.f32 %v137
  %v202 = vcvt.s32.f32 %v138
  %v203 = vcvt.s32.f32 %v139
  %v204 = vcvt.s32.f32 %v140
  %v205 = vcvt.s32.f32 %v141
  %v206 = vcvt.s32.f32 %v142
  %v207 = vcvt.s32.f32 %v143
  %v208 = vcvt.s32.f32 %v144
  %v209 = vcvt.s32.f32 %v145
  %v210 = vcvt.s32.f32 %v146
  %v211 = vcvt.s32.f32 %v147
  %v212 = vcvt.s32.f32 %v148
  %v213 = vcvt.s32.f32 %v149
  %v214 = vcvt.s32.f32 %v150
  %v215 = vcvt.s32.f32 %v151
  %v216 = vcvt.s32.f32 %v152
  %v217 = vcvt.s32.f32 %v153
  %v218 = vcvt.s32.f32 %v154
  %v219 = vcvt.s32.f32 %v155
  %v220 = vcvt.s32.f32 %v156
  %v221 = vcvt.s32.f32 %v157
  %v222 = vcvt.s32.f32 %v158
  %v223 = vcvt.s32.f32 %v159
  %v224 = vcvt.s32.f32 %v160
  %v225 = vcvt.s32.f32 %v161
  %v226 = vcvt.s32.f32 %v162
  %v227 = vcvt.s32.f32 %v163
  %v228 = vcvt.s32.f32 %v164
  %v229 = vcvt.s32.f32 %v165
  %v230 = vcvt.s32.f32 %v166
  %v231 = vcvt.s32.f32 %v167
  %v232 = vcvt.s32.f32 %v168
  %v233 = vcvt.s32.f32 %v169
  %v234 = vcvt.s32.f32 %v170
  %v235 = vcvt.s32.f32 %v171
  %v236 = vcvt.s32.f32 %v172
  %v237 = vcvt.s32.f32 %v173
  %v238 = vcvt.s32.f32 %v174
  %v239 = vcvt.s32.f32 %v175
  %v240 = vcvt.s32.f32 %v176
  %v241 = vcvt.s32.f32 %v177
  %v242 = vcvt.s32.f32 %v178
  %v243 = vcvt.s32.f32 %v179
  %v244 = vcvt.s32.f32 %v180
  %v245 = vcvt.s32.f32 %v181
  %v246 = vcvt.s32.f32 %v182
  %v247 = vcvt.s32.f32 %v183
  %v248 = vcvt.s32.f32 %v184
  %v249 = vcvt.s32.f32 %v185
  %v250 = vcvt.s32.f32 %v186
  %v251 = vcvt.s32.f32 %v187
  %v252 = vcvt.s32.f32 %v188
  %v253 = vcvt.s32.f32 %v189
  %v254 = vcvt.s32.f32 %v190
  %v255 = vcvt.s32.f32 %v191
  %v256 = vpack.c.bf16 %v194, %v192
  %v257 = vpack.c.bf16 %v195, %v193
  %v258 = vpack.c.bf16 %v198, %v196
  %v259 = vpack.c.bf16 %v199, %v197
  %v260 = vpack.c.bf16 %v202, %v200
  %v261 = vpack.c.bf16 %v203, %v201
  %v262 = vpack.c.bf16 %v206, %v204
  %v263 = vpack.c.bf16 %v207, %v205
  %v264 = vpack.c.bf16 %v210, %v208
  %v265 = vpack.c.bf16 %v211, %v209
  %v266 = vpack.c.bf16 %v214, %v212
  %v267 = vpack.c.bf16 %v215, %v213
  %v268 = vpack.c.bf16 %v218, %v216
  %v269 = vpack.c.bf16 %v219, %v217
  %v270 = vpack.c.bf16 %v222, %v220
  %v271 = vpack.c.bf16 %v223, %v221
  %v272 = vpack.c.bf16 %v226, %v224
  %v273 = vpack.c.bf16 %v227, %v225
  %v274 = vpack.c.bf16 %v230, %v228
  %v275 = vpack.c.bf16 %v231, %v229
  %v276 = vpack.c.bf16 %v234, %v232
  %v277 = vpack.c.bf16 %v235, %v233
  %v278 = vpack.c.bf16 %v238, %v236
  %v279 = vpack.c.bf16 %v239, %v237
  %v280 = vpack.c.bf16 %v242, %v240
  %v281 = vpack.c.bf16 %v243, %v241
  %v282 = vpack.c.bf16 %v246, %v244
  %v283 = vpack.c.bf16 %v247, %v245
  %v284 = vpack.c.bf16 %v250, %v248
  %v285 = vpack.c.bf16 %v251, %v249
  %v286 = vpack.c.bf16 %v254, %v252
  %v287 = vpack.c.bf16 %v255, %v253
  %v288 = vld [vmem:[%s1] sm:$0xf]
  %v289 = vld [vmem:[%s1 + $0x4] sm:$0xf]
  %v290 = vld [vmem:[%s1 + $0x8] sm:$0xf]
  %v291 = vld [vmem:[%s1 + $0xc] sm:$0xf]
  %v292 = vld [vmem:[%s1 + $0x10] sm:$0xf]
  %v293 = vld [vmem:[%s1 + $0x14] sm:$0xf]
  %v294 = vld [vmem:[%s1 + $0x18] sm:$0xf]
  %v295 = vld [vmem:[%s1 + $0x1c] sm:$0xf]
  %v296 = vld [vmem:[%s1 + $0x20] sm:$0xf]
  %v297 = vld [vmem:[%s1 + $0x24] sm:$0xf]
  %v298 = vld [vmem:[%s1 + $0x28] sm:$0xf]
  %v299 = vld [vmem:[%s1 + $0x2c] sm:$0xf]
  %v300 = vld [vmem:[%s1 + $0x30] sm:$0xf]
  %v301 = vld [vmem:[%s1 + $0x34] sm:$0xf]
  %v302 = vld [vmem:[%s1 + $0x38] sm:$0xf]
  %v303 = vld [vmem:[%s1 + $0x3c] sm:$0xf]
  %v304 = vld [vmem:[%s1 + $0x40] sm:$0xf]
  %v305 = vld [vmem:[%s1 + $0x44] sm:$0xf]
  %v306 = vld [vmem:[%s1 + $0x48] sm:$0xf]
  %v307 = vld [vmem:[%s1 + $0x4c] sm:$0xf]
  %v308 = vld [vmem:[%s1 + $0x50] sm:$0xf]
  %v309 = vld [vmem:[%s1 + $0x54] sm:$0xf]
  %v310 = vld [vmem:[%s1 + $0x58] sm:$0xf]
  %v311 = vld [vmem:[%s1 + $0x5c] sm:$0xf]
  %v312 = vld [vmem:[%s1 + $0x60] sm:$0xf]
  %v313 = vld [vmem:[%s1 + $0x64] sm:$0xf]
  %v314 = vld [vmem:[%s1 + $0x68] sm:$0xf]
  %v315 = vld [vmem:[%s1 + $0x6c] sm:$0xf]
  %v316 = vld [vmem:[%s1 + $0x70] sm:$0xf]
  %v317 = vld [vmem:[%s1 + $0x74] sm:$0xf]
  %v318 = vld [vmem:[%s1 + $0x78] sm:$0xf]
  %v319 = vld [vmem:[%s1 + $0x7c] sm:$0xf]
  %v352 = vunpack.c.l.b16 %v288
  %v353 = vunpack.c.l.b16 %v289
  %v354 = vunpack.c.l.b16 %v290
  %v355 = vunpack.c.l.b16 %v291
  %v356 = vunpack.c.l.b16 %v292
  %v357 = vunpack.c.l.b16 %v293
  %v358 = vunpack.c.l.b16 %v294
  %v359 = vunpack.c.l.b16 %v295
  %v360 = vunpack.c.l.b16 %v296
  %v361 = vunpack.c.l.b16 %v297
  %v362 = vunpack.c.l.b16 %v298
  %v363 = vunpack.c.l.b16 %v299
  %v364 = vunpack.c.l.b16 %v300
  %v365 = vunpack.c.l.b16 %v301
  %v366 = vunpack.c.l.b16 %v302
  %v367 = vunpack.c.l.b16 %v303
  %v368 = vunpack.c.l.b16 %v304
  %v369 = vunpack.c.l.b16 %v305
  %v370 = vunpack.c.l.b16 %v306
  %v371 = vunpack.c.l.b16 %v307
  %v372 = vunpack.c.l.b16 %v308
  %v373 = vunpack.c.l.b16 %v309
  %v374 = vunpack.c.l.b16 %v310
  %v375 = vunpack.c.l.b16 %v311
  %v376 = vunpack.c.l.b16 %v312
  %v377 = vunpack.c.l.b16 %v313
  %v378 = vunpack.c.l.b16 %v314
  %v379 = vunpack.c.l.b16 %v315
  %v380 = vunpack.c.l.b16 %v316
  %v381 = vunpack.c.l.b16 %v317
  %v382 = vunpack.c.l.b16 %v318
  %v383 = vunpack.c.l.b16 %v319
  %v384 = vpack.c.b16 %v353, %v352
  %v385 = vpack.c.b16 %v355, %v354
  %v386 = vpack.c.b16 %v357, %v356
  %v387 = vpack.c.b16 %v359, %v358
  %v388 = vpack.c.b16 %v361, %v360
  %v389 = vpack.c.b16 %v363, %v362
  %v390 = vpack.c.b16 %v365, %v364
  %v391 = vpack.c.b16 %v367, %v366
  %v392 = vpack.c.b16 %v369, %v368
  %v393 = vpack.c.b16 %v371, %v370
  %v394 = vpack.c.b16 %v373, %v372
  %v395 = vpack.c.b16 %v375, %v374
  %v396 = vpack.c.b16 %v377, %v376
  %v397 = vpack.c.b16 %v379, %v378
  %v398 = vpack.c.b16 %v381, %v380
  %v399 = vpack.c.b16 %v383, %v382
  %416 = vmatpush.bf16.msra.mxu0 %v391
  %417 = vmatpush.bf16.msra.mxu0 %v390
  %418 = vmatpush.bf16.msra.mxu0 %v389
  %419 = vmatpush.bf16.msra.mxu0 %v388
  %420 = vmatpush.bf16.msra.mxu0 %v387
  %421 = vmatpush.bf16.msra.mxu0 %v386
  %422 = vmatpush.bf16.msra.mxu0 %v385
  %423 = vmatpush.bf16.msra.mxu0 %v384
  %424 = vmatmul.bf16.gmra.mxu0 %v256
  %v425 = vpop.f32.mrf.mxu0
  %v426 = vadd.f32 0.0, %v425
  %v427 = vpop.f32.mrf.mxu0
  %v428 = vadd.f32 0.0, %v427
  %429 = vmatmul.bf16.gmra.mxu0 %v258
  %v430 = vpop.f32.mrf.mxu0
  %v431 = vadd.f32 0.0, %v430
  %v432 = vpop.f32.mrf.mxu0
  %v433 = vadd.f32 0.0, %v432
  %434 = vmatmul.bf16.gmra.mxu0 %v260
  %v435 = vpop.f32.mrf.mxu0
  %v436 = vadd.f32 0.0, %v435
  %v437 = vpop.f32.mrf.mxu0
  %v438 = vadd.f32 0.0, %v437
  %439 = vmatmul.bf16.gmra.mxu0 %v262
  %v440 = vpop.f32.mrf.mxu0
  %v441 = vadd.f32 0.0, %v440
  %v442 = vpop.f32.mrf.mxu0
  %v443 = vadd.f32 0.0, %v442
  %444 = vmatmul.bf16.gmra.mxu0 %v264
  %v445 = vpop.f32.mrf.mxu0
  %v446 = vadd.f32 0.0, %v445
  %v447 = vpop.f32.mrf.mxu0
  %v448 = vadd.f32 0.0, %v447
  %449 = vmatmul.bf16.gmra.mxu0 %v266
  %v450 = vpop.f32.mrf.mxu0
  %v451 = vadd.f32 0.0, %v450
  %v452 = vpop.f32.mrf.mxu0
  %v453 = vadd.f32 0.0, %v452
  %454 = vmatmul.bf16.gmra.mxu0 %v268
  %v455 = vpop.f32.mrf.mxu0
  %v456 = vadd.f32 0.0, %v455
  %v457 = vpop.f32.mrf.mxu0
  %v458 = vadd.f32 0.0, %v457
  %459 = vmatmul.bf16.gmra.mxu0 %v270
  %v460 = vpop.f32.mrf.mxu0
  %v461 = vadd.f32 0.0, %v460
  %v462 = vpop.f32.mrf.mxu0
  %v463 = vadd.f32 0.0, %v462
  %464 = vmatmul.bf16.gmra.mxu0 %v272
  %v465 = vpop.f32.mrf.mxu0
  %v466 = vadd.f32 0.0, %v465
  %v467 = vpop.f32.mrf.mxu0
  %v468 = vadd.f32 0.0, %v467
  %469 = vmatmul.bf16.gmra.mxu0 %v274
  %v470 = vpop.f32.mrf.mxu0
  %v471 = vadd.f32 0.0, %v470
  %v472 = vpop.f32.mrf.mxu0
  %v473 = vadd.f32 0.0, %v472
  %474 = vmatmul.bf16.gmra.mxu0 %v276
  %v475 = vpop.f32.mrf.mxu0
  %v476 = vadd.f32 0.0, %v475
  %v477 = vpop.f32.mrf.mxu0
  %v478 = vadd.f32 0.0, %v477
  %479 = vmatmul.bf16.gmra.mxu0 %v278
  %v480 = vpop.f32.mrf.mxu0
  %v481 = vadd.f32 0.0, %v480
  %v482 = vpop.f32.mrf.mxu0
  %v483 = vadd.f32 0.0, %v482
  %484 = vmatmul.bf16.gmra.mxu0 %v280
  %v485 = vpop.f32.mrf.mxu0
  %v486 = vadd.f32 0.0, %v485
  %v487 = vpop.f32.mrf.mxu0
  %v488 = vadd.f32 0.0, %v487
  %489 = vmatmul.bf16.gmra.mxu0 %v282
  %v490 = vpop.f32.mrf.mxu0
  %v491 = vadd.f32 0.0, %v490
  %v492 = vpop.f32.mrf.mxu0
  %v493 = vadd.f32 0.0, %v492
  %494 = vmatmul.bf16.gmra.mxu0 %v284
  %v495 = vpop.f32.mrf.mxu0
  %v496 = vadd.f32 0.0, %v495
  %v497 = vpop.f32.mrf.mxu0
  %v498 = vadd.f32 0.0, %v497
  %499 = vmatmul.bf16.gmra.mxu0 %v286
  %v500 = vpop.f32.mrf.mxu0
  %v501 = vadd.f32 0.0, %v500
  %v502 = vpop.f32.mrf.mxu0
  %v503 = vadd.f32 0.0, %v502
  %504 = vdwg.mxu0
  %505 = vmatpush.bf16.msra.mxu0 %v399
  %506 = vmatpush.bf16.msra.mxu0 %v398
  %507 = vmatpush.bf16.msra.mxu0 %v397
  %508 = vmatpush.bf16.msra.mxu0 %v396
  %509 = vmatpush.bf16.msra.mxu0 %v395
  %510 = vmatpush.bf16.msra.mxu0 %v394
  %511 = vmatpush.bf16.msra.mxu0 %v393
  %512 = vmatpush.bf16.msra.mxu0 %v392
  %513 = vmatmul.bf16.gmra.mxu0 %v257
  %v514 = vpop.f32.mrf.mxu0
  %v515 = vadd.f32 %v426, %v514
  %v516 = vpop.f32.mrf.mxu0
  %v517 = vadd.f32 %v428, %v516
  %518 = vmatmul.bf16.gmra.mxu0 %v259
  %v519 = vpop.f32.mrf.mxu0
  %v520 = vadd.f32 %v431, %v519
  %v521 = vpop.f32.mrf.mxu0
  %v522 = vadd.f32 %v433, %v521
  %523 = vmatmul.bf16.gmra.mxu0 %v261
  %v524 = vpop.f32.mrf.mxu0
  %v525 = vadd.f32 %v436, %v524
  %v526 = vpop.f32.mrf.mxu0
  %v527 = vadd.f32 %v438, %v526
  %528 = vmatmul.bf16.gmra.mxu0 %v263
  %v529 = vpop.f32.mrf.mxu0
  %v530 = vadd.f32 %v441, %v529
  %v531 = vpop.f32.mrf.mxu0
  %v532 = vadd.f32 %v443, %v531
  %533 = vmatmul.bf16.gmra.mxu0 %v265
  %v534 = vpop.f32.mrf.mxu0
  %v535 = vadd.f32 %v446, %v534
  %v536 = vpop.f32.mrf.mxu0
  %v537 = vadd.f32 %v448, %v536
  %538 = vmatmul.bf16.gmra.mxu0 %v267
  %v539 = vpop.f32.mrf.mxu0
  %v540 = vadd.f32 %v451, %v539
  %v541 = vpop.f32.mrf.mxu0
  %v542 = vadd.f32 %v453, %v541
  %543 = vmatmul.bf16.gmra.mxu0 %v269
  %v544 = vpop.f32.mrf.mxu0
  %v545 = vadd.f32 %v456, %v544
  %v546 = vpop.f32.mrf.mxu0
  %v547 = vadd.f32 %v458, %v546
  %548 = vmatmul.bf16.gmra.mxu0 %v271
  %v549 = vpop.f32.mrf.mxu0
  %v550 = vadd.f32 %v461, %v549
  %v551 = vpop.f32.mrf.mxu0
  %v552 = vadd.f32 %v463, %v551
  %553 = vmatmul.bf16.gmra.mxu0 %v273
  %v554 = vpop.f32.mrf.mxu0
  %v555 = vadd.f32 %v466, %v554
  %v556 = vpop.f32.mrf.mxu0
  %v557 = vadd.f32 %v468, %v556
  %558 = vmatmul.bf16.gmra.mxu0 %v275
  %v559 = vpop.f32.mrf.mxu0
  %v560 = vadd.f32 %v471, %v559
  %v561 = vpop.f32.mrf.mxu0
  %v562 = vadd.f32 %v473, %v561
  %563 = vmatmul.bf16.gmra.mxu0 %v277
  %v564 = vpop.f32.mrf.mxu0
  %v565 = vadd.f32 %v476, %v564
  %v566 = vpop.f32.mrf.mxu0
  %v567 = vadd.f32 %v478, %v566
  %568 = vmatmul.bf16.gmra.mxu0 %v279
  %v569 = vpop.f32.mrf.mxu0
  %v570 = vadd.f32 %v481, %v569
  %v571 = vpop.f32.mrf.mxu0
  %v572 = vadd.f32 %v483, %v571
  %573 = vmatmul.bf16.gmra.mxu0 %v281
  %v574 = vpop.f32.mrf.mxu0
  %v575 = vadd.f32 %v486, %v574
  %v576 = vpop.f32.mrf.mxu0
  %v577 = vadd.f32 %v488, %v576
  %578 = vmatmul.bf16.gmra.mxu0 %v283
  %v579 = vpop.f32.mrf.mxu0
  %v580 = vadd.f32 %v491, %v579
  %v581 = vpop.f32.mrf.mxu0
  %v582 = vadd.f32 %v493, %v581
  %583 = vmatmul.bf16.gmra.mxu0 %v285
  %v584 = vpop.f32.mrf.mxu0
  %v585 = vadd.f32 %v496, %v584
  %v586 = vpop.f32.mrf.mxu0
  %v587 = vadd.f32 %v498, %v586
  %588 = vmatmul.bf16.gmra.mxu0 %v287
  %v589 = vpop.f32.mrf.mxu0
  %v590 = vadd.f32 %v501, %v589
  %v591 = vpop.f32.mrf.mxu0
  %v592 = vadd.f32 %v503, %v591
  %593 = vdwg.mxu0
  %v594 = vadd.f32 %v64, %v515
  %v595 = vadd.f32 %v65, %v517
  %v596 = vadd.f32 %v66, %v520
  %v597 = vadd.f32 %v67, %v522
  %v598 = vadd.f32 %v68, %v525
  %v599 = vadd.f32 %v69, %v527
  %v600 = vadd.f32 %v70, %v530
  %v601 = vadd.f32 %v71, %v532
  %v602 = vadd.f32 %v72, %v535
  %v603 = vadd.f32 %v73, %v537
  %v604 = vadd.f32 %v74, %v540
  %v605 = vadd.f32 %v75, %v542
  %v606 = vadd.f32 %v76, %v545
  %v607 = vadd.f32 %v77, %v547
  %v608 = vadd.f32 %v78, %v550
  %v609 = vadd.f32 %v79, %v552
  %v610 = vadd.f32 %v80, %v555
  %v611 = vadd.f32 %v81, %v557
  %v612 = vadd.f32 %v82, %v560
  %v613 = vadd.f32 %v83, %v562
  %v614 = vadd.f32 %v84, %v565
  %v615 = vadd.f32 %v85, %v567
  %v616 = vadd.f32 %v86, %v570
  %v617 = vadd.f32 %v87, %v572
  %v618 = vadd.f32 %v88, %v575
  %v619 = vadd.f32 %v89, %v577
  %v620 = vadd.f32 %v90, %v580
  %v621 = vadd.f32 %v91, %v582
  %v622 = vadd.f32 %v92, %v585
  %v623 = vadd.f32 %v93, %v587
  %v624 = vadd.f32 %v94, %v590
  %v625 = vadd.f32 %v95, %v592
  %vm626 = vcmask 261120
  %627 = vst.msk [vmem:[#allocation2] sm:$0xff] %vm626, %v594
  %628 = vst.msk [vmem:[#allocation2 + $0x8] sm:$0xff] %vm626, %v595
  %629 = vst.msk [vmem:[#allocation2 + $0x10] sm:$0xff] %vm626, %v596
  %630 = vst.msk [vmem:[#allocation2 + $0x18] sm:$0xff] %vm626, %v597
  %631 = vst.msk [vmem:[#allocation2 + $0x20] sm:$0xff] %vm626, %v598
  %632 = vst.msk [vmem:[#allocation2 + $0x28] sm:$0xff] %vm626, %v599
  %633 = vst.msk [vmem:[#allocation2 + $0x30] sm:$0xff] %vm626, %v600
  %634 = vst.msk [vmem:[#allocation2 + $0x38] sm:$0xff] %vm626, %v601
  %635 = vst.msk [vmem:[#allocation2 + $0x40] sm:$0xff] %vm626, %v602
  %636 = vst.msk [vmem:[#allocation2 + $0x48] sm:$0xff] %vm626, %v603
  %637 = vst.msk [vmem:[#allocation2 + $0x50] sm:$0xff] %vm626, %v604
  %638 = vst.msk [vmem:[#allocation2 + $0x58] sm:$0xff] %vm626, %v605
  %639 = vst.msk [vmem:[#allocation2 + $0x60] sm:$0xff] %vm626, %v606
  %640 = vst.msk [vmem:[#allocation2 + $0x68] sm:$0xff] %vm626, %v607
  %641 = vst.msk [vmem:[#allocation2 + $0x70] sm:$0xff] %vm626, %v608
  %642 = vst.msk [vmem:[#allocation2 + $0x78] sm:$0xff] %vm626, %v609
  %643 = vst.msk [vmem:[#allocation2 + $0x80] sm:$0xff] %vm626, %v610
  %644 = vst.msk [vmem:[#allocation2 + $0x88] sm:$0xff] %vm626, %v611
  %645 = vst.msk [vmem:[#allocation2 + $0x90] sm:$0xff] %vm626, %v612
  %646 = vst.msk [vmem:[#allocation2 + $0x98] sm:$0xff] %vm626, %v613
  %647 = vst.msk [vmem:[#allocation2 + $0xa0] sm:$0xff] %vm626, %v614
  %648 = vst.msk [vmem:[#allocation2 + $0xa8] sm:$0xff] %vm626, %v615
  %649 = vst.msk [vmem:[#allocation2 + $0xb0] sm:$0xff] %vm626, %v616
  %650 = vst.msk [vmem:[#allocation2 + $0xb8] sm:$0xff] %vm626, %v617
  %651 = vst.msk [vmem:[#allocation2 + $0xc0] sm:$0xff] %vm626, %v618
  %652 = vst.msk [vmem:[#allocation2 + $0xc8] sm:$0xff] %vm626, %v619
  %653 = vst.msk [vmem:[#allocation2 + $0xd0] sm:$0xff] %vm626, %v620
  %654 = vst.msk [vmem:[#allocation2 + $0xd8] sm:$0xff] %vm626, %v621
  %655 = vst.msk [vmem:[#allocation2 + $0xe0] sm:$0xff] %vm626, %v622
  %656 = vst.msk [vmem:[#allocation2 + $0xe8] sm:$0xff] %vm626, %v623
  %657 = vst.msk [vmem:[#allocation2 + $0xf0] sm:$0xff] %vm626, %v624
  %658 = vst.msk [vmem:[#allocation2 + $0xf8] sm:$0xff] %vm626, %v625
  // Predicated region
  $region34: #{graphsage_forward.4} parent=0 // pred_check
    %p659 = pneg %p27
  $region35: #{graphsage_forward.4} parent=0 // pred_check_branch
    %661 = sbr.rel (%p659) target = $region37
  $region36: #{graphsage_forward.4} parent=0 // pred_region
    %v662 = vld [vmem:[#allocation2] sm:$0xff]
    %v663 = vld [vmem:[#allocation2 + $0x8] sm:$0xff]
    %v664 = vld [vmem:[#allocation2 + $0x10] sm:$0xff]
    %v665 = vld [vmem:[#allocation2 + $0x18] sm:$0xff]
    %v666 = vld [vmem:[#allocation2 + $0x20] sm:$0xff]
    %v667 = vld [vmem:[#allocation2 + $0x28] sm:$0xff]
    %v668 = vld [vmem:[#allocation2 + $0x30] sm:$0xff]
    %v669 = vld [vmem:[#allocation2 + $0x38] sm:$0xff]
    %v670 = vld [vmem:[#allocation2 + $0x40] sm:$0xff]
    %v671 = vld [vmem:[#allocation2 + $0x48] sm:$0xff]
    %v672 = vld [vmem:[#allocation2 + $0x50] sm:$0xff]
    %v673 = vld [vmem:[#allocation2 + $0x58] sm:$0xff]
    %v674 = vld [vmem:[#allocation2 + $0x60] sm:$0xff]
    %v675 = vld [vmem:[#allocation2 + $0x68] sm:$0xff]
    %v676 = vld [vmem:[#allocation2 + $0x70] sm:$0xff]
    %v677 = vld [vmem:[#allocation2 + $0x78] sm:$0xff]
    %v678 = vld [vmem:[#allocation2 + $0x80] sm:$0xff]
    %v679 = vld [vmem:[#allocation2 + $0x88] sm:$0xff]
    %v680 = vld [vmem:[#allocation2 + $0x90] sm:$0xff]
    %v681 = vld [vmem:[#allocation2 + $0x98] sm:$0xff]
    %v682 = vld [vmem:[#allocation2 + $0xa0] sm:$0xff]
    %v683 = vld [vmem:[#allocation2 + $0xa8] sm:$0xff]
    %v684 = vld [vmem:[#allocation2 + $0xb0] sm:$0xff]
    %v685 = vld [vmem:[#allocation2 + $0xb8] sm:$0xff]
    %v686 = vld [vmem:[#allocation2 + $0xc0] sm:$0xff]
    %v687 = vld [vmem:[#allocation2 + $0xc8] sm:$0xff]
    %v688 = vld [vmem:[#allocation2 + $0xd0] sm:$0xff]
    %v689 = vld [vmem:[#allocation2 + $0xd8] sm:$0xff]
    %v690 = vld [vmem:[#allocation2 + $0xe0] sm:$0xff]
    %v691 = vld [vmem:[#allocation2 + $0xe8] sm:$0xff]
    %v692 = vld [vmem:[#allocation2 + $0xf0] sm:$0xff]
    %v693 = vld [vmem:[#allocation2 + $0xf8] sm:$0xff]
    %v694 = vld [vmem:[%s2] sm:$0xff]
    %v695 = vld [vmem:[%s2 + $0x8] sm:$0xff]
    %v696 = vld [vmem:[%s2 + $0x10] sm:$0xff]
    %v697 = vld [vmem:[%s2 + $0x18] sm:$0xff]
    %v698 = vld [vmem:[%s2 + $0x20] sm:$0xff]
    %v699 = vld [vmem:[%s2 + $0x28] sm:$0xff]
    %v700 = vld [vmem:[%s2 + $0x30] sm:$0xff]
    %v701 = vld [vmem:[%s2 + $0x38] sm:$0xff]
    %v702 = vld [vmem:[%s2 + $0x40] sm:$0xff]
    %v703 = vld [vmem:[%s2 + $0x48] sm:$0xff]
    %v704 = vld [vmem:[%s2 + $0x50] sm:$0xff]
    %v705 = vld [vmem:[%s2 + $0x58] sm:$0xff]
    %v706 = vld [vmem:[%s2 + $0x60] sm:$0xff]
    %v707 = vld [vmem:[%s2 + $0x68] sm:$0xff]
    %v708 = vld [vmem:[%s2 + $0x70] sm:$0xff]
    %v709 = vld [vmem:[%s2 + $0x78] sm:$0xff]
    %v710 = vld [vmem:[%s2 + $0x80] sm:$0xff]
    %v711 = vld [vmem:[%s2 + $0x88] sm:$0xff]
    %v712 = vld [vmem:[%s2 + $0x90] sm:$0xff]
    %v713 = vld [vmem:[%s2 + $0x98] sm:$0xff]
    %v714 = vld [vmem:[%s2 + $0xa0] sm:$0xff]
    %v715 = vld [vmem:[%s2 + $0xa8] sm:$0xff]
    %v716 = vld [vmem:[%s2 + $0xb0] sm:$0xff]
    %v717 = vld [vmem:[%s2 + $0xb8] sm:$0xff]
    %v718 = vld [vmem:[%s2 + $0xc0] sm:$0xff]
    %v719 = vld [vmem:[%s2 + $0xc8] sm:$0xff]
    %v720 = vld [vmem:[%s2 + $0xd0] sm:$0xff]
    %v721 = vld [vmem:[%s2 + $0xd8] sm:$0xff]
    %v722 = vld [vmem:[%s2 + $0xe0] sm:$0xff]
    %v723 = vld [vmem:[%s2 + $0xe8] sm:$0xff]
    %v724 = vld [vmem:[%s2 + $0xf0] sm:$0xff]
    %v725 = vld [vmem:[%s2 + $0xf8] sm:$0xff]
    %727 = vset.pattern.permute.xlu0 0
    %728 = vperm.xlu0 %727, %v694
    %v729 = vpop.permute.xlu0 %728
    %732 = vset.pattern.permute.xlu0 0
    %733 = vperm.xlu0 %732, %v695
    %v734 = vpop.permute.xlu0 %733
    %737 = vset.pattern.permute.xlu0 0
    %738 = vperm.xlu0 %737, %v696
    %v739 = vpop.permute.xlu0 %738
    %742 = vset.pattern.permute.xlu0 0
    %743 = vperm.xlu0 %742, %v697
    %v744 = vpop.permute.xlu0 %743
    %747 = vset.pattern.permute.xlu0 0
    %748 = vperm.xlu0 %747, %v698
    %v749 = vpop.permute.xlu0 %748
    %752 = vset.pattern.permute.xlu0 0
    %753 = vperm.xlu0 %752, %v699
    %v754 = vpop.permute.xlu0 %753
    %757 = vset.pattern.permute.xlu0 0
    %758 = vperm.xlu0 %757, %v700
    %v759 = vpop.permute.xlu0 %758
    %762 = vset.pattern.permute.xlu0 0
    %763 = vperm.xlu0 %762, %v701
    %v764 = vpop.permute.xlu0 %763
    %767 = vset.pattern.permute.xlu0 0
    %768 = vperm.xlu0 %767, %v702
    %v769 = vpop.permute.xlu0 %768
    %772 = vset.pattern.permute.xlu0 0
    %773 = vperm.xlu0 %772, %v703
    %v774 = vpop.permute.xlu0 %773
    %777 = vset.pattern.permute.xlu0 0
    %778 = vperm.xlu0 %777, %v704
    %v779 = vpop.permute.xlu0 %778
    %782 = vset.pattern.permute.xlu0 0
    %783 = vperm.xlu0 %782, %v705
    %v784 = vpop.permute.xlu0 %783
    %787 = vset.pattern.permute.xlu0 0
    %788 = vperm.xlu0 %787, %v706
    %v789 = vpop.permute.xlu0 %788
    %792 = vset.pattern.permute.xlu0 0
    %793 = vperm.xlu0 %792, %v707
    %v794 = vpop.permute.xlu0 %793
    %797 = vset.pattern.permute.xlu0 0
    %798 = vperm.xlu0 %797, %v708
    %v799 = vpop.permute.xlu0 %798
    %802 = vset.pattern.permute.xlu0 0
    %803 = vperm.xlu0 %802, %v709
    %v804 = vpop.permute.xlu0 %803
    %807 = vset.pattern.permute.xlu0 0
    %808 = vperm.xlu0 %807, %v710
    %v809 = vpop.permute.xlu0 %808
    %812 = vset.pattern.permute.xlu0 0
    %813 = vperm.xlu0 %812, %v711
    %v814 = vpop.permute.xlu0 %813
    %817 = vset.pattern.permute.xlu0 0
    %818 = vperm.xlu0 %817, %v712
    %v819 = vpop.permute.xlu0 %818
    %822 = vset.pattern.permute.xlu0 0
    %823 = vperm.xlu0 %822, %v713
    %v824 = vpop.permute.xlu0 %823
    %827 = vset.pattern.permute.xlu0 0
    %828 = vperm.xlu0 %827, %v714
    %v829 = vpop.permute.xlu0 %828
    %832 = vset.pattern.permute.xlu0 0
    %833 = vperm.xlu0 %832, %v715
    %v834 = vpop.permute.xlu0 %833
    %837 = vset.pattern.permute.xlu0 0
    %838 = vperm.xlu0 %837, %v716
    %v839 = vpop.permute.xlu0 %838
    %842 = vset.pattern.permute.xlu0 0
    %843 = vperm.xlu0 %842, %v717
    %v844 = vpop.permute.xlu0 %843
    %847 = vset.pattern.permute.xlu0 0
    %848 = vperm.xlu0 %847, %v718
    %v849 = vpop.permute.xlu0 %848
    %852 = vset.pattern.permute.xlu0 0
    %853 = vperm.xlu0 %852, %v719
    %v854 = vpop.permute.xlu0 %853
    %857 = vset.pattern.permute.xlu0 0
    %858 = vperm.xlu0 %857, %v720
    %v859 = vpop.permute.xlu0 %858
    %862 = vset.pattern.permute.xlu0 0
    %863 = vperm.xlu0 %862, %v721
    %v864 = vpop.permute.xlu0 %863
    %867 = vset.pattern.permute.xlu0 0
    %868 = vperm.xlu0 %867, %v722
    %v869 = vpop.permute.xlu0 %868
    %872 = vset.pattern.permute.xlu0 0
    %873 = vperm.xlu0 %872, %v723
    %v874 = vpop.permute.xlu0 %873
    %877 = vset.pattern.permute.xlu0 0
    %878 = vperm.xlu0 %877, %v724
    %v879 = vpop.permute.xlu0 %878
    %882 = vset.pattern.permute.xlu0 0
    %883 = vperm.xlu0 %882, %v725
    %v884 = vpop.permute.xlu0 %883
    %v886 = vmul.f32 %v662, %v729
    %v887 = vmul.f32 %v663, %v734
    %v888 = vmul.f32 %v664, %v739
    %v889 = vmul.f32 %v665, %v744
    %v890 = vmul.f32 %v666, %v749
    %v891 = vmul.f32 %v667, %v754
    %v892 = vmul.f32 %v668, %v759
    %v893 = vmul.f32 %v669, %v764
    %v894 = vmul.f32 %v670, %v769
    %v895 = vmul.f32 %v671, %v774
    %v896 = vmul.f32 %v672, %v779
    %v897 = vmul.f32 %v673, %v784
    %v898 = vmul.f32 %v674, %v789
    %v899 = vmul.f32 %v675, %v794
    %v900 = vmul.f32 %v676, %v799
    %v901 = vmul.f32 %v677, %v804
    %v902 = vmul.f32 %v678, %v809
    %v903 = vmul.f32 %v679, %v814
    %v904 = vmul.f32 %v680, %v819
    %v905 = vmul.f32 %v681, %v824
    %v906 = vmul.f32 %v682, %v829
    %v907 = vmul.f32 %v683, %v834
    %v908 = vmul.f32 %v684, %v839
    %v909 = vmul.f32 %v685, %v844
    %v910 = vmul.f32 %v686, %v849
    %v911 = vmul.f32 %v687, %v854
    %v912 = vmul.f32 %v688, %v859
    %v913 = vmul.f32 %v689, %v864
    %v914 = vmul.f32 %v690, %v869
    %v915 = vmul.f32 %v691, %v874
    %v916 = vmul.f32 %v692, %v879
    %v917 = vmul.f32 %v693, %v884
    %v918 = vpack.c.bf16 %v887, %v886
    %v919 = vpack.c.bf16 %v889, %v888
    %v920 = vpack.c.bf16 %v891, %v890
    %v921 = vpack.c.bf16 %v893, %v892
    %v922 = vpack.c.bf16 %v895, %v894
    %v923 = vpack.c.bf16 %v897, %v896
    %v924 = vpack.c.bf16 %v899, %v898
    %v925 = vpack.c.bf16 %v901, %v900
    %v926 = vpack.c.bf16 %v903, %v902
    %v927 = vpack.c.bf16 %v905, %v904
    %v928 = vpack.c.bf16 %v907, %v906
    %v929 = vpack.c.bf16 %v909, %v908
    %v930 = vpack.c.bf16 %v911, %v910
    %v931 = vpack.c.bf16 %v913, %v912
    %v932 = vpack.c.bf16 %v915, %v914
    %v933 = vpack.c.bf16 %v917, %v916
    %v934 = vld [vmem:[%s4] sm:$0xff]
    %v935 = vld [vmem:[%s4 + $0x8] sm:$0xff]
    %v936 = vld [vmem:[%s4 + $0x10] sm:$0xff]
    %v937 = vld [vmem:[%s4 + $0x18] sm:$0xff]
    %v938 = vld [vmem:[%s3] sm:$0xf]
    %v939 = vld [vmem:[%s3 + $0x4] sm:$0xf]
    %v940 = vld [vmem:[%s3 + $0x8] sm:$0xf]
    %v941 = vld [vmem:[%s3 + $0xc] sm:$0xf]
    %v942 = vld [vmem:[%s3 + $0x10] sm:$0xf]
    %v943 = vld [vmem:[%s3 + $0x14] sm:$0xf]
    %v944 = vld [vmem:[%s3 + $0x18] sm:$0xf]
    %v945 = vld [vmem:[%s3 + $0x1c] sm:$0xf]
    %v946 = vld [vmem:[%s3 + $0x20] sm:$0xf]
    %v947 = vld [vmem:[%s3 + $0x24] sm:$0xf]
    %v948 = vld [vmem:[%s3 + $0x28] sm:$0xf]
    %v949 = vld [vmem:[%s3 + $0x2c] sm:$0xf]
    %v950 = vld [vmem:[%s3 + $0x30] sm:$0xf]
    %v951 = vld [vmem:[%s3 + $0x34] sm:$0xf]
    %v952 = vld [vmem:[%s3 + $0x38] sm:$0xf]
    %v953 = vld [vmem:[%s3 + $0x3c] sm:$0xf]
    %v954 = vld [vmem:[%s3 + $0x40] sm:$0xf]
    %v955 = vld [vmem:[%s3 + $0x44] sm:$0xf]
    %v956 = vld [vmem:[%s3 + $0x48] sm:$0xf]
    %v957 = vld [vmem:[%s3 + $0x4c] sm:$0xf]
    %v958 = vld [vmem:[%s3 + $0x50] sm:$0xf]
    %v959 = vld [vmem:[%s3 + $0x54] sm:$0xf]
    %v960 = vld [vmem:[%s3 + $0x58] sm:$0xf]
    %v961 = vld [vmem:[%s3 + $0x5c] sm:$0xf]
    %v962 = vld [vmem:[%s3 + $0x60] sm:$0xf]
    %v963 = vld [vmem:[%s3 + $0x64] sm:$0xf]
    %v964 = vld [vmem:[%s3 + $0x68] sm:$0xf]
    %v965 = vld [vmem:[%s3 + $0x6c] sm:$0xf]
    %v966 = vld [vmem:[%s3 + $0x70] sm:$0xf]
    %v967 = vld [vmem:[%s3 + $0x74] sm:$0xf]
    %v968 = vld [vmem:[%s3 + $0x78] sm:$0xf]
    %v969 = vld [vmem:[%s3 + $0x7c] sm:$0xf]
    %v970 = vld [vmem:[%s5] sm:$0xff]
    %v971 = vld [vmem:[%s5 + $0x8] sm:$0xff]
    %v972 = vld [vmem:[%s5 + $0x10] sm:$0xff]
    %v973 = vld [vmem:[%s5 + $0x18] sm:$0xff]
    %v1006 = vunpack.c.l.b16 %v938
    %v1007 = vunpack.c.l.b16 %v939
    %v1008 = vunpack.c.l.b16 %v940
    %v1009 = vunpack.c.l.b16 %v941
    %v1010 = vunpack.c.l.b16 %v942
    %v1011 = vunpack.c.l.b16 %v943
    %v1012 = vunpack.c.l.b16 %v944
    %v1013 = vunpack.c.l.b16 %v945
    %v1014 = vunpack.c.l.b16 %v946
    %v1015 = vunpack.c.l.b16 %v947
    %v1016 = vunpack.c.l.b16 %v948
    %v1017 = vunpack.c.l.b16 %v949
    %v1018 = vunpack.c.l.b16 %v950
    %v1019 = vunpack.c.l.b16 %v951
    %v1020 = vunpack.c.l.b16 %v952
    %v1021 = vunpack.c.l.b16 %v953
    %v1022 = vunpack.c.l.b16 %v954
    %v1023 = vunpack.c.l.b16 %v955
    %v1024 = vunpack.c.l.b16 %v956
    %v1025 = vunpack.c.l.b16 %v957
    %v1026 = vunpack.c.l.b16 %v958
    %v1027 = vunpack.c.l.b16 %v959
    %v1028 = vunpack.c.l.b16 %v960
    %v1029 = vunpack.c.l.b16 %v961
    %v1030 = vunpack.c.l.b16 %v962
    %v1031 = vunpack.c.l.b16 %v963
    %v1032 = vunpack.c.l.b16 %v964
    %v1033 = vunpack.c.l.b16 %v965
    %v1034 = vunpack.c.l.b16 %v966
    %v1035 = vunpack.c.l.b16 %v967
    %v1036 = vunpack.c.l.b16 %v968
    %v1037 = vunpack.c.l.b16 %v969
    %v1038 = vpack.c.b16 %v1007, %v1006
    %v1039 = vpack.c.b16 %v1009, %v1008
    %v1040 = vpack.c.b16 %v1011, %v1010
    %v1041 = vpack.c.b16 %v1013, %v1012
    %v1042 = vpack.c.b16 %v1015, %v1014
    %v1043 = vpack.c.b16 %v1017, %v1016
    %v1044 = vpack.c.b16 %v1019, %v1018
    %v1045 = vpack.c.b16 %v1021, %v1020
    %v1046 = vpack.c.b16 %v1023, %v1022
    %v1047 = vpack.c.b16 %v1025, %v1024
    %v1048 = vpack.c.b16 %v1027, %v1026
    %v1049 = vpack.c.b16 %v1029, %v1028
    %v1050 = vpack.c.b16 %v1031, %v1030
    %v1051 = vpack.c.b16 %v1033, %v1032
    %v1052 = vpack.c.b16 %v1035, %v1034
    %v1053 = vpack.c.b16 %v1037, %v1036
    %v1058 = vunpack.c.l.b16 %v970
    %v1059 = vunpack.c.h.b16 %v970
    %v1060 = vunpack.c.l.b16 %v971
    %v1061 = vunpack.c.h.b16 %v971
    %v1062 = vunpack.c.l.b16 %v972
    %v1063 = vunpack.c.h.b16 %v972
    %v1064 = vunpack.c.l.b16 %v973
    %v1065 = vunpack.c.h.b16 %v973
    %v1066 = vpack.c.b16 %v1060, %v1058
    %v1067 = vpack.c.b16 %v1061, %v1059
    %v1068 = vpack.c.b16 %v1064, %v1062
    %v1069 = vpack.c.b16 %v1065, %v1063
    %v1075 = vsel %vm626, %v1038, 0
    %v1078 = vsel %vm626, %v1039, 0
    %v1081 = vsel %vm626, %v1040, 0
    %v1084 = vsel %vm626, %v1041, 0
    %v1087 = vsel %vm626, %v1042, 0
    %v1090 = vsel %vm626, %v1043, 0
    %v1093 = vsel %vm626, %v1044, 0
    %v1096 = vsel %vm626, %v1045, 0
    %v1099 = vsel %vm626, %v1046, 0
    %v1102 = vsel %vm626, %v1047, 0
    %v1105 = vsel %vm626, %v1048, 0
    %v1108 = vsel %vm626, %v1049, 0
    %v1111 = vsel %vm626, %v1050, 0
    %v1114 = vsel %vm626, %v1051, 0
    %v1117 = vsel %vm626, %v1052, 0
    %v1120 = vsel %vm626, %v1053, 0
    %1122 = vmatpush.bf16.msra.mxu0 0
    %1123 = vmatpush.bf16.msra.mxu0 0
    %1124 = vmatpush.bf16.msra.mxu0 0
    %1125 = vmatpush.bf16.msra.mxu0 0
    %1126 = vmatpush.bf16.msra.mxu0 0
    %1127 = vmatpush.bf16.msra.mxu0 0
    %1128 = vmatpush.bf16.msra.mxu0 %v1068
    %1129 = vmatpush.bf16.msra.mxu0 %v1066
    %1130 = vmatmul.bf16.gmra.mxu0 %v1075
    %v1131 = vpop.f32.mrf.mxu0
    %v1132 = vadd.f32 0.0, %v1131
    %v1133 = vpop.f32.mrf.mxu0
    %v1134 = vadd.f32 0.0, %v1133
    %1135 = vmatmul.bf16.gmra.mxu0 %v1078
    %v1136 = vpop.f32.mrf.mxu0
    %v1137 = vadd.f32 0.0, %v1136
    %v1138 = vpop.f32.mrf.mxu0
    %v1139 = vadd.f32 0.0, %v1138
    %1140 = vmatmul.bf16.gmra.mxu0 %v1081
    %v1141 = vpop.f32.mrf.mxu0
    %v1142 = vadd.f32 0.0, %v1141
    %v1143 = vpop.f32.mrf.mxu0
    %v1144 = vadd.f32 0.0, %v1143
    %1145 = vmatmul.bf16.gmra.mxu0 %v1084
    %v1146 = vpop.f32.mrf.mxu0
    %v1147 = vadd.f32 0.0, %v1146
    %v1148 = vpop.f32.mrf.mxu0
    %v1149 = vadd.f32 0.0, %v1148
    %1150 = vmatmul.bf16.gmra.mxu0 %v1087
    %v1151 = vpop.f32.mrf.mxu0
    %v1152 = vadd.f32 0.0, %v1151
    %v1153 = vpop.f32.mrf.mxu0
    %v1154 = vadd.f32 0.0, %v1153
    %1155 = vmatmul.bf16.gmra.mxu0 %v1090
    %v1156 = vpop.f32.mrf.mxu0
    %v1157 = vadd.f32 0.0, %v1156
    %v1158 = vpop.f32.mrf.mxu0
    %v1159 = vadd.f32 0.0, %v1158
    %1160 = vmatmul.bf16.gmra.mxu0 %v1093
    %v1161 = vpop.f32.mrf.mxu0
    %v1162 = vadd.f32 0.0, %v1161
    %v1163 = vpop.f32.mrf.mxu0
    %v1164 = vadd.f32 0.0, %v1163
    %1165 = vmatmul.bf16.gmra.mxu0 %v1096
    %v1166 = vpop.f32.mrf.mxu0
    %v1167 = vadd.f32 0.0, %v1166
    %v1168 = vpop.f32.mrf.mxu0
    %v1169 = vadd.f32 0.0, %v1168
    %1170 = vmatmul.bf16.gmra.mxu0 %v1099
    %v1171 = vpop.f32.mrf.mxu0
    %v1172 = vadd.f32 0.0, %v1171
    %v1173 = vpop.f32.mrf.mxu0
    %v1174 = vadd.f32 0.0, %v1173
    %1175 = vmatmul.bf16.gmra.mxu0 %v1102
    %v1176 = vpop.f32.mrf.mxu0
    %v1177 = vadd.f32 0.0, %v1176
    %v1178 = vpop.f32.mrf.mxu0
    %v1179 = vadd.f32 0.0, %v1178
    %1180 = vmatmul.bf16.gmra.mxu0 %v1105
    %v1181 = vpop.f32.mrf.mxu0
    %v1182 = vadd.f32 0.0, %v1181
    %v1183 = vpop.f32.mrf.mxu0
    %v1184 = vadd.f32 0.0, %v1183
    %1185 = vmatmul.bf16.gmra.mxu0 %v1108
    %v1186 = vpop.f32.mrf.mxu0
    %v1187 = vadd.f32 0.0, %v1186
    %v1188 = vpop.f32.mrf.mxu0
    %v1189 = vadd.f32 0.0, %v1188
    %1190 = vmatmul.bf16.gmra.mxu0 %v1111
    %v1191 = vpop.f32.mrf.mxu0
    %v1192 = vadd.f32 0.0, %v1191
    %v1193 = vpop.f32.mrf.mxu0
    %v1194 = vadd.f32 0.0, %v1193
    %1195 = vmatmul.bf16.gmra.mxu0 %v1114
    %v1196 = vpop.f32.mrf.mxu0
    %v1197 = vadd.f32 0.0, %v1196
    %v1198 = vpop.f32.mrf.mxu0
    %v1199 = vadd.f32 0.0, %v1198
    %1200 = vmatmul.bf16.gmra.mxu0 %v1117
    %v1201 = vpop.f32.mrf.mxu0
    %v1202 = vadd.f32 0.0, %v1201
    %v1203 = vpop.f32.mrf.mxu0
    %v1204 = vadd.f32 0.0, %v1203
    %1205 = vmatmul.bf16.gmra.mxu0 %v1120
    %v1206 = vpop.f32.mrf.mxu0
    %v1207 = vadd.f32 0.0, %v1206
    %v1208 = vpop.f32.mrf.mxu0
    %v1209 = vadd.f32 0.0, %v1208
    %1210 = vdwg.mxu0
    %1211 = vmatpush.bf16.msra.mxu0 0
    %1212 = vmatpush.bf16.msra.mxu0 0
    %1213 = vmatpush.bf16.msra.mxu0 0
    %1214 = vmatpush.bf16.msra.mxu0 0
    %1215 = vmatpush.bf16.msra.mxu0 0
    %1216 = vmatpush.bf16.msra.mxu0 0
    %1217 = vmatpush.bf16.msra.mxu0 %v1069
    %1218 = vmatpush.bf16.msra.mxu0 %v1067
    %1219 = vmatmul.bf16.gmra.mxu0 %v1075
    %v1220 = vpop.f32.mrf.mxu0
    %v1221 = vadd.f32 0.0, %v1220
    %v1222 = vpop.f32.mrf.mxu0
    %v1223 = vadd.f32 0.0, %v1222
    %1224 = vmatmul.bf16.gmra.mxu0 %v1078
    %v1225 = vpop.f32.mrf.mxu0
    %v1226 = vadd.f32 0.0, %v1225
    %v1227 = vpop.f32.mrf.mxu0
    %v1228 = vadd.f32 0.0, %v1227
    %1229 = vmatmul.bf16.gmra.mxu0 %v1081
    %v1230 = vpop.f32.mrf.mxu0
    %v1231 = vadd.f32 0.0, %v1230
    %v1232 = vpop.f32.mrf.mxu0
    %v1233 = vadd.f32 0.0, %v1232
    %1234 = vmatmul.bf16.gmra.mxu0 %v1084
    %v1235 = vpop.f32.mrf.mxu0
    %v1236 = vadd.f32 0.0, %v1235
    %v1237 = vpop.f32.mrf.mxu0
    %v1238 = vadd.f32 0.0, %v1237
    %1239 = vmatmul.bf16.gmra.mxu0 %v1087
    %v1240 = vpop.f32.mrf.mxu0
    %v1241 = vadd.f32 0.0, %v1240
    %v1242 = vpop.f32.mrf.mxu0
    %v1243 = vadd.f32 0.0, %v1242
    %1244 = vmatmul.bf16.gmra.mxu0 %v1090
    %v1245 = vpop.f32.mrf.mxu0
    %v1246 = vadd.f32 0.0, %v1245
    %v1247 = vpop.f32.mrf.mxu0
    %v1248 = vadd.f32 0.0, %v1247
    %1249 = vmatmul.bf16.gmra.mxu0 %v1093
    %v1250 = vpop.f32.mrf.mxu0
    %v1251 = vadd.f32 0.0, %v1250
    %v1252 = vpop.f32.mrf.mxu0
    %v1253 = vadd.f32 0.0, %v1252
    %1254 = vmatmul.bf16.gmra.mxu0 %v1096
    %v1255 = vpop.f32.mrf.mxu0
    %v1256 = vadd.f32 0.0, %v1255
    %v1257 = vpop.f32.mrf.mxu0
    %v1258 = vadd.f32 0.0, %v1257
    %1259 = vmatmul.bf16.gmra.mxu0 %v1099
    %v1260 = vpop.f32.mrf.mxu0
    %v1261 = vadd.f32 0.0, %v1260
    %v1262 = vpop.f32.mrf.mxu0
    %v1263 = vadd.f32 0.0, %v1262
    %1264 = vmatmul.bf16.gmra.mxu0 %v1102
    %v1265 = vpop.f32.mrf.mxu0
    %v1266 = vadd.f32 0.0, %v1265
    %v1267 = vpop.f32.mrf.mxu0
    %v1268 = vadd.f32 0.0, %v1267
    %1269 = vmatmul.bf16.gmra.mxu0 %v1105
    %v1270 = vpop.f32.mrf.mxu0
    %v1271 = vadd.f32 0.0, %v1270
    %v1272 = vpop.f32.mrf.mxu0
    %v1273 = vadd.f32 0.0, %v1272
    %1274 = vmatmul.bf16.gmra.mxu0 %v1108
    %v1275 = vpop.f32.mrf.mxu0
    %v1276 = vadd.f32 0.0, %v1275
    %v1277 = vpop.f32.mrf.mxu0
    %v1278 = vadd.f32 0.0, %v1277
    %1279 = vmatmul.bf16.gmra.mxu0 %v1111
    %v1280 = vpop.f32.mrf.mxu0
    %v1281 = vadd.f32 0.0, %v1280
    %v1282 = vpop.f32.mrf.mxu0
    %v1283 = vadd.f32 0.0, %v1282
    %1284 = vmatmul.bf16.gmra.mxu0 %v1114
    %v1285 = vpop.f32.mrf.mxu0
    %v1286 = vadd.f32 0.0, %v1285
    %v1287 = vpop.f32.mrf.mxu0
    %v1288 = vadd.f32 0.0, %v1287
    %1289 = vmatmul.bf16.gmra.mxu0 %v1117
    %v1290 = vpop.f32.mrf.mxu0
    %v1291 = vadd.f32 0.0, %v1290
    %v1292 = vpop.f32.mrf.mxu0
    %v1293 = vadd.f32 0.0, %v1292
    %1294 = vmatmul.bf16.gmra.mxu0 %v1120
    %v1295 = vpop.f32.mrf.mxu0
    %v1296 = vadd.f32 0.0, %v1295
    %v1297 = vpop.f32.mrf.mxu0
    %v1298 = vadd.f32 0.0, %v1297
    %1299 = vdwg.mxu0
    %v1304 = vunpack.c.l.b16 %v934
    %v1305 = vunpack.c.h.b16 %v934
    %v1306 = vunpack.c.l.b16 %v935
    %v1307 = vunpack.c.h.b16 %v935
    %v1308 = vunpack.c.l.b16 %v936
    %v1309 = vunpack.c.h.b16 %v936
    %v1310 = vunpack.c.l.b16 %v937
    %v1311 = vunpack.c.h.b16 %v937
    %v1312 = vpack.c.b16 %v1306, %v1304
    %v1313 = vpack.c.b16 %v1307, %v1305
    %v1314 = vpack.c.b16 %v1310, %v1308
    %v1315 = vpack.c.b16 %v1311, %v1309
    %v1321 = vsel %vm626, %v918, 0
    %v1324 = vsel %vm626, %v919, 0
    %v1327 = vsel %vm626, %v920, 0
    %v1330 = vsel %vm626, %v921, 0
    %v1333 = vsel %vm626, %v922, 0
    %v1336 = vsel %vm626, %v923, 0
    %v1339 = vsel %vm626, %v924, 0
    %v1342 = vsel %vm626, %v925, 0
    %v1345 = vsel %vm626, %v926, 0
    %v1348 = vsel %vm626, %v927, 0
    %v1351 = vsel %vm626, %v928, 0
    %v1354 = vsel %vm626, %v929, 0
    %v1357 = vsel %vm626, %v930, 0
    %v1360 = vsel %vm626, %v931, 0
    %v1363 = vsel %vm626, %v932, 0
    %v1366 = vsel %vm626, %v933, 0
    %1368 = vmatpush.bf16.msra.mxu0 0
    %1369 = vmatpush.bf16.msra.mxu0 0
    %1370 = vmatpush.bf16.msra.mxu0 0
    %1371 = vmatpush.bf16.msra.mxu0 0
    %1372 = vmatpush.bf16.msra.mxu0 0
    %1373 = vmatpush.bf16.msra.mxu0 0
    %1374 = vmatpush.bf16.msra.mxu0 %v1314
    %1375 = vmatpush.bf16.msra.mxu0 %v1312
    %1376 = vmatmul.bf16.gmra.mxu0 %v1321
    %v1377 = vpop.f32.mrf.mxu0
    %v1378 = vadd.f32 %v1132, %v1377
    %v1379 = vpop.f32.mrf.mxu0
    %v1380 = vadd.f32 %v1134, %v1379
    %1381 = vmatmul.bf16.gmra.mxu0 %v1324
    %v1382 = vpop.f32.mrf.mxu0
    %v1383 = vadd.f32 %v1137, %v1382
    %v1384 = vpop.f32.mrf.mxu0
    %v1385 = vadd.f32 %v1139, %v1384
    %1386 = vmatmul.bf16.gmra.mxu0 %v1327
    %v1387 = vpop.f32.mrf.mxu0
    %v1388 = vadd.f32 %v1142, %v1387
    %v1389 = vpop.f32.mrf.mxu0
    %v1390 = vadd.f32 %v1144, %v1389
    %1391 = vmatmul.bf16.gmra.mxu0 %v1330
    %v1392 = vpop.f32.mrf.mxu0
    %v1393 = vadd.f32 %v1147, %v1392
    %v1394 = vpop.f32.mrf.mxu0
    %v1395 = vadd.f32 %v1149, %v1394
    %1396 = vmatmul.bf16.gmra.mxu0 %v1333
    %v1397 = vpop.f32.mrf.mxu0
    %v1398 = vadd.f32 %v1152, %v1397
    %v1399 = vpop.f32.mrf.mxu0
    %v1400 = vadd.f32 %v1154, %v1399
    %1401 = vmatmul.bf16.gmra.mxu0 %v1336
    %v1402 = vpop.f32.mrf.mxu0
    %v1403 = vadd.f32 %v1157, %v1402
    %v1404 = vpop.f32.mrf.mxu0
    %v1405 = vadd.f32 %v1159, %v1404
    %1406 = vmatmul.bf16.gmra.mxu0 %v1339
    %v1407 = vpop.f32.mrf.mxu0
    %v1408 = vadd.f32 %v1162, %v1407
    %v1409 = vpop.f32.mrf.mxu0
    %v1410 = vadd.f32 %v1164, %v1409
    %1411 = vmatmul.bf16.gmra.mxu0 %v1342
    %v1412 = vpop.f32.mrf.mxu0
    %v1413 = vadd.f32 %v1167, %v1412
    %v1414 = vpop.f32.mrf.mxu0
    %v1415 = vadd.f32 %v1169, %v1414
    %1416 = vmatmul.bf16.gmra.mxu0 %v1345
    %v1417 = vpop.f32.mrf.mxu0
    %v1418 = vadd.f32 %v1172, %v1417
    %v1419 = vpop.f32.mrf.mxu0
    %v1420 = vadd.f32 %v1174, %v1419
    %1421 = vmatmul.bf16.gmra.mxu0 %v1348
    %v1422 = vpop.f32.mrf.mxu0
    %v1423 = vadd.f32 %v1177, %v1422
    %v1424 = vpop.f32.mrf.mxu0
    %v1425 = vadd.f32 %v1179, %v1424
    %1426 = vmatmul.bf16.gmra.mxu0 %v1351
    %v1427 = vpop.f32.mrf.mxu0
    %v1428 = vadd.f32 %v1182, %v1427
    %v1429 = vpop.f32.mrf.mxu0
    %v1430 = vadd.f32 %v1184, %v1429
    %1431 = vmatmul.bf16.gmra.mxu0 %v1354
    %v1432 = vpop.f32.mrf.mxu0
    %v1433 = vadd.f32 %v1187, %v1432
    %v1434 = vpop.f32.mrf.mxu0
    %v1435 = vadd.f32 %v1189, %v1434
    %1436 = vmatmul.bf16.gmra.mxu0 %v1357
    %v1437 = vpop.f32.mrf.mxu0
    %v1438 = vadd.f32 %v1192, %v1437
    %v1439 = vpop.f32.mrf.mxu0
    %v1440 = vadd.f32 %v1194, %v1439
    %1441 = vmatmul.bf16.gmra.mxu0 %v1360
    %v1442 = vpop.f32.mrf.mxu0
    %v1443 = vadd.f32 %v1197, %v1442
    %v1444 = vpop.f32.mrf.mxu0
    %v1445 = vadd.f32 %v1199, %v1444
    %1446 = vmatmul.bf16.gmra.mxu0 %v1363
    %v1447 = vpop.f32.mrf.mxu0
    %v1448 = vadd.f32 %v1202, %v1447
    %v1449 = vpop.f32.mrf.mxu0
    %v1450 = vadd.f32 %v1204, %v1449
    %1451 = vmatmul.bf16.gmra.mxu0 %v1366
    %v1452 = vpop.f32.mrf.mxu0
    %v1453 = vadd.f32 %v1207, %v1452
    %v1454 = vpop.f32.mrf.mxu0
    %v1455 = vadd.f32 %v1209, %v1454
    %1456 = vdwg.mxu0
    %1457 = vmatpush.bf16.msra.mxu0 0
    %1458 = vmatpush.bf16.msra.mxu0 0
    %1459 = vmatpush.bf16.msra.mxu0 0
    %1460 = vmatpush.bf16.msra.mxu0 0
    %1461 = vmatpush.bf16.msra.mxu0 0
    %1462 = vmatpush.bf16.msra.mxu0 0
    %1463 = vmatpush.bf16.msra.mxu0 %v1315
    %1464 = vmatpush.bf16.msra.mxu0 %v1313
    %1465 = vmatmul.bf16.gmra.mxu0 %v1321
    %v1466 = vpop.f32.mrf.mxu0
    %v1467 = vadd.f32 %v1221, %v1466
    %v1468 = vpop.f32.mrf.mxu0
    %v1469 = vadd.f32 %v1223, %v1468
    %1470 = vmatmul.bf16.gmra.mxu0 %v1324
    %v1471 = vpop.f32.mrf.mxu0
    %v1472 = vadd.f32 %v1226, %v1471
    %v1473 = vpop.f32.mrf.mxu0
    %v1474 = vadd.f32 %v1228, %v1473
    %1475 = vmatmul.bf16.gmra.mxu0 %v1327
    %v1476 = vpop.f32.mrf.mxu0
    %v1477 = vadd.f32 %v1231, %v1476
    %v1478 = vpop.f32.mrf.mxu0
    %v1479 = vadd.f32 %v1233, %v1478
    %1480 = vmatmul.bf16.gmra.mxu0 %v1330
    %v1481 = vpop.f32.mrf.mxu0
    %v1482 = vadd.f32 %v1236, %v1481
    %v1483 = vpop.f32.mrf.mxu0
    %v1484 = vadd.f32 %v1238, %v1483
    %1485 = vmatmul.bf16.gmra.mxu0 %v1333
    %v1486 = vpop.f32.mrf.mxu0
    %v1487 = vadd.f32 %v1241, %v1486
    %v1488 = vpop.f32.mrf.mxu0
    %v1489 = vadd.f32 %v1243, %v1488
    %1490 = vmatmul.bf16.gmra.mxu0 %v1336
    %v1491 = vpop.f32.mrf.mxu0
    %v1492 = vadd.f32 %v1246, %v1491
    %v1493 = vpop.f32.mrf.mxu0
    %v1494 = vadd.f32 %v1248, %v1493
    %1495 = vmatmul.bf16.gmra.mxu0 %v1339
    %v1496 = vpop.f32.mrf.mxu0
    %v1497 = vadd.f32 %v1251, %v1496
    %v1498 = vpop.f32.mrf.mxu0
    %v1499 = vadd.f32 %v1253, %v1498
    %1500 = vmatmul.bf16.gmra.mxu0 %v1342
    %v1501 = vpop.f32.mrf.mxu0
    %v1502 = vadd.f32 %v1256, %v1501
    %v1503 = vpop.f32.mrf.mxu0
    %v1504 = vadd.f32 %v1258, %v1503
    %1505 = vmatmul.bf16.gmra.mxu0 %v1345
    %v1506 = vpop.f32.mrf.mxu0
    %v1507 = vadd.f32 %v1261, %v1506
    %v1508 = vpop.f32.mrf.mxu0
    %v1509 = vadd.f32 %v1263, %v1508
    %1510 = vmatmul.bf16.gmra.mxu0 %v1348
    %v1511 = vpop.f32.mrf.mxu0
    %v1512 = vadd.f32 %v1266, %v1511
    %v1513 = vpop.f32.mrf.mxu0
    %v1514 = vadd.f32 %v1268, %v1513
    %1515 = vmatmul.bf16.gmra.mxu0 %v1351
    %v1516 = vpop.f32.mrf.mxu0
    %v1517 = vadd.f32 %v1271, %v1516
    %v1518 = vpop.f32.mrf.mxu0
    %v1519 = vadd.f32 %v1273, %v1518
    %1520 = vmatmul.bf16.gmra.mxu0 %v1354
    %v1521 = vpop.f32.mrf.mxu0
    %v1522 = vadd.f32 %v1276, %v1521
    %v1523 = vpop.f32.mrf.mxu0
    %v1524 = vadd.f32 %v1278, %v1523
    %1525 = vmatmul.bf16.gmra.mxu0 %v1357
    %v1526 = vpop.f32.mrf.mxu0
    %v1527 = vadd.f32 %v1281, %v1526
    %v1528 = vpop.f32.mrf.mxu0
    %v1529 = vadd.f32 %v1283, %v1528
    %1530 = vmatmul.bf16.gmra.mxu0 %v1360
    %v1531 = vpop.f32.mrf.mxu0
    %v1532 = vadd.f32 %v1286, %v1531
    %v1533 = vpop.f32.mrf.mxu0
    %v1534 = vadd.f32 %v1288, %v1533
    %1535 = vmatmul.bf16.gmra.mxu0 %v1363
    %v1536 = vpop.f32.mrf.mxu0
    %v1537 = vadd.f32 %v1291, %v1536
    %v1538 = vpop.f32.mrf.mxu0
    %v1539 = vadd.f32 %v1293, %v1538
    %1540 = vmatmul.bf16.gmra.mxu0 %v1366
    %v1541 = vpop.f32.mrf.mxu0
    %v1542 = vadd.f32 %v1296, %v1541
    %v1543 = vpop.f32.mrf.mxu0
    %v1544 = vadd.f32 %v1298, %v1543
    %1545 = vdwg.mxu0
    %v1546 = vld [vmem:[%s6] sm:$0x3]
    %v1548 = vperm.slane %v1546, 0
    %v1549 = vperm.slane %v1546, 1
    %v1552 = vadd.f32 %v1378, %v1548
    %v1553 = vadd.f32 %v1467, %v1549
    %v1554 = vadd.f32 %v1380, %v1548
    %v1555 = vadd.f32 %v1469, %v1549
    %v1556 = vadd.f32 %v1383, %v1548
    %v1557 = vadd.f32 %v1472, %v1549
    %v1558 = vadd.f32 %v1385, %v1548
    %v1559 = vadd.f32 %v1474, %v1549
    %v1560 = vadd.f32 %v1388, %v1548
    %v1561 = vadd.f32 %v1477, %v1549
    %v1562 = vadd.f32 %v1390, %v1548
    %v1563 = vadd.f32 %v1479, %v1549
    %v1564 = vadd.f32 %v1393, %v1548
    %v1565 = vadd.f32 %v1482, %v1549
    %v1566 = vadd.f32 %v1395, %v1548
    %v1567 = vadd.f32 %v1484, %v1549
    %v1568 = vadd.f32 %v1398, %v1548
    %v1569 = vadd.f32 %v1487, %v1549
    %v1570 = vadd.f32 %v1400, %v1548
    %v1571 = vadd.f32 %v1489, %v1549
    %v1572 = vadd.f32 %v1403, %v1548
    %v1573 = vadd.f32 %v1492, %v1549
    %v1574 = vadd.f32 %v1405, %v1548
    %v1575 = vadd.f32 %v1494, %v1549
    %v1576 = vadd.f32 %v1408, %v1548
    %v1577 = vadd.f32 %v1497, %v1549
    %v1578 = vadd.f32 %v1410, %v1548
    %v1579 = vadd.f32 %v1499, %v1549
    %v1580 = vadd.f32 %v1413, %v1548
    %v1581 = vadd.f32 %v1502, %v1549
    %v1582 = vadd.f32 %v1415, %v1548
    %v1583 = vadd.f32 %v1504, %v1549
    %v1584 = vadd.f32 %v1418, %v1548
    %v1585 = vadd.f32 %v1507, %v1549
    %v1586 = vadd.f32 %v1420, %v1548
    %v1587 = vadd.f32 %v1509, %v1549
    %v1588 = vadd.f32 %v1423, %v1548
    %v1589 = vadd.f32 %v1512, %v1549
    %v1590 = vadd.f32 %v1425, %v1548
    %v1591 = vadd.f32 %v1514, %v1549
    %v1592 = vadd.f32 %v1428, %v1548
    %v1593 = vadd.f32 %v1517, %v1549
    %v1594 = vadd.f32 %v1430, %v1548
    %v1595 = vadd.f32 %v1519, %v1549
    %v1596 = vadd.f32 %v1433, %v1548
    %v1597 = vadd.f32 %v1522, %v1549
    %v1598 = vadd.f32 %v1435, %v1548
    %v1599 = vadd.f32 %v1524, %v1549
    %v1600 = vadd.f32 %v1438, %v1548
    %v1601 = vadd.f32 %v1527, %v1549
    %v1602 = vadd.f32 %v1440, %v1548
    %v1603 = vadd.f32 %v1529, %v1549
    %v1604 = vadd.f32 %v1443, %v1548
    %v1605 = vadd.f32 %v1532, %v1549
    %v1606 = vadd.f32 %v1445, %v1548
    %v1607 = vadd.f32 %v1534, %v1549
    %v1608 = vadd.f32 %v1448, %v1548
    %v1609 = vadd.f32 %v1537, %v1549
    %v1610 = vadd.f32 %v1450, %v1548
    %v1611 = vadd.f32 %v1539, %v1549
    %v1612 = vadd.f32 %v1453, %v1548
    %v1613 = vadd.f32 %v1542, %v1549
    %v1614 = vadd.f32 %v1455, %v1548
    %v1615 = vadd.f32 %v1544, %v1549
    %v1616 = vmax.f32 %v1552, 0.0
    %v1617 = vmax.f32 %v1553, 0.0
    %v1618 = vmax.f32 %v1554, 0.0
    %v1619 = vmax.f32 %v1555, 0.0
    %v1620 = vmax.f32 %v1556, 0.0
    %v1621 = vmax.f32 %v1557, 0.0
    %v1622 = vmax.f32 %v1558, 0.0
    %v1623 = vmax.f32 %v1559, 0.0
    %v1624 = vmax.f32 %v1560, 0.0
    %v1625 = vmax.f32 %v1561, 0.0
    %v1626 = vmax.f32 %v1562, 0.0
    %v1627 = vmax.f32 %v1563, 0.0
    %v1628 = vmax.f32 %v1564, 0.0
    %v1629 = vmax.f32 %v1565, 0.0
    %v1630 = vmax.f32 %v1566, 0.0
    %v1631 = vmax.f32 %v1567, 0.0
    %v1632 = vmax.f32 %v1568, 0.0
    %v1633 = vmax.f32 %v1569, 0.0
    %v1634 = vmax.f32 %v1570, 0.0
    %v1635 = vmax.f32 %v1571, 0.0
    %v1636 = vmax.f32 %v1572, 0.0
    %v1637 = vmax.f32 %v1573, 0.0
    %v1638 = vmax.f32 %v1574, 0.0
    %v1639 = vmax.f32 %v1575, 0.0
    %v1640 = vmax.f32 %v1576, 0.0
    %v1641 = vmax.f32 %v1577, 0.0
    %v1642 = vmax.f32 %v1578, 0.0
    %v1643 = vmax.f32 %v1579, 0.0
    %v1644 = vmax.f32 %v1580, 0.0
    %v1645 = vmax.f32 %v1581, 0.0
    %v1646 = vmax.f32 %v1582, 0.0
    %v1647 = vmax.f32 %v1583, 0.0
    %v1648 = vmax.f32 %v1584, 0.0
    %v1649 = vmax.f32 %v1585, 0.0
    %v1650 = vmax.f32 %v1586, 0.0
    %v1651 = vmax.f32 %v1587, 0.0
    %v1652 = vmax.f32 %v1588, 0.0
    %v1653 = vmax.f32 %v1589, 0.0
    %v1654 = vmax.f32 %v1590, 0.0
    %v1655 = vmax.f32 %v1591, 0.0
    %v1656 = vmax.f32 %v1592, 0.0
    %v1657 = vmax.f32 %v1593, 0.0
    %v1658 = vmax.f32 %v1594, 0.0
    %v1659 = vmax.f32 %v1595, 0.0
    %v1660 = vmax.f32 %v1596, 0.0
    %v1661 = vmax.f32 %v1597, 0.0
    %v1662 = vmax.f32 %v1598, 0.0
    %v1663 = vmax.f32 %v1599, 0.0
    %v1664 = vmax.f32 %v1600, 0.0
    %v1665 = vmax.f32 %v1601, 0.0
    %v1666 = vmax.f32 %v1602, 0.0
    %v1667 = vmax.f32 %v1603, 0.0
    %v1668 = vmax.f32 %v1604, 0.0
    %v1669 = vmax.f32 %v1605, 0.0
    %v1670 = vmax.f32 %v1606, 0.0
    %v1671 = vmax.f32 %v1607, 0.0
    %v1672 = vmax.f32 %v1608, 0.0
    %v1673 = vmax.f32 %v1609, 0.0
    %v1674 = vmax.f32 %v1610, 0.0
    %v1675 = vmax.f32 %v1611, 0.0
    %v1676 = vmax.f32 %v1612, 0.0
    %v1677 = vmax.f32 %v1613, 0.0
    %v1678 = vmax.f32 %v1614, 0.0
    %v1679 = vmax.f32 %v1615, 0.0
    %v1680 = vpack.c.bf16 %v1617, %v1616
    %v1681 = vpack.c.bf16 %v1619, %v1618
    %v1682 = vpack.c.bf16 %v1621, %v1620
    %v1683 = vpack.c.bf16 %v1623, %v1622
    %v1684 = vpack.c.bf16 %v1625, %v1624
    %v1685 = vpack.c.bf16 %v1627, %v1626
    %v1686 = vpack.c.bf16 %v1629, %v1628
    %v1687 = vpack.c.bf16 %v1631, %v1630
    %v1688 = vpack.c.bf16 %v1633, %v1632
    %v1689 = vpack.c.bf16 %v1635, %v1634
    %v1690 = vpack.c.bf16 %v1637, %v1636
    %v1691 = vpack.c.bf16 %v1639, %v1638
    %v1692 = vpack.c.bf16 %v1641, %v1640
    %v1693 = vpack.c.bf16 %v1643, %v1642
    %v1694 = vpack.c.bf16 %v1645, %v1644
    %v1695 = vpack.c.bf16 %v1647, %v1646
    %v1696 = vpack.c.bf16 %v1649, %v1648
    %v1697 = vpack.c.bf16 %v1651, %v1650
    %v1698 = vpack.c.bf16 %v1653, %v1652
    %v1699 = vpack.c.bf16 %v1655, %v1654
    %v1700 = vpack.c.bf16 %v1657, %v1656
    %v1701 = vpack.c.bf16 %v1659, %v1658
    %v1702 = vpack.c.bf16 %v1661, %v1660
    %v1703 = vpack.c.bf16 %v1663, %v1662
    %v1704 = vpack.c.bf16 %v1665, %v1664
    %v1705 = vpack.c.bf16 %v1667, %v1666
    %v1706 = vpack.c.bf16 %v1669, %v1668
    %v1707 = vpack.c.bf16 %v1671, %v1670
    %v1708 = vpack.c.bf16 %v1673, %v1672
    %v1709 = vpack.c.bf16 %v1675, %v1674
    %v1710 = vpack.c.bf16 %v1677, %v1676
    %v1711 = vpack.c.bf16 %v1679, %v1678
    %1712 = vst [vmem:[%s7] sm:$0xff] %v1680
    %1713 = vst [vmem:[%s7 + $0x8] sm:$0xff] %v1681
    %1714 = vst [vmem:[%s7 + $0x10] sm:$0xff] %v1682
    %1715 = vst [vmem:[%s7 + $0x18] sm:$0xff] %v1683
    %1716 = vst [vmem:[%s7 + $0x20] sm:$0xff] %v1684
    %1717 = vst [vmem:[%s7 + $0x28] sm:$0xff] %v1685
    %1718 = vst [vmem:[%s7 + $0x30] sm:$0xff] %v1686
    %1719 = vst [vmem:[%s7 + $0x38] sm:$0xff] %v1687
    %1720 = vst [vmem:[%s7 + $0x40] sm:$0xff] %v1688
    %1721 = vst [vmem:[%s7 + $0x48] sm:$0xff] %v1689
    %1722 = vst [vmem:[%s7 + $0x50] sm:$0xff] %v1690
    %1723 = vst [vmem:[%s7 + $0x58] sm:$0xff] %v1691
    %1724 = vst [vmem:[%s7 + $0x60] sm:$0xff] %v1692
    %1725 = vst [vmem:[%s7 + $0x68] sm:$0xff] %v1693
    %1726 = vst [vmem:[%s7 + $0x70] sm:$0xff] %v1694
    %1727 = vst [vmem:[%s7 + $0x78] sm:$0xff] %v1695
    %1728 = vst [vmem:[%s7 + $0x80] sm:$0xff] %v1696
    %1729 = vst [vmem:[%s7 + $0x88] sm:$0xff] %v1697
    %1730 = vst [vmem:[%s7 + $0x90] sm:$0xff] %v1698
    %1731 = vst [vmem:[%s7 + $0x98] sm:$0xff] %v1699
    %1732 = vst [vmem:[%s7 + $0xa0] sm:$0xff] %v1700
    %1733 = vst [vmem:[%s7 + $0xa8] sm:$0xff] %v1701
    %1734 = vst [vmem:[%s7 + $0xb0] sm:$0xff] %v1702
    %1735 = vst [vmem:[%s7 + $0xb8] sm:$0xff] %v1703
    %1736 = vst [vmem:[%s7 + $0xc0] sm:$0xff] %v1704
    %1737 = vst [vmem:[%s7 + $0xc8] sm:$0xff] %v1705
    %1738 = vst [vmem:[%s7 + $0xd0] sm:$0xff] %v1706
    %1739 = vst [vmem:[%s7 + $0xd8] sm:$0xff] %v1707
    %1740 = vst [vmem:[%s7 + $0xe0] sm:$0xff] %v1708
    %1741 = vst [vmem:[%s7 + $0xe8] sm:$0xff] %v1709
    %1742 = vst [vmem:[%s7 + $0xf0] sm:$0xff] %v1710
    %1743 = vst [vmem:[%s7 + $0xf8] sm:$0xff] %v1711
  $region37: #{graphsage_forward.4} parent=0 // pred_fallthru
    _
  // Predicated region
  $region38: #{graphsage_forward.4} parent=0 // pred_check
    _
  $region39: #{graphsage_forward.4} parent=0 // pred_check_branch
    %1745 = sbr.rel (0) target = $region41
  $region40: #{graphsage_forward.4} parent=0 // pred_region
    _
  $region41: #{graphsage_forward.4} parent=0 // pred_fallthru
    _
  // Predicated region
  $region42: #{graphsage_forward.4} parent=0 // pred_check
    _
  $region43: #{graphsage_forward.4} parent=0 // pred_check_branch
    %1747 = sbr.rel (0) target = $region45
  $region44: #{graphsage_forward.4} parent=0 // pred_region
    _
  $region45: #{graphsage_forward.4} parent=0 // pred_fallthru
    _

// kernel: graphsage_forward.6
$region0: #{graphsage_forward.6}
  #allocation0 [shape = 'u32[]', space=smem, size = 0x4, offset = 0x4, fixed_abs, tag = 'smem constant byte address 0x4 - core index']
  #allocation1 [shape = 'u32[72,128]{1,0:T(1,128)}', space=vmem, size = 0x9000, scoped, tag = 'internal scratch']
  #allocation2 [shape = 'f32[256,128]{1,0:T(8,128)}', space=vmem, size = 0x20000, scoped, tag = 'scratch operand']
  %s0 = inlined_call_operand.vmem [shape: s8[256,256], index: 0, kind: input, shape index: {}]
  %s1 = inlined_call_operand.vmem [shape: bf16[256,128], index: 1, kind: input, shape index: {}]
  %s2 = inlined_call_operand.vmem [shape: f32[256,1], index: 2, kind: input, shape index: {}]
  %s3 = inlined_call_operand.vmem [shape: bf16[256,256], index: 3, kind: input, shape index: {}]
  %s4 = inlined_call_operand.vmem [shape: bf16[256,128], index: 4, kind: input, shape index: {}]
  %s5 = inlined_call_operand.vmem [shape: f32[1,128], index: 5, kind: input, shape index: {}]
  %s6 = inlined_call_operand.vmem [shape: bf16[256,128], index: 6, kind: output, shape index: {}]
  %s7 = sld [smem:[#allocation0]]
  $region42: #{graphsage_forward.6} parent=0
    _
  %s9 = ssub.s32 1, %s7
  %s10 = scalar_select 0, %s9, %s7
  // Predicated region
  $region2: #{graphsage_forward.6} parent=0 // pred_check
    _
  $region3: #{graphsage_forward.6} parent=0 // pred_check_branch
    %12 = sbr.rel (0) target = $region5
  $region4: #{graphsage_forward.6} parent=0 // pred_region
    _
  $region5: #{graphsage_forward.6} parent=0 // pred_fallthru
    _
  // Predicated region
  $region6: #{graphsage_forward.6} parent=0 // pred_check
    _
  $region7: #{graphsage_forward.6} parent=0 // pred_check_branch
    %14 = sbr.rel (0) target = $region9
  $region8: #{graphsage_forward.6} parent=0 // pred_region
    _
  $region9: #{graphsage_forward.6} parent=0 // pred_fallthru
    _
  // Predicated region
  $region10: #{graphsage_forward.6} parent=0 // pred_check
    _
  $region11: #{graphsage_forward.6} parent=0 // pred_check_branch
    %16 = sbr.rel (0) target = $region13
  $region12: #{graphsage_forward.6} parent=0 // pred_region
    _
  $region13: #{graphsage_forward.6} parent=0 // pred_fallthru
    _
  // Predicated region
  $region14: #{graphsage_forward.6} parent=0 // pred_check
    _
  $region15: #{graphsage_forward.6} parent=0 // pred_check_branch
    %18 = sbr.rel (0) target = $region17
  $region16: #{graphsage_forward.6} parent=0 // pred_region
    _
  $region17: #{graphsage_forward.6} parent=0 // pred_fallthru
    _
  // Predicated region
  $region18: #{graphsage_forward.6} parent=0 // pred_check
    _
  $region19: #{graphsage_forward.6} parent=0 // pred_check_branch
    %20 = sbr.rel (0) target = $region21
  $region20: #{graphsage_forward.6} parent=0 // pred_region
    _
  $region21: #{graphsage_forward.6} parent=0 // pred_fallthru
    _
  // Predicated region
  $region22: #{graphsage_forward.6} parent=0 // pred_check
    _
  $region23: #{graphsage_forward.6} parent=0 // pred_check_branch
    %22 = sbr.rel (0) target = $region25
  $region24: #{graphsage_forward.6} parent=0 // pred_region
    _
  $region25: #{graphsage_forward.6} parent=0 // pred_fallthru
    _
  %p23 = scmp.eq.s32.totalorder 0, 0
  // Predicated region
  $region26: #{graphsage_forward.6} parent=0 // pred_check
    %p24 = pneg %p23
  $region27: #{graphsage_forward.6} parent=0 // pred_check_branch
    %26 = sbr.rel (%p24) target = $region29
  $region28: #{graphsage_forward.6} parent=0 // pred_region
    %27 = vst [vmem:[#allocation2] sm:$0xff] 0.0
    %28 = vst [vmem:[#allocation2 + $0x8] sm:$0xff] 0.0
    %29 = vst [vmem:[#allocation2 + $0x10] sm:$0xff] 0.0
    %30 = vst [vmem:[#allocation2 + $0x18] sm:$0xff] 0.0
    %31 = vst [vmem:[#allocation2 + $0x20] sm:$0xff] 0.0
    %32 = vst [vmem:[#allocation2 + $0x28] sm:$0xff] 0.0
    %33 = vst [vmem:[#allocation2 + $0x30] sm:$0xff] 0.0
    %34 = vst [vmem:[#allocation2 + $0x38] sm:$0xff] 0.0
    %35 = vst [vmem:[#allocation2 + $0x40] sm:$0xff] 0.0
    %36 = vst [vmem:[#allocation2 + $0x48] sm:$0xff] 0.0
    %37 = vst [vmem:[#allocation2 + $0x50] sm:$0xff] 0.0
    %38 = vst [vmem:[#allocation2 + $0x58] sm:$0xff] 0.0
    %39 = vst [vmem:[#allocation2 + $0x60] sm:$0xff] 0.0
    %40 = vst [vmem:[#allocation2 + $0x68] sm:$0xff] 0.0
    %41 = vst [vmem:[#allocation2 + $0x70] sm:$0xff] 0.0
    %42 = vst [vmem:[#allocation2 + $0x78] sm:$0xff] 0.0
    %43 = vst [vmem:[#allocation2 + $0x80] sm:$0xff] 0.0
    %44 = vst [vmem:[#allocation2 + $0x88] sm:$0xff] 0.0
    %45 = vst [vmem:[#allocation2 + $0x90] sm:$0xff] 0.0
    %46 = vst [vmem:[#allocation2 + $0x98] sm:$0xff] 0.0
    %47 = vst [vmem:[#allocation2 + $0xa0] sm:$0xff] 0.0
    %48 = vst [vmem:[#allocation2 + $0xa8] sm:$0xff] 0.0
    %49 = vst [vmem:[#allocation2 + $0xb0] sm:$0xff] 0.0
    %50 = vst [vmem:[#allocation2 + $0xb8] sm:$0xff] 0.0
    %51 = vst [vmem:[#allocation2 + $0xc0] sm:$0xff] 0.0
    %52 = vst [vmem:[#allocation2 + $0xc8] sm:$0xff] 0.0
    %53 = vst [vmem:[#allocation2 + $0xd0] sm:$0xff] 0.0
    %54 = vst [vmem:[#allocation2 + $0xd8] sm:$0xff] 0.0
    %55 = vst [vmem:[#allocation2 + $0xe0] sm:$0xff] 0.0
    %56 = vst [vmem:[#allocation2 + $0xe8] sm:$0xff] 0.0
    %57 = vst [vmem:[#allocation2 + $0xf0] sm:$0xff] 0.0
    %58 = vst [vmem:[#allocation2 + $0xf8] sm:$0xff] 0.0
  $region29: #{graphsage_forward.6} parent=0 // pred_fallthru
    _
  %v59 = vld [vmem:[#allocation2] sm:$0xff]
  %v60 = vld [vmem:[#allocation2 + $0x8] sm:$0xff]
  %v61 = vld [vmem:[#allocation2 + $0x10] sm:$0xff]
  %v62 = vld [vmem:[#allocation2 + $0x18] sm:$0xff]
  %v63 = vld [vmem:[#allocation2 + $0x20] sm:$0xff]
  %v64 = vld [vmem:[#allocation2 + $0x28] sm:$0xff]
  %v65 = vld [vmem:[#allocation2 + $0x30] sm:$0xff]
  %v66 = vld [vmem:[#allocation2 + $0x38] sm:$0xff]
  %v67 = vld [vmem:[#allocation2 + $0x40] sm:$0xff]
  %v68 = vld [vmem:[#allocation2 + $0x48] sm:$0xff]
  %v69 = vld [vmem:[#allocation2 + $0x50] sm:$0xff]
  %v70 = vld [vmem:[#allocation2 + $0x58] sm:$0xff]
  %v71 = vld [vmem:[#allocation2 + $0x60] sm:$0xff]
  %v72 = vld [vmem:[#allocation2 + $0x68] sm:$0xff]
  %v73 = vld [vmem:[#allocation2 + $0x70] sm:$0xff]
  %v74 = vld [vmem:[#allocation2 + $0x78] sm:$0xff]
  %v75 = vld [vmem:[#allocation2 + $0x80] sm:$0xff]
  %v76 = vld [vmem:[#allocation2 + $0x88] sm:$0xff]
  %v77 = vld [vmem:[#allocation2 + $0x90] sm:$0xff]
  %v78 = vld [vmem:[#allocation2 + $0x98] sm:$0xff]
  %v79 = vld [vmem:[#allocation2 + $0xa0] sm:$0xff]
  %v80 = vld [vmem:[#allocation2 + $0xa8] sm:$0xff]
  %v81 = vld [vmem:[#allocation2 + $0xb0] sm:$0xff]
  %v82 = vld [vmem:[#allocation2 + $0xb8] sm:$0xff]
  %v83 = vld [vmem:[#allocation2 + $0xc0] sm:$0xff]
  %v84 = vld [vmem:[#allocation2 + $0xc8] sm:$0xff]
  %v85 = vld [vmem:[#allocation2 + $0xd0] sm:$0xff]
  %v86 = vld [vmem:[#allocation2 + $0xd8] sm:$0xff]
  %v87 = vld [vmem:[#allocation2 + $0xe0] sm:$0xff]
  %v88 = vld [vmem:[#allocation2 + $0xe8] sm:$0xff]
  %v89 = vld [vmem:[#allocation2 + $0xf0] sm:$0xff]
  %v90 = vld [vmem:[#allocation2 + $0xf8] sm:$0xff]
  %v91 = vld [vmem:[%s0] sm:$0xf]
  %v92 = vld [vmem:[%s0 + $0x4] sm:$0xf]
  %v93 = vld [vmem:[%s0 + $0x8] sm:$0xf]
  %v94 = vld [vmem:[%s0 + $0xc] sm:$0xf]
  %v95 = vld [vmem:[%s0 + $0x10] sm:$0xf]
  %v96 = vld [vmem:[%s0 + $0x14] sm:$0xf]
  %v97 = vld [vmem:[%s0 + $0x18] sm:$0xf]
  %v98 = vld [vmem:[%s0 + $0x1c] sm:$0xf]
  %v99 = vld [vmem:[%s0 + $0x20] sm:$0xf]
  %v100 = vld [vmem:[%s0 + $0x24] sm:$0xf]
  %v101 = vld [vmem:[%s0 + $0x28] sm:$0xf]
  %v102 = vld [vmem:[%s0 + $0x2c] sm:$0xf]
  %v103 = vld [vmem:[%s0 + $0x30] sm:$0xf]
  %v104 = vld [vmem:[%s0 + $0x34] sm:$0xf]
  %v105 = vld [vmem:[%s0 + $0x38] sm:$0xf]
  %v106 = vld [vmem:[%s0 + $0x3c] sm:$0xf]
  %v107 = vld [vmem:[%s0 + $0x40] sm:$0xf]
  %v108 = vld [vmem:[%s0 + $0x44] sm:$0xf]
  %v109 = vld [vmem:[%s0 + $0x48] sm:$0xf]
  %v110 = vld [vmem:[%s0 + $0x4c] sm:$0xf]
  %v111 = vld [vmem:[%s0 + $0x50] sm:$0xf]
  %v112 = vld [vmem:[%s0 + $0x54] sm:$0xf]
  %v113 = vld [vmem:[%s0 + $0x58] sm:$0xf]
  %v114 = vld [vmem:[%s0 + $0x5c] sm:$0xf]
  %v115 = vld [vmem:[%s0 + $0x60] sm:$0xf]
  %v116 = vld [vmem:[%s0 + $0x64] sm:$0xf]
  %v117 = vld [vmem:[%s0 + $0x68] sm:$0xf]
  %v118 = vld [vmem:[%s0 + $0x6c] sm:$0xf]
  %v119 = vld [vmem:[%s0 + $0x70] sm:$0xf]
  %v120 = vld [vmem:[%s0 + $0x74] sm:$0xf]
  %v121 = vld [vmem:[%s0 + $0x78] sm:$0xf]
  %v122 = vld [vmem:[%s0 + $0x7c] sm:$0xf]
  %v123 = vunpack.c.0.s8 %v91
  %v124 = vunpack.c.1.s8 %v91
  %v125 = vunpack.c.0.s8 %v92
  %v126 = vunpack.c.1.s8 %v92
  %v127 = vunpack.c.0.s8 %v93
  %v128 = vunpack.c.1.s8 %v93
  %v129 = vunpack.c.0.s8 %v94
  %v130 = vunpack.c.1.s8 %v94
  %v131 = vunpack.c.0.s8 %v95
  %v132 = vunpack.c.1.s8 %v95
  %v133 = vunpack.c.0.s8 %v96
  %v134 = vunpack.c.1.s8 %v96
  %v135 = vunpack.c.0.s8 %v97
  %v136 = vunpack.c.1.s8 %v97
  %v137 = vunpack.c.0.s8 %v98
  %v138 = vunpack.c.1.s8 %v98
  %v139 = vunpack.c.0.s8 %v99
  %v140 = vunpack.c.1.s8 %v99
  %v141 = vunpack.c.0.s8 %v100
  %v142 = vunpack.c.1.s8 %v100
  %v143 = vunpack.c.0.s8 %v101
  %v144 = vunpack.c.1.s8 %v101
  %v145 = vunpack.c.0.s8 %v102
  %v146 = vunpack.c.1.s8 %v102
  %v147 = vunpack.c.0.s8 %v103
  %v148 = vunpack.c.1.s8 %v103
  %v149 = vunpack.c.0.s8 %v104
  %v150 = vunpack.c.1.s8 %v104
  %v151 = vunpack.c.0.s8 %v105
  %v152 = vunpack.c.1.s8 %v105
  %v153 = vunpack.c.0.s8 %v106
  %v154 = vunpack.c.1.s8 %v106
  %v155 = vunpack.c.0.s8 %v107
  %v156 = vunpack.c.1.s8 %v107
  %v157 = vunpack.c.0.s8 %v108
  %v158 = vunpack.c.1.s8 %v108
  %v159 = vunpack.c.0.s8 %v109
  %v160 = vunpack.c.1.s8 %v109
  %v161 = vunpack.c.0.s8 %v110
  %v162 = vunpack.c.1.s8 %v110
  %v163 = vunpack.c.0.s8 %v111
  %v164 = vunpack.c.1.s8 %v111
  %v165 = vunpack.c.0.s8 %v112
  %v166 = vunpack.c.1.s8 %v112
  %v167 = vunpack.c.0.s8 %v113
  %v168 = vunpack.c.1.s8 %v113
  %v169 = vunpack.c.0.s8 %v114
  %v170 = vunpack.c.1.s8 %v114
  %v171 = vunpack.c.0.s8 %v115
  %v172 = vunpack.c.1.s8 %v115
  %v173 = vunpack.c.0.s8 %v116
  %v174 = vunpack.c.1.s8 %v116
  %v175 = vunpack.c.0.s8 %v117
  %v176 = vunpack.c.1.s8 %v117
  %v177 = vunpack.c.0.s8 %v118
  %v178 = vunpack.c.1.s8 %v118
  %v179 = vunpack.c.0.s8 %v119
  %v180 = vunpack.c.1.s8 %v119
  %v181 = vunpack.c.0.s8 %v120
  %v182 = vunpack.c.1.s8 %v120
  %v183 = vunpack.c.0.s8 %v121
  %v184 = vunpack.c.1.s8 %v121
  %v185 = vunpack.c.0.s8 %v122
  %v186 = vunpack.c.1.s8 %v122
  %v187 = vcvt.s32.f32 %v123
  %v188 = vcvt.s32.f32 %v124
  %v189 = vcvt.s32.f32 %v125
  %v190 = vcvt.s32.f32 %v126
  %v191 = vcvt.s32.f32 %v127
  %v192 = vcvt.s32.f32 %v128
  %v193 = vcvt.s32.f32 %v129
  %v194 = vcvt.s32.f32 %v130
  %v195 = vcvt.s32.f32 %v131
  %v196 = vcvt.s32.f32 %v132
  %v197 = vcvt.s32.f32 %v133
  %v198 = vcvt.s32.f32 %v134
  %v199 = vcvt.s32.f32 %v135
  %v200 = vcvt.s32.f32 %v136
  %v201 = vcvt.s32.f32 %v137
  %v202 = vcvt.s32.f32 %v138
  %v203 = vcvt.s32.f32 %v139
  %v204 = vcvt.s32.f32 %v140
  %v205 = vcvt.s32.f32 %v141
  %v206 = vcvt.s32.f32 %v142
  %v207 = vcvt.s32.f32 %v143
  %v208 = vcvt.s32.f32 %v144
  %v209 = vcvt.s32.f32 %v145
  %v210 = vcvt.s32.f32 %v146
  %v211 = vcvt.s32.f32 %v147
  %v212 = vcvt.s32.f32 %v148
  %v213 = vcvt.s32.f32 %v149
  %v214 = vcvt.s32.f32 %v150
  %v215 = vcvt.s32.f32 %v151
  %v216 = vcvt.s32.f32 %v152
  %v217 = vcvt.s32.f32 %v153
  %v218 = vcvt.s32.f32 %v154
  %v219 = vcvt.s32.f32 %v155
  %v220 = vcvt.s32.f32 %v156
  %v221 = vcvt.s32.f32 %v157
  %v222 = vcvt.s32.f32 %v158
  %v223 = vcvt.s32.f32 %v159
  %v224 = vcvt.s32.f32 %v160
  %v225 = vcvt.s32.f32 %v161
  %v226 = vcvt.s32.f32 %v162
  %v227 = vcvt.s32.f32 %v163
  %v228 = vcvt.s32.f32 %v164
  %v229 = vcvt.s32.f32 %v165
  %v230 = vcvt.s32.f32 %v166
  %v231 = vcvt.s32.f32 %v167
  %v232 = vcvt.s32.f32 %v168
  %v233 = vcvt.s32.f32 %v169
  %v234 = vcvt.s32.f32 %v170
  %v235 = vcvt.s32.f32 %v171
  %v236 = vcvt.s32.f32 %v172
  %v237 = vcvt.s32.f32 %v173
  %v238 = vcvt.s32.f32 %v174
  %v239 = vcvt.s32.f32 %v175
  %v240 = vcvt.s32.f32 %v176
  %v241 = vcvt.s32.f32 %v177
  %v242 = vcvt.s32.f32 %v178
  %v243 = vcvt.s32.f32 %v179
  %v244 = vcvt.s32.f32 %v180
  %v245 = vcvt.s32.f32 %v181
  %v246 = vcvt.s32.f32 %v182
  %v247 = vcvt.s32.f32 %v183
  %v248 = vcvt.s32.f32 %v184
  %v249 = vcvt.s32.f32 %v185
  %v250 = vcvt.s32.f32 %v186
  %v251 = vpack.c.bf16 %v189, %v187
  %v252 = vpack.c.bf16 %v190, %v188
  %v253 = vpack.c.bf16 %v193, %v191
  %v254 = vpack.c.bf16 %v194, %v192
  %v255 = vpack.c.bf16 %v197, %v195
  %v256 = vpack.c.bf16 %v198, %v196
  %v257 = vpack.c.bf16 %v201, %v199
  %v258 = vpack.c.bf16 %v202, %v200
  %v259 = vpack.c.bf16 %v205, %v203
  %v260 = vpack.c.bf16 %v206, %v204
  %v261 = vpack.c.bf16 %v209, %v207
  %v262 = vpack.c.bf16 %v210, %v208
  %v263 = vpack.c.bf16 %v213, %v211
  %v264 = vpack.c.bf16 %v214, %v212
  %v265 = vpack.c.bf16 %v217, %v215
  %v266 = vpack.c.bf16 %v218, %v216
  %v267 = vpack.c.bf16 %v221, %v219
  %v268 = vpack.c.bf16 %v222, %v220
  %v269 = vpack.c.bf16 %v225, %v223
  %v270 = vpack.c.bf16 %v226, %v224
  %v271 = vpack.c.bf16 %v229, %v227
  %v272 = vpack.c.bf16 %v230, %v228
  %v273 = vpack.c.bf16 %v233, %v231
  %v274 = vpack.c.bf16 %v234, %v232
  %v275 = vpack.c.bf16 %v237, %v235
  %v276 = vpack.c.bf16 %v238, %v236
  %v277 = vpack.c.bf16 %v241, %v239
  %v278 = vpack.c.bf16 %v242, %v240
  %v279 = vpack.c.bf16 %v245, %v243
  %v280 = vpack.c.bf16 %v246, %v244
  %v281 = vpack.c.bf16 %v249, %v247
  %v282 = vpack.c.bf16 %v250, %v248
  %v283 = vld [vmem:[%s1] sm:$0xf]
  %v284 = vld [vmem:[%s1 + $0x4] sm:$0xf]
  %v285 = vld [vmem:[%s1 + $0x8] sm:$0xf]
  %v286 = vld [vmem:[%s1 + $0xc] sm:$0xf]
  %v287 = vld [vmem:[%s1 + $0x10] sm:$0xf]
  %v288 = vld [vmem:[%s1 + $0x14] sm:$0xf]
  %v289 = vld [vmem:[%s1 + $0x18] sm:$0xf]
  %v290 = vld [vmem:[%s1 + $0x1c] sm:$0xf]
  %v291 = vld [vmem:[%s1 + $0x20] sm:$0xf]
  %v292 = vld [vmem:[%s1 + $0x24] sm:$0xf]
  %v293 = vld [vmem:[%s1 + $0x28] sm:$0xf]
  %v294 = vld [vmem:[%s1 + $0x2c] sm:$0xf]
  %v295 = vld [vmem:[%s1 + $0x30] sm:$0xf]
  %v296 = vld [vmem:[%s1 + $0x34] sm:$0xf]
  %v297 = vld [vmem:[%s1 + $0x38] sm:$0xf]
  %v298 = vld [vmem:[%s1 + $0x3c] sm:$0xf]
  %v299 = vld [vmem:[%s1 + $0x40] sm:$0xf]
  %v300 = vld [vmem:[%s1 + $0x44] sm:$0xf]
  %v301 = vld [vmem:[%s1 + $0x48] sm:$0xf]
  %v302 = vld [vmem:[%s1 + $0x4c] sm:$0xf]
  %v303 = vld [vmem:[%s1 + $0x50] sm:$0xf]
  %v304 = vld [vmem:[%s1 + $0x54] sm:$0xf]
  %v305 = vld [vmem:[%s1 + $0x58] sm:$0xf]
  %v306 = vld [vmem:[%s1 + $0x5c] sm:$0xf]
  %v307 = vld [vmem:[%s1 + $0x60] sm:$0xf]
  %v308 = vld [vmem:[%s1 + $0x64] sm:$0xf]
  %v309 = vld [vmem:[%s1 + $0x68] sm:$0xf]
  %v310 = vld [vmem:[%s1 + $0x6c] sm:$0xf]
  %v311 = vld [vmem:[%s1 + $0x70] sm:$0xf]
  %v312 = vld [vmem:[%s1 + $0x74] sm:$0xf]
  %v313 = vld [vmem:[%s1 + $0x78] sm:$0xf]
  %v314 = vld [vmem:[%s1 + $0x7c] sm:$0xf]
  %v347 = vunpack.c.l.b16 %v283
  %v348 = vunpack.c.l.b16 %v284
  %v349 = vunpack.c.l.b16 %v285
  %v350 = vunpack.c.l.b16 %v286
  %v351 = vunpack.c.l.b16 %v287
  %v352 = vunpack.c.l.b16 %v288
  %v353 = vunpack.c.l.b16 %v289
  %v354 = vunpack.c.l.b16 %v290
  %v355 = vunpack.c.l.b16 %v291
  %v356 = vunpack.c.l.b16 %v292
  %v357 = vunpack.c.l.b16 %v293
  %v358 = vunpack.c.l.b16 %v294
  %v359 = vunpack.c.l.b16 %v295
  %v360 = vunpack.c.l.b16 %v296
  %v361 = vunpack.c.l.b16 %v297
  %v362 = vunpack.c.l.b16 %v298
  %v363 = vunpack.c.l.b16 %v299
  %v364 = vunpack.c.l.b16 %v300
  %v365 = vunpack.c.l.b16 %v301
  %v366 = vunpack.c.l.b16 %v302
  %v367 = vunpack.c.l.b16 %v303
  %v368 = vunpack.c.l.b16 %v304
  %v369 = vunpack.c.l.b16 %v305
  %v370 = vunpack.c.l.b16 %v306
  %v371 = vunpack.c.l.b16 %v307
  %v372 = vunpack.c.l.b16 %v308
  %v373 = vunpack.c.l.b16 %v309
  %v374 = vunpack.c.l.b16 %v310
  %v375 = vunpack.c.l.b16 %v311
  %v376 = vunpack.c.l.b16 %v312
  %v377 = vunpack.c.l.b16 %v313
  %v378 = vunpack.c.l.b16 %v314
  %v379 = vpack.c.b16 %v348, %v347
  %v380 = vpack.c.b16 %v350, %v349
  %v381 = vpack.c.b16 %v352, %v351
  %v382 = vpack.c.b16 %v354, %v353
  %v383 = vpack.c.b16 %v356, %v355
  %v384 = vpack.c.b16 %v358, %v357
  %v385 = vpack.c.b16 %v360, %v359
  %v386 = vpack.c.b16 %v362, %v361
  %v387 = vpack.c.b16 %v364, %v363
  %v388 = vpack.c.b16 %v366, %v365
  %v389 = vpack.c.b16 %v368, %v367
  %v390 = vpack.c.b16 %v370, %v369
  %v391 = vpack.c.b16 %v372, %v371
  %v392 = vpack.c.b16 %v374, %v373
  %v393 = vpack.c.b16 %v376, %v375
  %v394 = vpack.c.b16 %v378, %v377
  %411 = vmatpush.bf16.msra.mxu0 %v386
  %412 = vmatpush.bf16.msra.mxu0 %v385
  %413 = vmatpush.bf16.msra.mxu0 %v384
  %414 = vmatpush.bf16.msra.mxu0 %v383
  %415 = vmatpush.bf16.msra.mxu0 %v382
  %416 = vmatpush.bf16.msra.mxu0 %v381
  %417 = vmatpush.bf16.msra.mxu0 %v380
  %418 = vmatpush.bf16.msra.mxu0 %v379
  %419 = vmatmul.bf16.gmra.mxu0 %v251
  %v420 = vpop.f32.mrf.mxu0
  %v421 = vadd.f32 0.0, %v420
  %v422 = vpop.f32.mrf.mxu0
  %v423 = vadd.f32 0.0, %v422
  %424 = vmatmul.bf16.gmra.mxu0 %v253
  %v425 = vpop.f32.mrf.mxu0
  %v426 = vadd.f32 0.0, %v425
  %v427 = vpop.f32.mrf.mxu0
  %v428 = vadd.f32 0.0, %v427
  %429 = vmatmul.bf16.gmra.mxu0 %v255
  %v430 = vpop.f32.mrf.mxu0
  %v431 = vadd.f32 0.0, %v430
  %v432 = vpop.f32.mrf.mxu0
  %v433 = vadd.f32 0.0, %v432
  %434 = vmatmul.bf16.gmra.mxu0 %v257
  %v435 = vpop.f32.mrf.mxu0
  %v436 = vadd.f32 0.0, %v435
  %v437 = vpop.f32.mrf.mxu0
  %v438 = vadd.f32 0.0, %v437
  %439 = vmatmul.bf16.gmra.mxu0 %v259
  %v440 = vpop.f32.mrf.mxu0
  %v441 = vadd.f32 0.0, %v440
  %v442 = vpop.f32.mrf.mxu0
  %v443 = vadd.f32 0.0, %v442
  %444 = vmatmul.bf16.gmra.mxu0 %v261
  %v445 = vpop.f32.mrf.mxu0
  %v446 = vadd.f32 0.0, %v445
  %v447 = vpop.f32.mrf.mxu0
  %v448 = vadd.f32 0.0, %v447
  %449 = vmatmul.bf16.gmra.mxu0 %v263
  %v450 = vpop.f32.mrf.mxu0
  %v451 = vadd.f32 0.0, %v450
  %v452 = vpop.f32.mrf.mxu0
  %v453 = vadd.f32 0.0, %v452
  %454 = vmatmul.bf16.gmra.mxu0 %v265
  %v455 = vpop.f32.mrf.mxu0
  %v456 = vadd.f32 0.0, %v455
  %v457 = vpop.f32.mrf.mxu0
  %v458 = vadd.f32 0.0, %v457
  %459 = vmatmul.bf16.gmra.mxu0 %v267
  %v460 = vpop.f32.mrf.mxu0
  %v461 = vadd.f32 0.0, %v460
  %v462 = vpop.f32.mrf.mxu0
  %v463 = vadd.f32 0.0, %v462
  %464 = vmatmul.bf16.gmra.mxu0 %v269
  %v465 = vpop.f32.mrf.mxu0
  %v466 = vadd.f32 0.0, %v465
  %v467 = vpop.f32.mrf.mxu0
  %v468 = vadd.f32 0.0, %v467
  %469 = vmatmul.bf16.gmra.mxu0 %v271
  %v470 = vpop.f32.mrf.mxu0
  %v471 = vadd.f32 0.0, %v470
  %v472 = vpop.f32.mrf.mxu0
  %v473 = vadd.f32 0.0, %v472
  %474 = vmatmul.bf16.gmra.mxu0 %v273
  %v475 = vpop.f32.mrf.mxu0
  %v476 = vadd.f32 0.0, %v475
  %v477 = vpop.f32.mrf.mxu0
  %v478 = vadd.f32 0.0, %v477
  %479 = vmatmul.bf16.gmra.mxu0 %v275
  %v480 = vpop.f32.mrf.mxu0
  %v481 = vadd.f32 0.0, %v480
  %v482 = vpop.f32.mrf.mxu0
  %v483 = vadd.f32 0.0, %v482
  %484 = vmatmul.bf16.gmra.mxu0 %v277
  %v485 = vpop.f32.mrf.mxu0
  %v486 = vadd.f32 0.0, %v485
  %v487 = vpop.f32.mrf.mxu0
  %v488 = vadd.f32 0.0, %v487
  %489 = vmatmul.bf16.gmra.mxu0 %v279
  %v490 = vpop.f32.mrf.mxu0
  %v491 = vadd.f32 0.0, %v490
  %v492 = vpop.f32.mrf.mxu0
  %v493 = vadd.f32 0.0, %v492
  %494 = vmatmul.bf16.gmra.mxu0 %v281
  %v495 = vpop.f32.mrf.mxu0
  %v496 = vadd.f32 0.0, %v495
  %v497 = vpop.f32.mrf.mxu0
  %v498 = vadd.f32 0.0, %v497
  %499 = vdwg.mxu0
  %500 = vmatpush.bf16.msra.mxu0 %v394
  %501 = vmatpush.bf16.msra.mxu0 %v393
  %502 = vmatpush.bf16.msra.mxu0 %v392
  %503 = vmatpush.bf16.msra.mxu0 %v391
  %504 = vmatpush.bf16.msra.mxu0 %v390
  %505 = vmatpush.bf16.msra.mxu0 %v389
  %506 = vmatpush.bf16.msra.mxu0 %v388
  %507 = vmatpush.bf16.msra.mxu0 %v387
  %508 = vmatmul.bf16.gmra.mxu0 %v252
  %v509 = vpop.f32.mrf.mxu0
  %v510 = vadd.f32 %v421, %v509
  %v511 = vpop.f32.mrf.mxu0
  %v512 = vadd.f32 %v423, %v511
  %513 = vmatmul.bf16.gmra.mxu0 %v254
  %v514 = vpop.f32.mrf.mxu0
  %v515 = vadd.f32 %v426, %v514
  %v516 = vpop.f32.mrf.mxu0
  %v517 = vadd.f32 %v428, %v516
  %518 = vmatmul.bf16.gmra.mxu0 %v256
  %v519 = vpop.f32.mrf.mxu0
  %v520 = vadd.f32 %v431, %v519
  %v521 = vpop.f32.mrf.mxu0
  %v522 = vadd.f32 %v433, %v521
  %523 = vmatmul.bf16.gmra.mxu0 %v258
  %v524 = vpop.f32.mrf.mxu0
  %v525 = vadd.f32 %v436, %v524
  %v526 = vpop.f32.mrf.mxu0
  %v527 = vadd.f32 %v438, %v526
  %528 = vmatmul.bf16.gmra.mxu0 %v260
  %v529 = vpop.f32.mrf.mxu0
  %v530 = vadd.f32 %v441, %v529
  %v531 = vpop.f32.mrf.mxu0
  %v532 = vadd.f32 %v443, %v531
  %533 = vmatmul.bf16.gmra.mxu0 %v262
  %v534 = vpop.f32.mrf.mxu0
  %v535 = vadd.f32 %v446, %v534
  %v536 = vpop.f32.mrf.mxu0
  %v537 = vadd.f32 %v448, %v536
  %538 = vmatmul.bf16.gmra.mxu0 %v264
  %v539 = vpop.f32.mrf.mxu0
  %v540 = vadd.f32 %v451, %v539
  %v541 = vpop.f32.mrf.mxu0
  %v542 = vadd.f32 %v453, %v541
  %543 = vmatmul.bf16.gmra.mxu0 %v266
  %v544 = vpop.f32.mrf.mxu0
  %v545 = vadd.f32 %v456, %v544
  %v546 = vpop.f32.mrf.mxu0
  %v547 = vadd.f32 %v458, %v546
  %548 = vmatmul.bf16.gmra.mxu0 %v268
  %v549 = vpop.f32.mrf.mxu0
  %v550 = vadd.f32 %v461, %v549
  %v551 = vpop.f32.mrf.mxu0
  %v552 = vadd.f32 %v463, %v551
  %553 = vmatmul.bf16.gmra.mxu0 %v270
  %v554 = vpop.f32.mrf.mxu0
  %v555 = vadd.f32 %v466, %v554
  %v556 = vpop.f32.mrf.mxu0
  %v557 = vadd.f32 %v468, %v556
  %558 = vmatmul.bf16.gmra.mxu0 %v272
  %v559 = vpop.f32.mrf.mxu0
  %v560 = vadd.f32 %v471, %v559
  %v561 = vpop.f32.mrf.mxu0
  %v562 = vadd.f32 %v473, %v561
  %563 = vmatmul.bf16.gmra.mxu0 %v274
  %v564 = vpop.f32.mrf.mxu0
  %v565 = vadd.f32 %v476, %v564
  %v566 = vpop.f32.mrf.mxu0
  %v567 = vadd.f32 %v478, %v566
  %568 = vmatmul.bf16.gmra.mxu0 %v276
  %v569 = vpop.f32.mrf.mxu0
  %v570 = vadd.f32 %v481, %v569
  %v571 = vpop.f32.mrf.mxu0
  %v572 = vadd.f32 %v483, %v571
  %573 = vmatmul.bf16.gmra.mxu0 %v278
  %v574 = vpop.f32.mrf.mxu0
  %v575 = vadd.f32 %v486, %v574
  %v576 = vpop.f32.mrf.mxu0
  %v577 = vadd.f32 %v488, %v576
  %578 = vmatmul.bf16.gmra.mxu0 %v280
  %v579 = vpop.f32.mrf.mxu0
  %v580 = vadd.f32 %v491, %v579
  %v581 = vpop.f32.mrf.mxu0
  %v582 = vadd.f32 %v493, %v581
  %583 = vmatmul.bf16.gmra.mxu0 %v282
  %v584 = vpop.f32.mrf.mxu0
  %v585 = vadd.f32 %v496, %v584
  %v586 = vpop.f32.mrf.mxu0
  %v587 = vadd.f32 %v498, %v586
  %588 = vdwg.mxu0
  %v589 = vadd.f32 %v59, %v510
  %v590 = vadd.f32 %v60, %v512
  %v591 = vadd.f32 %v61, %v515
  %v592 = vadd.f32 %v62, %v517
  %v593 = vadd.f32 %v63, %v520
  %v594 = vadd.f32 %v64, %v522
  %v595 = vadd.f32 %v65, %v525
  %v596 = vadd.f32 %v66, %v527
  %v597 = vadd.f32 %v67, %v530
  %v598 = vadd.f32 %v68, %v532
  %v599 = vadd.f32 %v69, %v535
  %v600 = vadd.f32 %v70, %v537
  %v601 = vadd.f32 %v71, %v540
  %v602 = vadd.f32 %v72, %v542
  %v603 = vadd.f32 %v73, %v545
  %v604 = vadd.f32 %v74, %v547
  %v605 = vadd.f32 %v75, %v550
  %v606 = vadd.f32 %v76, %v552
  %v607 = vadd.f32 %v77, %v555
  %v608 = vadd.f32 %v78, %v557
  %v609 = vadd.f32 %v79, %v560
  %v610 = vadd.f32 %v80, %v562
  %v611 = vadd.f32 %v81, %v565
  %v612 = vadd.f32 %v82, %v567
  %v613 = vadd.f32 %v83, %v570
  %v614 = vadd.f32 %v84, %v572
  %v615 = vadd.f32 %v85, %v575
  %v616 = vadd.f32 %v86, %v577
  %v617 = vadd.f32 %v87, %v580
  %v618 = vadd.f32 %v88, %v582
  %v619 = vadd.f32 %v89, %v585
  %v620 = vadd.f32 %v90, %v587
  %621 = vst [vmem:[#allocation2] sm:$0xff] %v589
  %622 = vst [vmem:[#allocation2 + $0x8] sm:$0xff] %v590
  %623 = vst [vmem:[#allocation2 + $0x10] sm:$0xff] %v591
  %624 = vst [vmem:[#allocation2 + $0x18] sm:$0xff] %v592
  %625 = vst [vmem:[#allocation2 + $0x20] sm:$0xff] %v593
  %626 = vst [vmem:[#allocation2 + $0x28] sm:$0xff] %v594
  %627 = vst [vmem:[#allocation2 + $0x30] sm:$0xff] %v595
  %628 = vst [vmem:[#allocation2 + $0x38] sm:$0xff] %v596
  %629 = vst [vmem:[#allocation2 + $0x40] sm:$0xff] %v597
  %630 = vst [vmem:[#allocation2 + $0x48] sm:$0xff] %v598
  %631 = vst [vmem:[#allocation2 + $0x50] sm:$0xff] %v599
  %632 = vst [vmem:[#allocation2 + $0x58] sm:$0xff] %v600
  %633 = vst [vmem:[#allocation2 + $0x60] sm:$0xff] %v601
  %634 = vst [vmem:[#allocation2 + $0x68] sm:$0xff] %v602
  %635 = vst [vmem:[#allocation2 + $0x70] sm:$0xff] %v603
  %636 = vst [vmem:[#allocation2 + $0x78] sm:$0xff] %v604
  %637 = vst [vmem:[#allocation2 + $0x80] sm:$0xff] %v605
  %638 = vst [vmem:[#allocation2 + $0x88] sm:$0xff] %v606
  %639 = vst [vmem:[#allocation2 + $0x90] sm:$0xff] %v607
  %640 = vst [vmem:[#allocation2 + $0x98] sm:$0xff] %v608
  %641 = vst [vmem:[#allocation2 + $0xa0] sm:$0xff] %v609
  %642 = vst [vmem:[#allocation2 + $0xa8] sm:$0xff] %v610
  %643 = vst [vmem:[#allocation2 + $0xb0] sm:$0xff] %v611
  %644 = vst [vmem:[#allocation2 + $0xb8] sm:$0xff] %v612
  %645 = vst [vmem:[#allocation2 + $0xc0] sm:$0xff] %v613
  %646 = vst [vmem:[#allocation2 + $0xc8] sm:$0xff] %v614
  %647 = vst [vmem:[#allocation2 + $0xd0] sm:$0xff] %v615
  %648 = vst [vmem:[#allocation2 + $0xd8] sm:$0xff] %v616
  %649 = vst [vmem:[#allocation2 + $0xe0] sm:$0xff] %v617
  %650 = vst [vmem:[#allocation2 + $0xe8] sm:$0xff] %v618
  %651 = vst [vmem:[#allocation2 + $0xf0] sm:$0xff] %v619
  %652 = vst [vmem:[#allocation2 + $0xf8] sm:$0xff] %v620
  // Predicated region
  $region30: #{graphsage_forward.6} parent=0 // pred_check
    %p653 = pneg %p23
  $region31: #{graphsage_forward.6} parent=0 // pred_check_branch
    %655 = sbr.rel (%p653) target = $region33
  $region32: #{graphsage_forward.6} parent=0 // pred_region
    %v656 = vld [vmem:[#allocation2] sm:$0xff]
    %v657 = vld [vmem:[#allocation2 + $0x8] sm:$0xff]
    %v658 = vld [vmem:[#allocation2 + $0x10] sm:$0xff]
    %v659 = vld [vmem:[#allocation2 + $0x18] sm:$0xff]
    %v660 = vld [vmem:[#allocation2 + $0x20] sm:$0xff]
    %v661 = vld [vmem:[#allocation2 + $0x28] sm:$0xff]
    %v662 = vld [vmem:[#allocation2 + $0x30] sm:$0xff]
    %v663 = vld [vmem:[#allocation2 + $0x38] sm:$0xff]
    %v664 = vld [vmem:[#allocation2 + $0x40] sm:$0xff]
    %v665 = vld [vmem:[#allocation2 + $0x48] sm:$0xff]
    %v666 = vld [vmem:[#allocation2 + $0x50] sm:$0xff]
    %v667 = vld [vmem:[#allocation2 + $0x58] sm:$0xff]
    %v668 = vld [vmem:[#allocation2 + $0x60] sm:$0xff]
    %v669 = vld [vmem:[#allocation2 + $0x68] sm:$0xff]
    %v670 = vld [vmem:[#allocation2 + $0x70] sm:$0xff]
    %v671 = vld [vmem:[#allocation2 + $0x78] sm:$0xff]
    %v672 = vld [vmem:[#allocation2 + $0x80] sm:$0xff]
    %v673 = vld [vmem:[#allocation2 + $0x88] sm:$0xff]
    %v674 = vld [vmem:[#allocation2 + $0x90] sm:$0xff]
    %v675 = vld [vmem:[#allocation2 + $0x98] sm:$0xff]
    %v676 = vld [vmem:[#allocation2 + $0xa0] sm:$0xff]
    %v677 = vld [vmem:[#allocation2 + $0xa8] sm:$0xff]
    %v678 = vld [vmem:[#allocation2 + $0xb0] sm:$0xff]
    %v679 = vld [vmem:[#allocation2 + $0xb8] sm:$0xff]
    %v680 = vld [vmem:[#allocation2 + $0xc0] sm:$0xff]
    %v681 = vld [vmem:[#allocation2 + $0xc8] sm:$0xff]
    %v682 = vld [vmem:[#allocation2 + $0xd0] sm:$0xff]
    %v683 = vld [vmem:[#allocation2 + $0xd8] sm:$0xff]
    %v684 = vld [vmem:[#allocation2 + $0xe0] sm:$0xff]
    %v685 = vld [vmem:[#allocation2 + $0xe8] sm:$0xff]
    %v686 = vld [vmem:[#allocation2 + $0xf0] sm:$0xff]
    %v687 = vld [vmem:[#allocation2 + $0xf8] sm:$0xff]
    %v688 = vld [vmem:[%s2] sm:$0xff]
    %v689 = vld [vmem:[%s2 + $0x8] sm:$0xff]
    %v690 = vld [vmem:[%s2 + $0x10] sm:$0xff]
    %v691 = vld [vmem:[%s2 + $0x18] sm:$0xff]
    %v692 = vld [vmem:[%s2 + $0x20] sm:$0xff]
    %v693 = vld [vmem:[%s2 + $0x28] sm:$0xff]
    %v694 = vld [vmem:[%s2 + $0x30] sm:$0xff]
    %v695 = vld [vmem:[%s2 + $0x38] sm:$0xff]
    %v696 = vld [vmem:[%s2 + $0x40] sm:$0xff]
    %v697 = vld [vmem:[%s2 + $0x48] sm:$0xff]
    %v698 = vld [vmem:[%s2 + $0x50] sm:$0xff]
    %v699 = vld [vmem:[%s2 + $0x58] sm:$0xff]
    %v700 = vld [vmem:[%s2 + $0x60] sm:$0xff]
    %v701 = vld [vmem:[%s2 + $0x68] sm:$0xff]
    %v702 = vld [vmem:[%s2 + $0x70] sm:$0xff]
    %v703 = vld [vmem:[%s2 + $0x78] sm:$0xff]
    %v704 = vld [vmem:[%s2 + $0x80] sm:$0xff]
    %v705 = vld [vmem:[%s2 + $0x88] sm:$0xff]
    %v706 = vld [vmem:[%s2 + $0x90] sm:$0xff]
    %v707 = vld [vmem:[%s2 + $0x98] sm:$0xff]
    %v708 = vld [vmem:[%s2 + $0xa0] sm:$0xff]
    %v709 = vld [vmem:[%s2 + $0xa8] sm:$0xff]
    %v710 = vld [vmem:[%s2 + $0xb0] sm:$0xff]
    %v711 = vld [vmem:[%s2 + $0xb8] sm:$0xff]
    %v712 = vld [vmem:[%s2 + $0xc0] sm:$0xff]
    %v713 = vld [vmem:[%s2 + $0xc8] sm:$0xff]
    %v714 = vld [vmem:[%s2 + $0xd0] sm:$0xff]
    %v715 = vld [vmem:[%s2 + $0xd8] sm:$0xff]
    %v716 = vld [vmem:[%s2 + $0xe0] sm:$0xff]
    %v717 = vld [vmem:[%s2 + $0xe8] sm:$0xff]
    %v718 = vld [vmem:[%s2 + $0xf0] sm:$0xff]
    %v719 = vld [vmem:[%s2 + $0xf8] sm:$0xff]
    %721 = vset.pattern.permute.xlu0 0
    %722 = vperm.xlu0 %721, %v688
    %v723 = vpop.permute.xlu0 %722
    %726 = vset.pattern.permute.xlu0 0
    %727 = vperm.xlu0 %726, %v689
    %v728 = vpop.permute.xlu0 %727
    %731 = vset.pattern.permute.xlu0 0
    %732 = vperm.xlu0 %731, %v690
    %v733 = vpop.permute.xlu0 %732
    %736 = vset.pattern.permute.xlu0 0
    %737 = vperm.xlu0 %736, %v691
    %v738 = vpop.permute.xlu0 %737
    %741 = vset.pattern.permute.xlu0 0
    %742 = vperm.xlu0 %741, %v692
    %v743 = vpop.permute.xlu0 %742
    %746 = vset.pattern.permute.xlu0 0
    %747 = vperm.xlu0 %746, %v693
    %v748 = vpop.permute.xlu0 %747
    %751 = vset.pattern.permute.xlu0 0
    %752 = vperm.xlu0 %751, %v694
    %v753 = vpop.permute.xlu0 %752
    %756 = vset.pattern.permute.xlu0 0
    %757 = vperm.xlu0 %756, %v695
    %v758 = vpop.permute.xlu0 %757
    %761 = vset.pattern.permute.xlu0 0
    %762 = vperm.xlu0 %761, %v696
    %v763 = vpop.permute.xlu0 %762
    %766 = vset.pattern.permute.xlu0 0
    %767 = vperm.xlu0 %766, %v697
    %v768 = vpop.permute.xlu0 %767
    %771 = vset.pattern.permute.xlu0 0
    %772 = vperm.xlu0 %771, %v698
    %v773 = vpop.permute.xlu0 %772
    %776 = vset.pattern.permute.xlu0 0
    %777 = vperm.xlu0 %776, %v699
    %v778 = vpop.permute.xlu0 %777
    %781 = vset.pattern.permute.xlu0 0
    %782 = vperm.xlu0 %781, %v700
    %v783 = vpop.permute.xlu0 %782
    %786 = vset.pattern.permute.xlu0 0
    %787 = vperm.xlu0 %786, %v701
    %v788 = vpop.permute.xlu0 %787
    %791 = vset.pattern.permute.xlu0 0
    %792 = vperm.xlu0 %791, %v702
    %v793 = vpop.permute.xlu0 %792
    %796 = vset.pattern.permute.xlu0 0
    %797 = vperm.xlu0 %796, %v703
    %v798 = vpop.permute.xlu0 %797
    %801 = vset.pattern.permute.xlu0 0
    %802 = vperm.xlu0 %801, %v704
    %v803 = vpop.permute.xlu0 %802
    %806 = vset.pattern.permute.xlu0 0
    %807 = vperm.xlu0 %806, %v705
    %v808 = vpop.permute.xlu0 %807
    %811 = vset.pattern.permute.xlu0 0
    %812 = vperm.xlu0 %811, %v706
    %v813 = vpop.permute.xlu0 %812
    %816 = vset.pattern.permute.xlu0 0
    %817 = vperm.xlu0 %816, %v707
    %v818 = vpop.permute.xlu0 %817
    %821 = vset.pattern.permute.xlu0 0
    %822 = vperm.xlu0 %821, %v708
    %v823 = vpop.permute.xlu0 %822
    %826 = vset.pattern.permute.xlu0 0
    %827 = vperm.xlu0 %826, %v709
    %v828 = vpop.permute.xlu0 %827
    %831 = vset.pattern.permute.xlu0 0
    %832 = vperm.xlu0 %831, %v710
    %v833 = vpop.permute.xlu0 %832
    %836 = vset.pattern.permute.xlu0 0
    %837 = vperm.xlu0 %836, %v711
    %v838 = vpop.permute.xlu0 %837
    %841 = vset.pattern.permute.xlu0 0
    %842 = vperm.xlu0 %841, %v712
    %v843 = vpop.permute.xlu0 %842
    %846 = vset.pattern.permute.xlu0 0
    %847 = vperm.xlu0 %846, %v713
    %v848 = vpop.permute.xlu0 %847
    %851 = vset.pattern.permute.xlu0 0
    %852 = vperm.xlu0 %851, %v714
    %v853 = vpop.permute.xlu0 %852
    %856 = vset.pattern.permute.xlu0 0
    %857 = vperm.xlu0 %856, %v715
    %v858 = vpop.permute.xlu0 %857
    %861 = vset.pattern.permute.xlu0 0
    %862 = vperm.xlu0 %861, %v716
    %v863 = vpop.permute.xlu0 %862
    %866 = vset.pattern.permute.xlu0 0
    %867 = vperm.xlu0 %866, %v717
    %v868 = vpop.permute.xlu0 %867
    %871 = vset.pattern.permute.xlu0 0
    %872 = vperm.xlu0 %871, %v718
    %v873 = vpop.permute.xlu0 %872
    %876 = vset.pattern.permute.xlu0 0
    %877 = vperm.xlu0 %876, %v719
    %v878 = vpop.permute.xlu0 %877
    %v880 = vmul.f32 %v656, %v723
    %v881 = vmul.f32 %v657, %v728
    %v882 = vmul.f32 %v658, %v733
    %v883 = vmul.f32 %v659, %v738
    %v884 = vmul.f32 %v660, %v743
    %v885 = vmul.f32 %v661, %v748
    %v886 = vmul.f32 %v662, %v753
    %v887 = vmul.f32 %v663, %v758
    %v888 = vmul.f32 %v664, %v763
    %v889 = vmul.f32 %v665, %v768
    %v890 = vmul.f32 %v666, %v773
    %v891 = vmul.f32 %v667, %v778
    %v892 = vmul.f32 %v668, %v783
    %v893 = vmul.f32 %v669, %v788
    %v894 = vmul.f32 %v670, %v793
    %v895 = vmul.f32 %v671, %v798
    %v896 = vmul.f32 %v672, %v803
    %v897 = vmul.f32 %v673, %v808
    %v898 = vmul.f32 %v674, %v813
    %v899 = vmul.f32 %v675, %v818
    %v900 = vmul.f32 %v676, %v823
    %v901 = vmul.f32 %v677, %v828
    %v902 = vmul.f32 %v678, %v833
    %v903 = vmul.f32 %v679, %v838
    %v904 = vmul.f32 %v680, %v843
    %v905 = vmul.f32 %v681, %v848
    %v906 = vmul.f32 %v682, %v853
    %v907 = vmul.f32 %v683, %v858
    %v908 = vmul.f32 %v684, %v863
    %v909 = vmul.f32 %v685, %v868
    %v910 = vmul.f32 %v686, %v873
    %v911 = vmul.f32 %v687, %v878
    %v912 = vld [vmem:[%s3] sm:$0xff]
    %v913 = vld [vmem:[%s3 + $0x8] sm:$0xff]
    %v914 = vld [vmem:[%s3 + $0x10] sm:$0xff]
    %v915 = vld [vmem:[%s3 + $0x18] sm:$0xff]
    %v916 = vld [vmem:[%s3 + $0x20] sm:$0xff]
    %v917 = vld [vmem:[%s3 + $0x28] sm:$0xff]
    %v918 = vld [vmem:[%s3 + $0x30] sm:$0xff]
    %v919 = vld [vmem:[%s3 + $0x38] sm:$0xff]
    %v920 = vld [vmem:[%s3 + $0x40] sm:$0xff]
    %v921 = vld [vmem:[%s3 + $0x48] sm:$0xff]
    %v922 = vld [vmem:[%s3 + $0x50] sm:$0xff]
    %v923 = vld [vmem:[%s3 + $0x58] sm:$0xff]
    %v924 = vld [vmem:[%s3 + $0x60] sm:$0xff]
    %v925 = vld [vmem:[%s3 + $0x68] sm:$0xff]
    %v926 = vld [vmem:[%s3 + $0x70] sm:$0xff]
    %v927 = vld [vmem:[%s3 + $0x78] sm:$0xff]
    %v928 = vld [vmem:[%s3 + $0x80] sm:$0xff]
    %v929 = vld [vmem:[%s3 + $0x88] sm:$0xff]
    %v930 = vld [vmem:[%s3 + $0x90] sm:$0xff]
    %v931 = vld [vmem:[%s3 + $0x98] sm:$0xff]
    %v932 = vld [vmem:[%s3 + $0xa0] sm:$0xff]
    %v933 = vld [vmem:[%s3 + $0xa8] sm:$0xff]
    %v934 = vld [vmem:[%s3 + $0xb0] sm:$0xff]
    %v935 = vld [vmem:[%s3 + $0xb8] sm:$0xff]
    %v936 = vld [vmem:[%s3 + $0xc0] sm:$0xff]
    %v937 = vld [vmem:[%s3 + $0xc8] sm:$0xff]
    %v938 = vld [vmem:[%s3 + $0xd0] sm:$0xff]
    %v939 = vld [vmem:[%s3 + $0xd8] sm:$0xff]
    %v940 = vld [vmem:[%s3 + $0xe0] sm:$0xff]
    %v941 = vld [vmem:[%s3 + $0xe8] sm:$0xff]
    %v942 = vld [vmem:[%s3 + $0xf0] sm:$0xff]
    %v943 = vld [vmem:[%s3 + $0xf8] sm:$0xff]
    %v944 = vld [vmem:[%s4] sm:$0xf]
    %v945 = vld [vmem:[%s4 + $0x4] sm:$0xf]
    %v946 = vld [vmem:[%s4 + $0x8] sm:$0xf]
    %v947 = vld [vmem:[%s4 + $0xc] sm:$0xf]
    %v948 = vld [vmem:[%s4 + $0x10] sm:$0xf]
    %v949 = vld [vmem:[%s4 + $0x14] sm:$0xf]
    %v950 = vld [vmem:[%s4 + $0x18] sm:$0xf]
    %v951 = vld [vmem:[%s4 + $0x1c] sm:$0xf]
    %v952 = vld [vmem:[%s4 + $0x20] sm:$0xf]
    %v953 = vld [vmem:[%s4 + $0x24] sm:$0xf]
    %v954 = vld [vmem:[%s4 + $0x28] sm:$0xf]
    %v955 = vld [vmem:[%s4 + $0x2c] sm:$0xf]
    %v956 = vld [vmem:[%s4 + $0x30] sm:$0xf]
    %v957 = vld [vmem:[%s4 + $0x34] sm:$0xf]
    %v958 = vld [vmem:[%s4 + $0x38] sm:$0xf]
    %v959 = vld [vmem:[%s4 + $0x3c] sm:$0xf]
    %v960 = vld [vmem:[%s4 + $0x40] sm:$0xf]
    %v961 = vld [vmem:[%s4 + $0x44] sm:$0xf]
    %v962 = vld [vmem:[%s4 + $0x48] sm:$0xf]
    %v963 = vld [vmem:[%s4 + $0x4c] sm:$0xf]
    %v964 = vld [vmem:[%s4 + $0x50] sm:$0xf]
    %v965 = vld [vmem:[%s4 + $0x54] sm:$0xf]
    %v966 = vld [vmem:[%s4 + $0x58] sm:$0xf]
    %v967 = vld [vmem:[%s4 + $0x5c] sm:$0xf]
    %v968 = vld [vmem:[%s4 + $0x60] sm:$0xf]
    %v969 = vld [vmem:[%s4 + $0x64] sm:$0xf]
    %v970 = vld [vmem:[%s4 + $0x68] sm:$0xf]
    %v971 = vld [vmem:[%s4 + $0x6c] sm:$0xf]
    %v972 = vld [vmem:[%s4 + $0x70] sm:$0xf]
    %v973 = vld [vmem:[%s4 + $0x74] sm:$0xf]
    %v974 = vld [vmem:[%s4 + $0x78] sm:$0xf]
    %v975 = vld [vmem:[%s4 + $0x7c] sm:$0xf]
    %v1008 = vunpack.c.l.b16 %v912
    %v1009 = vunpack.c.h.b16 %v912
    %v1010 = vunpack.c.l.b16 %v913
    %v1011 = vunpack.c.h.b16 %v913
    %v1012 = vunpack.c.l.b16 %v914
    %v1013 = vunpack.c.h.b16 %v914
    %v1014 = vunpack.c.l.b16 %v915
    %v1015 = vunpack.c.h.b16 %v915
    %v1016 = vunpack.c.l.b16 %v916
    %v1017 = vunpack.c.h.b16 %v916
    %v1018 = vunpack.c.l.b16 %v917
    %v1019 = vunpack.c.h.b16 %v917
    %v1020 = vunpack.c.l.b16 %v918
    %v1021 = vunpack.c.h.b16 %v918
    %v1022 = vunpack.c.l.b16 %v919
    %v1023 = vunpack.c.h.b16 %v919
    %v1024 = vunpack.c.l.b16 %v920
    %v1025 = vunpack.c.h.b16 %v920
    %v1026 = vunpack.c.l.b16 %v921
    %v1027 = vunpack.c.h.b16 %v921
    %v1028 = vunpack.c.l.b16 %v922
    %v1029 = vunpack.c.h.b16 %v922
    %v1030 = vunpack.c.l.b16 %v923
    %v1031 = vunpack.c.h.b16 %v923
    %v1032 = vunpack.c.l.b16 %v924
    %v1033 = vunpack.c.h.b16 %v924
    %v1034 = vunpack.c.l.b16 %v925
    %v1035 = vunpack.c.h.b16 %v925
    %v1036 = vunpack.c.l.b16 %v926
    %v1037 = vunpack.c.h.b16 %v926
    %v1038 = vunpack.c.l.b16 %v927
    %v1039 = vunpack.c.h.b16 %v927
    %v1040 = vunpack.c.l.b16 %v928
    %v1041 = vunpack.c.h.b16 %v928
    %v1042 = vunpack.c.l.b16 %v929
    %v1043 = vunpack.c.h.b16 %v929
    %v1044 = vunpack.c.l.b16 %v930
    %v1045 = vunpack.c.h.b16 %v930
    %v1046 = vunpack.c.l.b16 %v931
    %v1047 = vunpack.c.h.b16 %v931
    %v1048 = vunpack.c.l.b16 %v932
    %v1049 = vunpack.c.h.b16 %v932
    %v1050 = vunpack.c.l.b16 %v933
    %v1051 = vunpack.c.h.b16 %v933
    %v1052 = vunpack.c.l.b16 %v934
    %v1053 = vunpack.c.h.b16 %v934
    %v1054 = vunpack.c.l.b16 %v935
    %v1055 = vunpack.c.h.b16 %v935
    %v1056 = vunpack.c.l.b16 %v936
    %v1057 = vunpack.c.h.b16 %v936
    %v1058 = vunpack.c.l.b16 %v937
    %v1059 = vunpack.c.h.b16 %v937
    %v1060 = vunpack.c.l.b16 %v938
    %v1061 = vunpack.c.h.b16 %v938
    %v1062 = vunpack.c.l.b16 %v939
    %v1063 = vunpack.c.h.b16 %v939
    %v1064 = vunpack.c.l.b16 %v940
    %v1065 = vunpack.c.h.b16 %v940
    %v1066 = vunpack.c.l.b16 %v941
    %v1067 = vunpack.c.h.b16 %v941
    %v1068 = vunpack.c.l.b16 %v942
    %v1069 = vunpack.c.h.b16 %v942
    %v1070 = vunpack.c.l.b16 %v943
    %v1071 = vunpack.c.h.b16 %v943
    %v1072 = vpack.c.b16 %v1010, %v1008
    %v1073 = vpack.c.b16 %v1011, %v1009
    %v1074 = vpack.c.b16 %v1014, %v1012
    %v1075 = vpack.c.b16 %v1015, %v1013
    %v1076 = vpack.c.b16 %v1018, %v1016
    %v1077 = vpack.c.b16 %v1019, %v1017
    %v1078 = vpack.c.b16 %v1022, %v1020
    %v1079 = vpack.c.b16 %v1023, %v1021
    %v1080 = vpack.c.b16 %v1026, %v1024
    %v1081 = vpack.c.b16 %v1027, %v1025
    %v1082 = vpack.c.b16 %v1030, %v1028
    %v1083 = vpack.c.b16 %v1031, %v1029
    %v1084 = vpack.c.b16 %v1034, %v1032
    %v1085 = vpack.c.b16 %v1035, %v1033
    %v1086 = vpack.c.b16 %v1038, %v1036
    %v1087 = vpack.c.b16 %v1039, %v1037
    %v1088 = vpack.c.b16 %v1042, %v1040
    %v1089 = vpack.c.b16 %v1043, %v1041
    %v1090 = vpack.c.b16 %v1046, %v1044
    %v1091 = vpack.c.b16 %v1047, %v1045
    %v1092 = vpack.c.b16 %v1050, %v1048
    %v1093 = vpack.c.b16 %v1051, %v1049
    %v1094 = vpack.c.b16 %v1054, %v1052
    %v1095 = vpack.c.b16 %v1055, %v1053
    %v1096 = vpack.c.b16 %v1058, %v1056
    %v1097 = vpack.c.b16 %v1059, %v1057
    %v1098 = vpack.c.b16 %v1062, %v1060
    %v1099 = vpack.c.b16 %v1063, %v1061
    %v1100 = vpack.c.b16 %v1066, %v1064
    %v1101 = vpack.c.b16 %v1067, %v1065
    %v1102 = vpack.c.b16 %v1070, %v1068
    %v1103 = vpack.c.b16 %v1071, %v1069
    %v1168 = vunpack.c.l.b16 %v944
    %v1169 = vunpack.c.l.b16 %v945
    %v1170 = vunpack.c.l.b16 %v946
    %v1171 = vunpack.c.l.b16 %v947
    %v1172 = vunpack.c.l.b16 %v948
    %v1173 = vunpack.c.l.b16 %v949
    %v1174 = vunpack.c.l.b16 %v950
    %v1175 = vunpack.c.l.b16 %v951
    %v1176 = vunpack.c.l.b16 %v952
    %v1177 = vunpack.c.l.b16 %v953
    %v1178 = vunpack.c.l.b16 %v954
    %v1179 = vunpack.c.l.b16 %v955
    %v1180 = vunpack.c.l.b16 %v956
    %v1181 = vunpack.c.l.b16 %v957
    %v1182 = vunpack.c.l.b16 %v958
    %v1183 = vunpack.c.l.b16 %v959
    %v1184 = vunpack.c.l.b16 %v960
    %v1185 = vunpack.c.l.b16 %v961
    %v1186 = vunpack.c.l.b16 %v962
    %v1187 = vunpack.c.l.b16 %v963
    %v1188 = vunpack.c.l.b16 %v964
    %v1189 = vunpack.c.l.b16 %v965
    %v1190 = vunpack.c.l.b16 %v966
    %v1191 = vunpack.c.l.b16 %v967
    %v1192 = vunpack.c.l.b16 %v968
    %v1193 = vunpack.c.l.b16 %v969
    %v1194 = vunpack.c.l.b16 %v970
    %v1195 = vunpack.c.l.b16 %v971
    %v1196 = vunpack.c.l.b16 %v972
    %v1197 = vunpack.c.l.b16 %v973
    %v1198 = vunpack.c.l.b16 %v974
    %v1199 = vunpack.c.l.b16 %v975
    %v1200 = vpack.c.b16 %v1169, %v1168
    %v1201 = vpack.c.b16 %v1171, %v1170
    %v1202 = vpack.c.b16 %v1173, %v1172
    %v1203 = vpack.c.b16 %v1175, %v1174
    %v1204 = vpack.c.b16 %v1177, %v1176
    %v1205 = vpack.c.b16 %v1179, %v1178
    %v1206 = vpack.c.b16 %v1181, %v1180
    %v1207 = vpack.c.b16 %v1183, %v1182
    %v1208 = vpack.c.b16 %v1185, %v1184
    %v1209 = vpack.c.b16 %v1187, %v1186
    %v1210 = vpack.c.b16 %v1189, %v1188
    %v1211 = vpack.c.b16 %v1191, %v1190
    %v1212 = vpack.c.b16 %v1193, %v1192
    %v1213 = vpack.c.b16 %v1195, %v1194
    %v1214 = vpack.c.b16 %v1197, %v1196
    %v1215 = vpack.c.b16 %v1199, %v1198
    %1232 = vmatpush.bf16.msra.mxu0 %v1207
    %1233 = vmatpush.bf16.msra.mxu0 %v1206
    %1234 = vmatpush.bf16.msra.mxu0 %v1205
    %1235 = vmatpush.bf16.msra.mxu0 %v1204
    %1236 = vmatpush.bf16.msra.mxu0 %v1203
    %1237 = vmatpush.bf16.msra.mxu0 %v1202
    %1238 = vmatpush.bf16.msra.mxu0 %v1201
    %1239 = vmatpush.bf16.msra.mxu0 %v1200
    %1240 = vmatmul.bf16.gmra.mxu0 %v1072
    %v1241 = vpop.f32.mrf.mxu0
    %v1242 = vadd.f32 0.0, %v1241
    %v1243 = vpop.f32.mrf.mxu0
    %v1244 = vadd.f32 0.0, %v1243
    %1245 = vmatmul.bf16.gmra.mxu0 %v1074
    %v1246 = vpop.f32.mrf.mxu0
    %v1247 = vadd.f32 0.0, %v1246
    %v1248 = vpop.f32.mrf.mxu0
    %v1249 = vadd.f32 0.0, %v1248
    %1250 = vmatmul.bf16.gmra.mxu0 %v1076
    %v1251 = vpop.f32.mrf.mxu0
    %v1252 = vadd.f32 0.0, %v1251
    %v1253 = vpop.f32.mrf.mxu0
    %v1254 = vadd.f32 0.0, %v1253
    %1255 = vmatmul.bf16.gmra.mxu0 %v1078
    %v1256 = vpop.f32.mrf.mxu0
    %v1257 = vadd.f32 0.0, %v1256
    %v1258 = vpop.f32.mrf.mxu0
    %v1259 = vadd.f32 0.0, %v1258
    %1260 = vmatmul.bf16.gmra.mxu0 %v1080
    %v1261 = vpop.f32.mrf.mxu0
    %v1262 = vadd.f32 0.0, %v1261
    %v1263 = vpop.f32.mrf.mxu0
    %v1264 = vadd.f32 0.0, %v1263
    %1265 = vmatmul.bf16.gmra.mxu0 %v1082
    %v1266 = vpop.f32.mrf.mxu0
    %v1267 = vadd.f32 0.0, %v1266
    %v1268 = vpop.f32.mrf.mxu0
    %v1269 = vadd.f32 0.0, %v1268
    %1270 = vmatmul.bf16.gmra.mxu0 %v1084
    %v1271 = vpop.f32.mrf.mxu0
    %v1272 = vadd.f32 0.0, %v1271
    %v1273 = vpop.f32.mrf.mxu0
    %v1274 = vadd.f32 0.0, %v1273
    %1275 = vmatmul.bf16.gmra.mxu0 %v1086
    %v1276 = vpop.f32.mrf.mxu0
    %v1277 = vadd.f32 0.0, %v1276
    %v1278 = vpop.f32.mrf.mxu0
    %v1279 = vadd.f32 0.0, %v1278
    %1280 = vmatmul.bf16.gmra.mxu0 %v1088
    %v1281 = vpop.f32.mrf.mxu0
    %v1282 = vadd.f32 0.0, %v1281
    %v1283 = vpop.f32.mrf.mxu0
    %v1284 = vadd.f32 0.0, %v1283
    %1285 = vmatmul.bf16.gmra.mxu0 %v1090
    %v1286 = vpop.f32.mrf.mxu0
    %v1287 = vadd.f32 0.0, %v1286
    %v1288 = vpop.f32.mrf.mxu0
    %v1289 = vadd.f32 0.0, %v1288
    %1290 = vmatmul.bf16.gmra.mxu0 %v1092
    %v1291 = vpop.f32.mrf.mxu0
    %v1292 = vadd.f32 0.0, %v1291
    %v1293 = vpop.f32.mrf.mxu0
    %v1294 = vadd.f32 0.0, %v1293
    %1295 = vmatmul.bf16.gmra.mxu0 %v1094
    %v1296 = vpop.f32.mrf.mxu0
    %v1297 = vadd.f32 0.0, %v1296
    %v1298 = vpop.f32.mrf.mxu0
    %v1299 = vadd.f32 0.0, %v1298
    %1300 = vmatmul.bf16.gmra.mxu0 %v1096
    %v1301 = vpop.f32.mrf.mxu0
    %v1302 = vadd.f32 0.0, %v1301
    %v1303 = vpop.f32.mrf.mxu0
    %v1304 = vadd.f32 0.0, %v1303
    %1305 = vmatmul.bf16.gmra.mxu0 %v1098
    %v1306 = vpop.f32.mrf.mxu0
    %v1307 = vadd.f32 0.0, %v1306
    %v1308 = vpop.f32.mrf.mxu0
    %v1309 = vadd.f32 0.0, %v1308
    %1310 = vmatmul.bf16.gmra.mxu0 %v1100
    %v1311 = vpop.f32.mrf.mxu0
    %v1312 = vadd.f32 0.0, %v1311
    %v1313 = vpop.f32.mrf.mxu0
    %v1314 = vadd.f32 0.0, %v1313
    %1315 = vmatmul.bf16.gmra.mxu0 %v1102
    %v1316 = vpop.f32.mrf.mxu0
    %v1317 = vadd.f32 0.0, %v1316
    %v1318 = vpop.f32.mrf.mxu0
    %v1319 = vadd.f32 0.0, %v1318
    %1320 = vdwg.mxu0
    %1321 = vmatpush.bf16.msra.mxu0 %v1215
    %1322 = vmatpush.bf16.msra.mxu0 %v1214
    %1323 = vmatpush.bf16.msra.mxu0 %v1213
    %1324 = vmatpush.bf16.msra.mxu0 %v1212
    %1325 = vmatpush.bf16.msra.mxu0 %v1211
    %1326 = vmatpush.bf16.msra.mxu0 %v1210
    %1327 = vmatpush.bf16.msra.mxu0 %v1209
    %1328 = vmatpush.bf16.msra.mxu0 %v1208
    %1329 = vmatmul.bf16.gmra.mxu0 %v1073
    %v1330 = vpop.f32.mrf.mxu0
    %v1331 = vadd.f32 %v1242, %v1330
    %v1332 = vpop.f32.mrf.mxu0
    %v1333 = vadd.f32 %v1244, %v1332
    %1334 = vmatmul.bf16.gmra.mxu0 %v1075
    %v1335 = vpop.f32.mrf.mxu0
    %v1336 = vadd.f32 %v1247, %v1335
    %v1337 = vpop.f32.mrf.mxu0
    %v1338 = vadd.f32 %v1249, %v1337
    %1339 = vmatmul.bf16.gmra.mxu0 %v1077
    %v1340 = vpop.f32.mrf.mxu0
    %v1341 = vadd.f32 %v1252, %v1340
    %v1342 = vpop.f32.mrf.mxu0
    %v1343 = vadd.f32 %v1254, %v1342
    %1344 = vmatmul.bf16.gmra.mxu0 %v1079
    %v1345 = vpop.f32.mrf.mxu0
    %v1346 = vadd.f32 %v1257, %v1345
    %v1347 = vpop.f32.mrf.mxu0
    %v1348 = vadd.f32 %v1259, %v1347
    %1349 = vmatmul.bf16.gmra.mxu0 %v1081
    %v1350 = vpop.f32.mrf.mxu0
    %v1351 = vadd.f32 %v1262, %v1350
    %v1352 = vpop.f32.mrf.mxu0
    %v1353 = vadd.f32 %v1264, %v1352
    %1354 = vmatmul.bf16.gmra.mxu0 %v1083
    %v1355 = vpop.f32.mrf.mxu0
    %v1356 = vadd.f32 %v1267, %v1355
    %v1357 = vpop.f32.mrf.mxu0
    %v1358 = vadd.f32 %v1269, %v1357
    %1359 = vmatmul.bf16.gmra.mxu0 %v1085
    %v1360 = vpop.f32.mrf.mxu0
    %v1361 = vadd.f32 %v1272, %v1360
    %v1362 = vpop.f32.mrf.mxu0
    %v1363 = vadd.f32 %v1274, %v1362
    %1364 = vmatmul.bf16.gmra.mxu0 %v1087
    %v1365 = vpop.f32.mrf.mxu0
    %v1366 = vadd.f32 %v1277, %v1365
    %v1367 = vpop.f32.mrf.mxu0
    %v1368 = vadd.f32 %v1279, %v1367
    %1369 = vmatmul.bf16.gmra.mxu0 %v1089
    %v1370 = vpop.f32.mrf.mxu0
    %v1371 = vadd.f32 %v1282, %v1370
    %v1372 = vpop.f32.mrf.mxu0
    %v1373 = vadd.f32 %v1284, %v1372
    %1374 = vmatmul.bf16.gmra.mxu0 %v1091
    %v1375 = vpop.f32.mrf.mxu0
    %v1376 = vadd.f32 %v1287, %v1375
    %v1377 = vpop.f32.mrf.mxu0
    %v1378 = vadd.f32 %v1289, %v1377
    %1379 = vmatmul.bf16.gmra.mxu0 %v1093
    %v1380 = vpop.f32.mrf.mxu0
    %v1381 = vadd.f32 %v1292, %v1380
    %v1382 = vpop.f32.mrf.mxu0
    %v1383 = vadd.f32 %v1294, %v1382
    %1384 = vmatmul.bf16.gmra.mxu0 %v1095
    %v1385 = vpop.f32.mrf.mxu0
    %v1386 = vadd.f32 %v1297, %v1385
    %v1387 = vpop.f32.mrf.mxu0
    %v1388 = vadd.f32 %v1299, %v1387
    %1389 = vmatmul.bf16.gmra.mxu0 %v1097
    %v1390 = vpop.f32.mrf.mxu0
    %v1391 = vadd.f32 %v1302, %v1390
    %v1392 = vpop.f32.mrf.mxu0
    %v1393 = vadd.f32 %v1304, %v1392
    %1394 = vmatmul.bf16.gmra.mxu0 %v1099
    %v1395 = vpop.f32.mrf.mxu0
    %v1396 = vadd.f32 %v1307, %v1395
    %v1397 = vpop.f32.mrf.mxu0
    %v1398 = vadd.f32 %v1309, %v1397
    %1399 = vmatmul.bf16.gmra.mxu0 %v1101
    %v1400 = vpop.f32.mrf.mxu0
    %v1401 = vadd.f32 %v1312, %v1400
    %v1402 = vpop.f32.mrf.mxu0
    %v1403 = vadd.f32 %v1314, %v1402
    %1404 = vmatmul.bf16.gmra.mxu0 %v1103
    %v1405 = vpop.f32.mrf.mxu0
    %v1406 = vadd.f32 %v1317, %v1405
    %v1407 = vpop.f32.mrf.mxu0
    %v1408 = vadd.f32 %v1319, %v1407
    %1409 = vdwg.mxu0
    %v1410 = vadd.f32 %v880, %v1331
    %v1411 = vadd.f32 %v881, %v1333
    %v1412 = vadd.f32 %v882, %v1336
    %v1413 = vadd.f32 %v883, %v1338
    %v1414 = vadd.f32 %v884, %v1341
    %v1415 = vadd.f32 %v885, %v1343
    %v1416 = vadd.f32 %v886, %v1346
    %v1417 = vadd.f32 %v887, %v1348
    %v1418 = vadd.f32 %v888, %v1351
    %v1419 = vadd.f32 %v889, %v1353
    %v1420 = vadd.f32 %v890, %v1356
    %v1421 = vadd.f32 %v891, %v1358
    %v1422 = vadd.f32 %v892, %v1361
    %v1423 = vadd.f32 %v893, %v1363
    %v1424 = vadd.f32 %v894, %v1366
    %v1425 = vadd.f32 %v895, %v1368
    %v1426 = vadd.f32 %v896, %v1371
    %v1427 = vadd.f32 %v897, %v1373
    %v1428 = vadd.f32 %v898, %v1376
    %v1429 = vadd.f32 %v899, %v1378
    %v1430 = vadd.f32 %v900, %v1381
    %v1431 = vadd.f32 %v901, %v1383
    %v1432 = vadd.f32 %v902, %v1386
    %v1433 = vadd.f32 %v903, %v1388
    %v1434 = vadd.f32 %v904, %v1391
    %v1435 = vadd.f32 %v905, %v1393
    %v1436 = vadd.f32 %v906, %v1396
    %v1437 = vadd.f32 %v907, %v1398
    %v1438 = vadd.f32 %v908, %v1401
    %v1439 = vadd.f32 %v909, %v1403
    %v1440 = vadd.f32 %v910, %v1406
    %v1441 = vadd.f32 %v911, %v1408
    %v1442 = vld [vmem:[%s5] sm:$0x1]
    %v1444 = vperm.slane %v1442, 0
    %v1446 = vadd.f32 %v1410, %v1444
    %v1447 = vadd.f32 %v1411, %v1444
    %v1448 = vadd.f32 %v1412, %v1444
    %v1449 = vadd.f32 %v1413, %v1444
    %v1450 = vadd.f32 %v1414, %v1444
    %v1451 = vadd.f32 %v1415, %v1444
    %v1452 = vadd.f32 %v1416, %v1444
    %v1453 = vadd.f32 %v1417, %v1444
    %v1454 = vadd.f32 %v1418, %v1444
    %v1455 = vadd.f32 %v1419, %v1444
    %v1456 = vadd.f32 %v1420, %v1444
    %v1457 = vadd.f32 %v1421, %v1444
    %v1458 = vadd.f32 %v1422, %v1444
    %v1459 = vadd.f32 %v1423, %v1444
    %v1460 = vadd.f32 %v1424, %v1444
    %v1461 = vadd.f32 %v1425, %v1444
    %v1462 = vadd.f32 %v1426, %v1444
    %v1463 = vadd.f32 %v1427, %v1444
    %v1464 = vadd.f32 %v1428, %v1444
    %v1465 = vadd.f32 %v1429, %v1444
    %v1466 = vadd.f32 %v1430, %v1444
    %v1467 = vadd.f32 %v1431, %v1444
    %v1468 = vadd.f32 %v1432, %v1444
    %v1469 = vadd.f32 %v1433, %v1444
    %v1470 = vadd.f32 %v1434, %v1444
    %v1471 = vadd.f32 %v1435, %v1444
    %v1472 = vadd.f32 %v1436, %v1444
    %v1473 = vadd.f32 %v1437, %v1444
    %v1474 = vadd.f32 %v1438, %v1444
    %v1475 = vadd.f32 %v1439, %v1444
    %v1476 = vadd.f32 %v1440, %v1444
    %v1477 = vadd.f32 %v1441, %v1444
    %v1478 = vmax.f32 %v1446, 0.0
    %v1479 = vmax.f32 %v1447, 0.0
    %v1480 = vmax.f32 %v1448, 0.0
    %v1481 = vmax.f32 %v1449, 0.0
    %v1482 = vmax.f32 %v1450, 0.0
    %v1483 = vmax.f32 %v1451, 0.0
    %v1484 = vmax.f32 %v1452, 0.0
    %v1485 = vmax.f32 %v1453, 0.0
    %v1486 = vmax.f32 %v1454, 0.0
    %v1487 = vmax.f32 %v1455, 0.0
    %v1488 = vmax.f32 %v1456, 0.0
    %v1489 = vmax.f32 %v1457, 0.0
    %v1490 = vmax.f32 %v1458, 0.0
    %v1491 = vmax.f32 %v1459, 0.0
    %v1492 = vmax.f32 %v1460, 0.0
    %v1493 = vmax.f32 %v1461, 0.0
    %v1494 = vmax.f32 %v1462, 0.0
    %v1495 = vmax.f32 %v1463, 0.0
    %v1496 = vmax.f32 %v1464, 0.0
    %v1497 = vmax.f32 %v1465, 0.0
    %v1498 = vmax.f32 %v1466, 0.0
    %v1499 = vmax.f32 %v1467, 0.0
    %v1500 = vmax.f32 %v1468, 0.0
    %v1501 = vmax.f32 %v1469, 0.0
    %v1502 = vmax.f32 %v1470, 0.0
    %v1503 = vmax.f32 %v1471, 0.0
    %v1504 = vmax.f32 %v1472, 0.0
    %v1505 = vmax.f32 %v1473, 0.0
    %v1506 = vmax.f32 %v1474, 0.0
    %v1507 = vmax.f32 %v1475, 0.0
    %v1508 = vmax.f32 %v1476, 0.0
    %v1509 = vmax.f32 %v1477, 0.0
    %v1510 = vpack.c.bf16 %v1478, %v1478
    %v1511 = vpack.c.bf16 %v1479, %v1479
    %v1512 = vpack.c.bf16 %v1480, %v1480
    %v1513 = vpack.c.bf16 %v1481, %v1481
    %v1514 = vpack.c.bf16 %v1482, %v1482
    %v1515 = vpack.c.bf16 %v1483, %v1483
    %v1516 = vpack.c.bf16 %v1484, %v1484
    %v1517 = vpack.c.bf16 %v1485, %v1485
    %v1518 = vpack.c.bf16 %v1486, %v1486
    %v1519 = vpack.c.bf16 %v1487, %v1487
    %v1520 = vpack.c.bf16 %v1488, %v1488
    %v1521 = vpack.c.bf16 %v1489, %v1489
    %v1522 = vpack.c.bf16 %v1490, %v1490
    %v1523 = vpack.c.bf16 %v1491, %v1491
    %v1524 = vpack.c.bf16 %v1492, %v1492
    %v1525 = vpack.c.bf16 %v1493, %v1493
    %v1526 = vpack.c.bf16 %v1494, %v1494
    %v1527 = vpack.c.bf16 %v1495, %v1495
    %v1528 = vpack.c.bf16 %v1496, %v1496
    %v1529 = vpack.c.bf16 %v1497, %v1497
    %v1530 = vpack.c.bf16 %v1498, %v1498
    %v1531 = vpack.c.bf16 %v1499, %v1499
    %v1532 = vpack.c.bf16 %v1500, %v1500
    %v1533 = vpack.c.bf16 %v1501, %v1501
    %v1534 = vpack.c.bf16 %v1502, %v1502
    %v1535 = vpack.c.bf16 %v1503, %v1503
    %v1536 = vpack.c.bf16 %v1504, %v1504
    %v1537 = vpack.c.bf16 %v1505, %v1505
    %v1538 = vpack.c.bf16 %v1506, %v1506
    %v1539 = vpack.c.bf16 %v1507, %v1507
    %v1540 = vpack.c.bf16 %v1508, %v1508
    %v1541 = vpack.c.bf16 %v1509, %v1509
    %1542 = vst [vmem:[%s6] sm:$0xf] %v1510
    %1543 = vst [vmem:[%s6 + $0x4] sm:$0xf] %v1511
    %1544 = vst [vmem:[%s6 + $0x8] sm:$0xf] %v1512
    %1545 = vst [vmem:[%s6 + $0xc] sm:$0xf] %v1513
    %1546 = vst [vmem:[%s6 + $0x10] sm:$0xf] %v1514
    %1547 = vst [vmem:[%s6 + $0x14] sm:$0xf] %v1515
    %1548 = vst [vmem:[%s6 + $0x18] sm:$0xf] %v1516
    %1549 = vst [vmem:[%s6 + $0x1c] sm:$0xf] %v1517
    %1550 = vst [vmem:[%s6 + $0x20] sm:$0xf] %v1518
    %1551 = vst [vmem:[%s6 + $0x24] sm:$0xf] %v1519
    %1552 = vst [vmem:[%s6 + $0x28] sm:$0xf] %v1520
    %1553 = vst [vmem:[%s6 + $0x2c] sm:$0xf] %v1521
    %1554 = vst [vmem:[%s6 + $0x30] sm:$0xf] %v1522
    %1555 = vst [vmem:[%s6 + $0x34] sm:$0xf] %v1523
    %1556 = vst [vmem:[%s6 + $0x38] sm:$0xf] %v1524
    %1557 = vst [vmem:[%s6 + $0x3c] sm:$0xf] %v1525
    %1558 = vst [vmem:[%s6 + $0x40] sm:$0xf] %v1526
    %1559 = vst [vmem:[%s6 + $0x44] sm:$0xf] %v1527
    %1560 = vst [vmem:[%s6 + $0x48] sm:$0xf] %v1528
    %1561 = vst [vmem:[%s6 + $0x4c] sm:$0xf] %v1529
    %1562 = vst [vmem:[%s6 + $0x50] sm:$0xf] %v1530
    %1563 = vst [vmem:[%s6 + $0x54] sm:$0xf] %v1531
    %1564 = vst [vmem:[%s6 + $0x58] sm:$0xf] %v1532
    %1565 = vst [vmem:[%s6 + $0x5c] sm:$0xf] %v1533
    %1566 = vst [vmem:[%s6 + $0x60] sm:$0xf] %v1534
    %1567 = vst [vmem:[%s6 + $0x64] sm:$0xf] %v1535
    %1568 = vst [vmem:[%s6 + $0x68] sm:$0xf] %v1536
    %1569 = vst [vmem:[%s6 + $0x6c] sm:$0xf] %v1537
    %1570 = vst [vmem:[%s6 + $0x70] sm:$0xf] %v1538
    %1571 = vst [vmem:[%s6 + $0x74] sm:$0xf] %v1539
    %1572 = vst [vmem:[%s6 + $0x78] sm:$0xf] %v1540
    %1573 = vst [vmem:[%s6 + $0x7c] sm:$0xf] %v1541
  $region33: #{graphsage_forward.6} parent=0 // pred_fallthru
    _
  // Predicated region
  $region34: #{graphsage_forward.6} parent=0 // pred_check
    _
  $region35: #{graphsage_forward.6} parent=0 // pred_check_branch
    %1575 = sbr.rel (0) target = $region37
  $region36: #{graphsage_forward.6} parent=0 // pred_region
    _
  $region37: #{graphsage_forward.6} parent=0 // pred_fallthru
    _
  // Predicated region
  $region38: #{graphsage_forward.6} parent=0 // pred_check
    _
  $region39: #{graphsage_forward.6} parent=0 // pred_check_branch
    %1577 = sbr.rel (0) target = $region41
  $region40: #{graphsage_forward.6} parent=0 // pred_region
    _
  $region41: #{graphsage_forward.6} parent=0 // pred_fallthru
    _

// kernel: graphsage_forward.7
$region0: #{graphsage_forward.7}
  #allocation0 [shape = 'u32[]', space=smem, size = 0x4, offset = 0x4, fixed_abs, tag = 'smem constant byte address 0x4 - core index']
  #allocation1 [shape = 'u32[72,128]{1,0:T(1,128)}', space=vmem, size = 0x9000, scoped, tag = 'internal scratch']
  #allocation2 [shape = 'f32[256,128]{1,0:T(8,128)}', space=vmem, size = 0x20000, scoped, tag = 'scratch operand']
  %s0 = inlined_call_operand.vmem [shape: s8[256,256], index: 0, kind: input, shape index: {}]
  %s1 = inlined_call_operand.vmem [shape: bf16[256,128], index: 1, kind: input, shape index: {}, may-alias: {1,3}]
  %s2 = inlined_call_operand.vmem [shape: f32[256,1], index: 2, kind: input, shape index: {}]
  %s3 = inlined_call_operand.vmem [shape: bf16[256,128], index: 3, kind: input, shape index: {}, may-alias: {1,3}]
  %s4 = inlined_call_operand.vmem [shape: bf16[128,128], index: 4, kind: input, shape index: {}]
  %s5 = inlined_call_operand.vmem [shape: bf16[128,128], index: 5, kind: input, shape index: {}]
  %s6 = inlined_call_operand.vmem [shape: f32[1,128], index: 6, kind: input, shape index: {}]
  %s7 = inlined_call_operand.vmem [shape: f32[256,128], index: 7, kind: output, shape index: {}]
  %s8 = sld [smem:[#allocation0]]
  $region46: #{graphsage_forward.7} parent=0
    _
  %s10 = ssub.s32 1, %s8
  %s11 = scalar_select 0, %s10, %s8
  // Predicated region
  $region2: #{graphsage_forward.7} parent=0 // pred_check
    _
  $region3: #{graphsage_forward.7} parent=0 // pred_check_branch
    %13 = sbr.rel (0) target = $region5
  $region4: #{graphsage_forward.7} parent=0 // pred_region
    _
  $region5: #{graphsage_forward.7} parent=0 // pred_fallthru
    _
  // Predicated region
  $region6: #{graphsage_forward.7} parent=0 // pred_check
    _
  $region7: #{graphsage_forward.7} parent=0 // pred_check_branch
    %15 = sbr.rel (0) target = $region9
  $region8: #{graphsage_forward.7} parent=0 // pred_region
    _
  $region9: #{graphsage_forward.7} parent=0 // pred_fallthru
    _
  // Predicated region
  $region10: #{graphsage_forward.7} parent=0 // pred_check
    _
  $region11: #{graphsage_forward.7} parent=0 // pred_check_branch
    %17 = sbr.rel (0) target = $region13
  $region12: #{graphsage_forward.7} parent=0 // pred_region
    _
  $region13: #{graphsage_forward.7} parent=0 // pred_fallthru
    _
  // Predicated region
  $region14: #{graphsage_forward.7} parent=0 // pred_check
    _
  $region15: #{graphsage_forward.7} parent=0 // pred_check_branch
    %19 = sbr.rel (0) target = $region17
  $region16: #{graphsage_forward.7} parent=0 // pred_region
    _
  $region17: #{graphsage_forward.7} parent=0 // pred_fallthru
    _
  // Predicated region
  $region18: #{graphsage_forward.7} parent=0 // pred_check
    _
  $region19: #{graphsage_forward.7} parent=0 // pred_check_branch
    %21 = sbr.rel (0) target = $region21
  $region20: #{graphsage_forward.7} parent=0 // pred_region
    _
  $region21: #{graphsage_forward.7} parent=0 // pred_fallthru
    _
  // Predicated region
  $region22: #{graphsage_forward.7} parent=0 // pred_check
    _
  $region23: #{graphsage_forward.7} parent=0 // pred_check_branch
    %23 = sbr.rel (0) target = $region25
  $region24: #{graphsage_forward.7} parent=0 // pred_region
    _
  $region25: #{graphsage_forward.7} parent=0 // pred_fallthru
    _
  // Predicated region
  $region26: #{graphsage_forward.7} parent=0 // pred_check
    _
  $region27: #{graphsage_forward.7} parent=0 // pred_check_branch
    %25 = sbr.rel (0) target = $region29
  $region28: #{graphsage_forward.7} parent=0 // pred_region
    _
  $region29: #{graphsage_forward.7} parent=0 // pred_fallthru
    _
  %p26 = scmp.eq.s32.totalorder 0, 0
  // Predicated region
  $region30: #{graphsage_forward.7} parent=0 // pred_check
    %p27 = pneg %p26
  $region31: #{graphsage_forward.7} parent=0 // pred_check_branch
    %29 = sbr.rel (%p27) target = $region33
  $region32: #{graphsage_forward.7} parent=0 // pred_region
    %30 = vst [vmem:[#allocation2] sm:$0xff] 0.0
    %31 = vst [vmem:[#allocation2 + $0x8] sm:$0xff] 0.0
    %32 = vst [vmem:[#allocation2 + $0x10] sm:$0xff] 0.0
    %33 = vst [vmem:[#allocation2 + $0x18] sm:$0xff] 0.0
    %34 = vst [vmem:[#allocation2 + $0x20] sm:$0xff] 0.0
    %35 = vst [vmem:[#allocation2 + $0x28] sm:$0xff] 0.0
    %36 = vst [vmem:[#allocation2 + $0x30] sm:$0xff] 0.0
    %37 = vst [vmem:[#allocation2 + $0x38] sm:$0xff] 0.0
    %38 = vst [vmem:[#allocation2 + $0x40] sm:$0xff] 0.0
    %39 = vst [vmem:[#allocation2 + $0x48] sm:$0xff] 0.0
    %40 = vst [vmem:[#allocation2 + $0x50] sm:$0xff] 0.0
    %41 = vst [vmem:[#allocation2 + $0x58] sm:$0xff] 0.0
    %42 = vst [vmem:[#allocation2 + $0x60] sm:$0xff] 0.0
    %43 = vst [vmem:[#allocation2 + $0x68] sm:$0xff] 0.0
    %44 = vst [vmem:[#allocation2 + $0x70] sm:$0xff] 0.0
    %45 = vst [vmem:[#allocation2 + $0x78] sm:$0xff] 0.0
    %46 = vst [vmem:[#allocation2 + $0x80] sm:$0xff] 0.0
    %47 = vst [vmem:[#allocation2 + $0x88] sm:$0xff] 0.0
    %48 = vst [vmem:[#allocation2 + $0x90] sm:$0xff] 0.0
    %49 = vst [vmem:[#allocation2 + $0x98] sm:$0xff] 0.0
    %50 = vst [vmem:[#allocation2 + $0xa0] sm:$0xff] 0.0
    %51 = vst [vmem:[#allocation2 + $0xa8] sm:$0xff] 0.0
    %52 = vst [vmem:[#allocation2 + $0xb0] sm:$0xff] 0.0
    %53 = vst [vmem:[#allocation2 + $0xb8] sm:$0xff] 0.0
    %54 = vst [vmem:[#allocation2 + $0xc0] sm:$0xff] 0.0
    %55 = vst [vmem:[#allocation2 + $0xc8] sm:$0xff] 0.0
    %56 = vst [vmem:[#allocation2 + $0xd0] sm:$0xff] 0.0
    %57 = vst [vmem:[#allocation2 + $0xd8] sm:$0xff] 0.0
    %58 = vst [vmem:[#allocation2 + $0xe0] sm:$0xff] 0.0
    %59 = vst [vmem:[#allocation2 + $0xe8] sm:$0xff] 0.0
    %60 = vst [vmem:[#allocation2 + $0xf0] sm:$0xff] 0.0
    %61 = vst [vmem:[#allocation2 + $0xf8] sm:$0xff] 0.0
  $region33: #{graphsage_forward.7} parent=0 // pred_fallthru
    _
  %v62 = vld [vmem:[#allocation2] sm:$0xff]
  %v63 = vld [vmem:[#allocation2 + $0x8] sm:$0xff]
  %v64 = vld [vmem:[#allocation2 + $0x10] sm:$0xff]
  %v65 = vld [vmem:[#allocation2 + $0x18] sm:$0xff]
  %v66 = vld [vmem:[#allocation2 + $0x20] sm:$0xff]
  %v67 = vld [vmem:[#allocation2 + $0x28] sm:$0xff]
  %v68 = vld [vmem:[#allocation2 + $0x30] sm:$0xff]
  %v69 = vld [vmem:[#allocation2 + $0x38] sm:$0xff]
  %v70 = vld [vmem:[#allocation2 + $0x40] sm:$0xff]
  %v71 = vld [vmem:[#allocation2 + $0x48] sm:$0xff]
  %v72 = vld [vmem:[#allocation2 + $0x50] sm:$0xff]
  %v73 = vld [vmem:[#allocation2 + $0x58] sm:$0xff]
  %v74 = vld [vmem:[#allocation2 + $0x60] sm:$0xff]
  %v75 = vld [vmem:[#allocation2 + $0x68] sm:$0xff]
  %v76 = vld [vmem:[#allocation2 + $0x70] sm:$0xff]
  %v77 = vld [vmem:[#allocation2 + $0x78] sm:$0xff]
  %v78 = vld [vmem:[#allocation2 + $0x80] sm:$0xff]
  %v79 = vld [vmem:[#allocation2 + $0x88] sm:$0xff]
  %v80 = vld [vmem:[#allocation2 + $0x90] sm:$0xff]
  %v81 = vld [vmem:[#allocation2 + $0x98] sm:$0xff]
  %v82 = vld [vmem:[#allocation2 + $0xa0] sm:$0xff]
  %v83 = vld [vmem:[#allocation2 + $0xa8] sm:$0xff]
  %v84 = vld [vmem:[#allocation2 + $0xb0] sm:$0xff]
  %v85 = vld [vmem:[#allocation2 + $0xb8] sm:$0xff]
  %v86 = vld [vmem:[#allocation2 + $0xc0] sm:$0xff]
  %v87 = vld [vmem:[#allocation2 + $0xc8] sm:$0xff]
  %v88 = vld [vmem:[#allocation2 + $0xd0] sm:$0xff]
  %v89 = vld [vmem:[#allocation2 + $0xd8] sm:$0xff]
  %v90 = vld [vmem:[#allocation2 + $0xe0] sm:$0xff]
  %v91 = vld [vmem:[#allocation2 + $0xe8] sm:$0xff]
  %v92 = vld [vmem:[#allocation2 + $0xf0] sm:$0xff]
  %v93 = vld [vmem:[#allocation2 + $0xf8] sm:$0xff]
  %v94 = vld [vmem:[%s0] sm:$0xf]
  %v95 = vld [vmem:[%s0 + $0x4] sm:$0xf]
  %v96 = vld [vmem:[%s0 + $0x8] sm:$0xf]
  %v97 = vld [vmem:[%s0 + $0xc] sm:$0xf]
  %v98 = vld [vmem:[%s0 + $0x10] sm:$0xf]
  %v99 = vld [vmem:[%s0 + $0x14] sm:$0xf]
  %v100 = vld [vmem:[%s0 + $0x18] sm:$0xf]
  %v101 = vld [vmem:[%s0 + $0x1c] sm:$0xf]
  %v102 = vld [vmem:[%s0 + $0x20] sm:$0xf]
  %v103 = vld [vmem:[%s0 + $0x24] sm:$0xf]
  %v104 = vld [vmem:[%s0 + $0x28] sm:$0xf]
  %v105 = vld [vmem:[%s0 + $0x2c] sm:$0xf]
  %v106 = vld [vmem:[%s0 + $0x30] sm:$0xf]
  %v107 = vld [vmem:[%s0 + $0x34] sm:$0xf]
  %v108 = vld [vmem:[%s0 + $0x38] sm:$0xf]
  %v109 = vld [vmem:[%s0 + $0x3c] sm:$0xf]
  %v110 = vld [vmem:[%s0 + $0x40] sm:$0xf]
  %v111 = vld [vmem:[%s0 + $0x44] sm:$0xf]
  %v112 = vld [vmem:[%s0 + $0x48] sm:$0xf]
  %v113 = vld [vmem:[%s0 + $0x4c] sm:$0xf]
  %v114 = vld [vmem:[%s0 + $0x50] sm:$0xf]
  %v115 = vld [vmem:[%s0 + $0x54] sm:$0xf]
  %v116 = vld [vmem:[%s0 + $0x58] sm:$0xf]
  %v117 = vld [vmem:[%s0 + $0x5c] sm:$0xf]
  %v118 = vld [vmem:[%s0 + $0x60] sm:$0xf]
  %v119 = vld [vmem:[%s0 + $0x64] sm:$0xf]
  %v120 = vld [vmem:[%s0 + $0x68] sm:$0xf]
  %v121 = vld [vmem:[%s0 + $0x6c] sm:$0xf]
  %v122 = vld [vmem:[%s0 + $0x70] sm:$0xf]
  %v123 = vld [vmem:[%s0 + $0x74] sm:$0xf]
  %v124 = vld [vmem:[%s0 + $0x78] sm:$0xf]
  %v125 = vld [vmem:[%s0 + $0x7c] sm:$0xf]
  %v126 = vunpack.c.0.s8 %v94
  %v127 = vunpack.c.1.s8 %v94
  %v128 = vunpack.c.0.s8 %v95
  %v129 = vunpack.c.1.s8 %v95
  %v130 = vunpack.c.0.s8 %v96
  %v131 = vunpack.c.1.s8 %v96
  %v132 = vunpack.c.0.s8 %v97
  %v133 = vunpack.c.1.s8 %v97
  %v134 = vunpack.c.0.s8 %v98
  %v135 = vunpack.c.1.s8 %v98
  %v136 = vunpack.c.0.s8 %v99
  %v137 = vunpack.c.1.s8 %v99
  %v138 = vunpack.c.0.s8 %v100
  %v139 = vunpack.c.1.s8 %v100
  %v140 = vunpack.c.0.s8 %v101
  %v141 = vunpack.c.1.s8 %v101
  %v142 = vunpack.c.0.s8 %v102
  %v143 = vunpack.c.1.s8 %v102
  %v144 = vunpack.c.0.s8 %v103
  %v145 = vunpack.c.1.s8 %v103
  %v146 = vunpack.c.0.s8 %v104
  %v147 = vunpack.c.1.s8 %v104
  %v148 = vunpack.c.0.s8 %v105
  %v149 = vunpack.c.1.s8 %v105
  %v150 = vunpack.c.0.s8 %v106
  %v151 = vunpack.c.1.s8 %v106
  %v152 = vunpack.c.0.s8 %v107
  %v153 = vunpack.c.1.s8 %v107
  %v154 = vunpack.c.0.s8 %v108
  %v155 = vunpack.c.1.s8 %v108
  %v156 = vunpack.c.0.s8 %v109
  %v157 = vunpack.c.1.s8 %v109
  %v158 = vunpack.c.0.s8 %v110
  %v159 = vunpack.c.1.s8 %v110
  %v160 = vunpack.c.0.s8 %v111
  %v161 = vunpack.c.1.s8 %v111
  %v162 = vunpack.c.0.s8 %v112
  %v163 = vunpack.c.1.s8 %v112
  %v164 = vunpack.c.0.s8 %v113
  %v165 = vunpack.c.1.s8 %v113
  %v166 = vunpack.c.0.s8 %v114
  %v167 = vunpack.c.1.s8 %v114
  %v168 = vunpack.c.0.s8 %v115
  %v169 = vunpack.c.1.s8 %v115
  %v170 = vunpack.c.0.s8 %v116
  %v171 = vunpack.c.1.s8 %v116
  %v172 = vunpack.c.0.s8 %v117
  %v173 = vunpack.c.1.s8 %v117
  %v174 = vunpack.c.0.s8 %v118
  %v175 = vunpack.c.1.s8 %v118
  %v176 = vunpack.c.0.s8 %v119
  %v177 = vunpack.c.1.s8 %v119
  %v178 = vunpack.c.0.s8 %v120
  %v179 = vunpack.c.1.s8 %v120
  %v180 = vunpack.c.0.s8 %v121
  %v181 = vunpack.c.1.s8 %v121
  %v182 = vunpack.c.0.s8 %v122
  %v183 = vunpack.c.1.s8 %v122
  %v184 = vunpack.c.0.s8 %v123
  %v185 = vunpack.c.1.s8 %v123
  %v186 = vunpack.c.0.s8 %v124
  %v187 = vunpack.c.1.s8 %v124
  %v188 = vunpack.c.0.s8 %v125
  %v189 = vunpack.c.1.s8 %v125
  %v190 = vcvt.s32.f32 %v126
  %v191 = vcvt.s32.f32 %v127
  %v192 = vcvt.s32.f32 %v128
  %v193 = vcvt.s32.f32 %v129
  %v194 = vcvt.s32.f32 %v130
  %v195 = vcvt.s32.f32 %v131
  %v196 = vcvt.s32.f32 %v132
  %v197 = vcvt.s32.f32 %v133
  %v198 = vcvt.s32.f32 %v134
  %v199 = vcvt.s32.f32 %v135
  %v200 = vcvt.s32.f32 %v136
  %v201 = vcvt.s32.f32 %v137
  %v202 = vcvt.s32.f32 %v138
  %v203 = vcvt.s32.f32 %v139
  %v204 = vcvt.s32.f32 %v140
  %v205 = vcvt.s32.f32 %v141
  %v206 = vcvt.s32.f32 %v142
  %v207 = vcvt.s32.f32 %v143
  %v208 = vcvt.s32.f32 %v144
  %v209 = vcvt.s32.f32 %v145
  %v210 = vcvt.s32.f32 %v146
  %v211 = vcvt.s32.f32 %v147
  %v212 = vcvt.s32.f32 %v148
  %v213 = vcvt.s32.f32 %v149
  %v214 = vcvt.s32.f32 %v150
  %v215 = vcvt.s32.f32 %v151
  %v216 = vcvt.s32.f32 %v152
  %v217 = vcvt.s32.f32 %v153
  %v218 = vcvt.s32.f32 %v154
  %v219 = vcvt.s32.f32 %v155
  %v220 = vcvt.s32.f32 %v156
  %v221 = vcvt.s32.f32 %v157
  %v222 = vcvt.s32.f32 %v158
  %v223 = vcvt.s32.f32 %v159
  %v224 = vcvt.s32.f32 %v160
  %v225 = vcvt.s32.f32 %v161
  %v226 = vcvt.s32.f32 %v162
  %v227 = vcvt.s32.f32 %v163
  %v228 = vcvt.s32.f32 %v164
  %v229 = vcvt.s32.f32 %v165
  %v230 = vcvt.s32.f32 %v166
  %v231 = vcvt.s32.f32 %v167
  %v232 = vcvt.s32.f32 %v168
  %v233 = vcvt.s32.f32 %v169
  %v234 = vcvt.s32.f32 %v170
  %v235 = vcvt.s32.f32 %v171
  %v236 = vcvt.s32.f32 %v172
  %v237 = vcvt.s32.f32 %v173
  %v238 = vcvt.s32.f32 %v174
  %v239 = vcvt.s32.f32 %v175
  %v240 = vcvt.s32.f32 %v176
  %v241 = vcvt.s32.f32 %v177
  %v242 = vcvt.s32.f32 %v178
  %v243 = vcvt.s32.f32 %v179
  %v244 = vcvt.s32.f32 %v180
  %v245 = vcvt.s32.f32 %v181
  %v246 = vcvt.s32.f32 %v182
  %v247 = vcvt.s32.f32 %v183
  %v248 = vcvt.s32.f32 %v184
  %v249 = vcvt.s32.f32 %v185
  %v250 = vcvt.s32.f32 %v186
  %v251 = vcvt.s32.f32 %v187
  %v252 = vcvt.s32.f32 %v188
  %v253 = vcvt.s32.f32 %v189
  %v254 = vpack.c.bf16 %v192, %v190
  %v255 = vpack.c.bf16 %v193, %v191
  %v256 = vpack.c.bf16 %v196, %v194
  %v257 = vpack.c.bf16 %v197, %v195
  %v258 = vpack.c.bf16 %v200, %v198
  %v259 = vpack.c.bf16 %v201, %v199
  %v260 = vpack.c.bf16 %v204, %v202
  %v261 = vpack.c.bf16 %v205, %v203
  %v262 = vpack.c.bf16 %v208, %v206
  %v263 = vpack.c.bf16 %v209, %v207
  %v264 = vpack.c.bf16 %v212, %v210
  %v265 = vpack.c.bf16 %v213, %v211
  %v266 = vpack.c.bf16 %v216, %v214
  %v267 = vpack.c.bf16 %v217, %v215
  %v268 = vpack.c.bf16 %v220, %v218
  %v269 = vpack.c.bf16 %v221, %v219
  %v270 = vpack.c.bf16 %v224, %v222
  %v271 = vpack.c.bf16 %v225, %v223
  %v272 = vpack.c.bf16 %v228, %v226
  %v273 = vpack.c.bf16 %v229, %v227
  %v274 = vpack.c.bf16 %v232, %v230
  %v275 = vpack.c.bf16 %v233, %v231
  %v276 = vpack.c.bf16 %v236, %v234
  %v277 = vpack.c.bf16 %v237, %v235
  %v278 = vpack.c.bf16 %v240, %v238
  %v279 = vpack.c.bf16 %v241, %v239
  %v280 = vpack.c.bf16 %v244, %v242
  %v281 = vpack.c.bf16 %v245, %v243
  %v282 = vpack.c.bf16 %v248, %v246
  %v283 = vpack.c.bf16 %v249, %v247
  %v284 = vpack.c.bf16 %v252, %v250
  %v285 = vpack.c.bf16 %v253, %v251
  %v286 = vld [vmem:[%s1] sm:$0xf]
  %v287 = vld [vmem:[%s1 + $0x4] sm:$0xf]
  %v288 = vld [vmem:[%s1 + $0x8] sm:$0xf]
  %v289 = vld [vmem:[%s1 + $0xc] sm:$0xf]
  %v290 = vld [vmem:[%s1 + $0x10] sm:$0xf]
  %v291 = vld [vmem:[%s1 + $0x14] sm:$0xf]
  %v292 = vld [vmem:[%s1 + $0x18] sm:$0xf]
  %v293 = vld [vmem:[%s1 + $0x1c] sm:$0xf]
  %v294 = vld [vmem:[%s1 + $0x20] sm:$0xf]
  %v295 = vld [vmem:[%s1 + $0x24] sm:$0xf]
  %v296 = vld [vmem:[%s1 + $0x28] sm:$0xf]
  %v297 = vld [vmem:[%s1 + $0x2c] sm:$0xf]
  %v298 = vld [vmem:[%s1 + $0x30] sm:$0xf]
  %v299 = vld [vmem:[%s1 + $0x34] sm:$0xf]
  %v300 = vld [vmem:[%s1 + $0x38] sm:$0xf]
  %v301 = vld [vmem:[%s1 + $0x3c] sm:$0xf]
  %v302 = vld [vmem:[%s1 + $0x40] sm:$0xf]
  %v303 = vld [vmem:[%s1 + $0x44] sm:$0xf]
  %v304 = vld [vmem:[%s1 + $0x48] sm:$0xf]
  %v305 = vld [vmem:[%s1 + $0x4c] sm:$0xf]
  %v306 = vld [vmem:[%s1 + $0x50] sm:$0xf]
  %v307 = vld [vmem:[%s1 + $0x54] sm:$0xf]
  %v308 = vld [vmem:[%s1 + $0x58] sm:$0xf]
  %v309 = vld [vmem:[%s1 + $0x5c] sm:$0xf]
  %v310 = vld [vmem:[%s1 + $0x60] sm:$0xf]
  %v311 = vld [vmem:[%s1 + $0x64] sm:$0xf]
  %v312 = vld [vmem:[%s1 + $0x68] sm:$0xf]
  %v313 = vld [vmem:[%s1 + $0x6c] sm:$0xf]
  %v314 = vld [vmem:[%s1 + $0x70] sm:$0xf]
  %v315 = vld [vmem:[%s1 + $0x74] sm:$0xf]
  %v316 = vld [vmem:[%s1 + $0x78] sm:$0xf]
  %v317 = vld [vmem:[%s1 + $0x7c] sm:$0xf]
  %v350 = vunpack.c.l.b16 %v286
  %v351 = vunpack.c.l.b16 %v287
  %v352 = vunpack.c.l.b16 %v288
  %v353 = vunpack.c.l.b16 %v289
  %v354 = vunpack.c.l.b16 %v290
  %v355 = vunpack.c.l.b16 %v291
  %v356 = vunpack.c.l.b16 %v292
  %v357 = vunpack.c.l.b16 %v293
  %v358 = vunpack.c.l.b16 %v294
  %v359 = vunpack.c.l.b16 %v295
  %v360 = vunpack.c.l.b16 %v296
  %v361 = vunpack.c.l.b16 %v297
  %v362 = vunpack.c.l.b16 %v298
  %v363 = vunpack.c.l.b16 %v299
  %v364 = vunpack.c.l.b16 %v300
  %v365 = vunpack.c.l.b16 %v301
  %v366 = vunpack.c.l.b16 %v302
  %v367 = vunpack.c.l.b16 %v303
  %v368 = vunpack.c.l.b16 %v304
  %v369 = vunpack.c.l.b16 %v305
  %v370 = vunpack.c.l.b16 %v306
  %v371 = vunpack.c.l.b16 %v307
  %v372 = vunpack.c.l.b16 %v308
  %v373 = vunpack.c.l.b16 %v309
  %v374 = vunpack.c.l.b16 %v310
  %v375 = vunpack.c.l.b16 %v311
  %v376 = vunpack.c.l.b16 %v312
  %v377 = vunpack.c.l.b16 %v313
  %v378 = vunpack.c.l.b16 %v314
  %v379 = vunpack.c.l.b16 %v315
  %v380 = vunpack.c.l.b16 %v316
  %v381 = vunpack.c.l.b16 %v317
  %v382 = vpack.c.b16 %v351, %v350
  %v383 = vpack.c.b16 %v353, %v352
  %v384 = vpack.c.b16 %v355, %v354
  %v385 = vpack.c.b16 %v357, %v356
  %v386 = vpack.c.b16 %v359, %v358
  %v387 = vpack.c.b16 %v361, %v360
  %v388 = vpack.c.b16 %v363, %v362
  %v389 = vpack.c.b16 %v365, %v364
  %v390 = vpack.c.b16 %v367, %v366
  %v391 = vpack.c.b16 %v369, %v368
  %v392 = vpack.c.b16 %v371, %v370
  %v393 = vpack.c.b16 %v373, %v372
  %v394 = vpack.c.b16 %v375, %v374
  %v395 = vpack.c.b16 %v377, %v376
  %v396 = vpack.c.b16 %v379, %v378
  %v397 = vpack.c.b16 %v381, %v380
  %414 = vmatpush.bf16.msra.mxu0 %v389
  %415 = vmatpush.bf16.msra.mxu0 %v388
  %416 = vmatpush.bf16.msra.mxu0 %v387
  %417 = vmatpush.bf16.msra.mxu0 %v386
  %418 = vmatpush.bf16.msra.mxu0 %v385
  %419 = vmatpush.bf16.msra.mxu0 %v384
  %420 = vmatpush.bf16.msra.mxu0 %v383
  %421 = vmatpush.bf16.msra.mxu0 %v382
  %422 = vmatmul.bf16.gmra.mxu0 %v254
  %v423 = vpop.f32.mrf.mxu0
  %v424 = vadd.f32 0.0, %v423
  %v425 = vpop.f32.mrf.mxu0
  %v426 = vadd.f32 0.0, %v425
  %427 = vmatmul.bf16.gmra.mxu0 %v256
  %v428 = vpop.f32.mrf.mxu0
  %v429 = vadd.f32 0.0, %v428
  %v430 = vpop.f32.mrf.mxu0
  %v431 = vadd.f32 0.0, %v430
  %432 = vmatmul.bf16.gmra.mxu0 %v258
  %v433 = vpop.f32.mrf.mxu0
  %v434 = vadd.f32 0.0, %v433
  %v435 = vpop.f32.mrf.mxu0
  %v436 = vadd.f32 0.0, %v435
  %437 = vmatmul.bf16.gmra.mxu0 %v260
  %v438 = vpop.f32.mrf.mxu0
  %v439 = vadd.f32 0.0, %v438
  %v440 = vpop.f32.mrf.mxu0
  %v441 = vadd.f32 0.0, %v440
  %442 = vmatmul.bf16.gmra.mxu0 %v262
  %v443 = vpop.f32.mrf.mxu0
  %v444 = vadd.f32 0.0, %v443
  %v445 = vpop.f32.mrf.mxu0
  %v446 = vadd.f32 0.0, %v445
  %447 = vmatmul.bf16.gmra.mxu0 %v264
  %v448 = vpop.f32.mrf.mxu0
  %v449 = vadd.f32 0.0, %v448
  %v450 = vpop.f32.mrf.mxu0
  %v451 = vadd.f32 0.0, %v450
  %452 = vmatmul.bf16.gmra.mxu0 %v266
  %v453 = vpop.f32.mrf.mxu0
  %v454 = vadd.f32 0.0, %v453
  %v455 = vpop.f32.mrf.mxu0
  %v456 = vadd.f32 0.0, %v455
  %457 = vmatmul.bf16.gmra.mxu0 %v268
  %v458 = vpop.f32.mrf.mxu0
  %v459 = vadd.f32 0.0, %v458
  %v460 = vpop.f32.mrf.mxu0
  %v461 = vadd.f32 0.0, %v460
  %462 = vmatmul.bf16.gmra.mxu0 %v270
  %v463 = vpop.f32.mrf.mxu0
  %v464 = vadd.f32 0.0, %v463
  %v465 = vpop.f32.mrf.mxu0
  %v466 = vadd.f32 0.0, %v465
  %467 = vmatmul.bf16.gmra.mxu0 %v272
  %v468 = vpop.f32.mrf.mxu0
  %v469 = vadd.f32 0.0, %v468
  %v470 = vpop.f32.mrf.mxu0
  %v471 = vadd.f32 0.0, %v470
  %472 = vmatmul.bf16.gmra.mxu0 %v274
  %v473 = vpop.f32.mrf.mxu0
  %v474 = vadd.f32 0.0, %v473
  %v475 = vpop.f32.mrf.mxu0
  %v476 = vadd.f32 0.0, %v475
  %477 = vmatmul.bf16.gmra.mxu0 %v276
  %v478 = vpop.f32.mrf.mxu0
  %v479 = vadd.f32 0.0, %v478
  %v480 = vpop.f32.mrf.mxu0
  %v481 = vadd.f32 0.0, %v480
  %482 = vmatmul.bf16.gmra.mxu0 %v278
  %v483 = vpop.f32.mrf.mxu0
  %v484 = vadd.f32 0.0, %v483
  %v485 = vpop.f32.mrf.mxu0
  %v486 = vadd.f32 0.0, %v485
  %487 = vmatmul.bf16.gmra.mxu0 %v280
  %v488 = vpop.f32.mrf.mxu0
  %v489 = vadd.f32 0.0, %v488
  %v490 = vpop.f32.mrf.mxu0
  %v491 = vadd.f32 0.0, %v490
  %492 = vmatmul.bf16.gmra.mxu0 %v282
  %v493 = vpop.f32.mrf.mxu0
  %v494 = vadd.f32 0.0, %v493
  %v495 = vpop.f32.mrf.mxu0
  %v496 = vadd.f32 0.0, %v495
  %497 = vmatmul.bf16.gmra.mxu0 %v284
  %v498 = vpop.f32.mrf.mxu0
  %v499 = vadd.f32 0.0, %v498
  %v500 = vpop.f32.mrf.mxu0
  %v501 = vadd.f32 0.0, %v500
  %502 = vdwg.mxu0
  %503 = vmatpush.bf16.msra.mxu0 %v397
  %504 = vmatpush.bf16.msra.mxu0 %v396
  %505 = vmatpush.bf16.msra.mxu0 %v395
  %506 = vmatpush.bf16.msra.mxu0 %v394
  %507 = vmatpush.bf16.msra.mxu0 %v393
  %508 = vmatpush.bf16.msra.mxu0 %v392
  %509 = vmatpush.bf16.msra.mxu0 %v391
  %510 = vmatpush.bf16.msra.mxu0 %v390
  %511 = vmatmul.bf16.gmra.mxu0 %v255
  %v512 = vpop.f32.mrf.mxu0
  %v513 = vadd.f32 %v424, %v512
  %v514 = vpop.f32.mrf.mxu0
  %v515 = vadd.f32 %v426, %v514
  %516 = vmatmul.bf16.gmra.mxu0 %v257
  %v517 = vpop.f32.mrf.mxu0
  %v518 = vadd.f32 %v429, %v517
  %v519 = vpop.f32.mrf.mxu0
  %v520 = vadd.f32 %v431, %v519
  %521 = vmatmul.bf16.gmra.mxu0 %v259
  %v522 = vpop.f32.mrf.mxu0
  %v523 = vadd.f32 %v434, %v522
  %v524 = vpop.f32.mrf.mxu0
  %v525 = vadd.f32 %v436, %v524
  %526 = vmatmul.bf16.gmra.mxu0 %v261
  %v527 = vpop.f32.mrf.mxu0
  %v528 = vadd.f32 %v439, %v527
  %v529 = vpop.f32.mrf.mxu0
  %v530 = vadd.f32 %v441, %v529
  %531 = vmatmul.bf16.gmra.mxu0 %v263
  %v532 = vpop.f32.mrf.mxu0
  %v533 = vadd.f32 %v444, %v532
  %v534 = vpop.f32.mrf.mxu0
  %v535 = vadd.f32 %v446, %v534
  %536 = vmatmul.bf16.gmra.mxu0 %v265
  %v537 = vpop.f32.mrf.mxu0
  %v538 = vadd.f32 %v449, %v537
  %v539 = vpop.f32.mrf.mxu0
  %v540 = vadd.f32 %v451, %v539
  %541 = vmatmul.bf16.gmra.mxu0 %v267
  %v542 = vpop.f32.mrf.mxu0
  %v543 = vadd.f32 %v454, %v542
  %v544 = vpop.f32.mrf.mxu0
  %v545 = vadd.f32 %v456, %v544
  %546 = vmatmul.bf16.gmra.mxu0 %v269
  %v547 = vpop.f32.mrf.mxu0
  %v548 = vadd.f32 %v459, %v547
  %v549 = vpop.f32.mrf.mxu0
  %v550 = vadd.f32 %v461, %v549
  %551 = vmatmul.bf16.gmra.mxu0 %v271
  %v552 = vpop.f32.mrf.mxu0
  %v553 = vadd.f32 %v464, %v552
  %v554 = vpop.f32.mrf.mxu0
  %v555 = vadd.f32 %v466, %v554
  %556 = vmatmul.bf16.gmra.mxu0 %v273
  %v557 = vpop.f32.mrf.mxu0
  %v558 = vadd.f32 %v469, %v557
  %v559 = vpop.f32.mrf.mxu0
  %v560 = vadd.f32 %v471, %v559
  %561 = vmatmul.bf16.gmra.mxu0 %v275
  %v562 = vpop.f32.mrf.mxu0
  %v563 = vadd.f32 %v474, %v562
  %v564 = vpop.f32.mrf.mxu0
  %v565 = vadd.f32 %v476, %v564
  %566 = vmatmul.bf16.gmra.mxu0 %v277
  %v567 = vpop.f32.mrf.mxu0
  %v568 = vadd.f32 %v479, %v567
  %v569 = vpop.f32.mrf.mxu0
  %v570 = vadd.f32 %v481, %v569
  %571 = vmatmul.bf16.gmra.mxu0 %v279
  %v572 = vpop.f32.mrf.mxu0
  %v573 = vadd.f32 %v484, %v572
  %v574 = vpop.f32.mrf.mxu0
  %v575 = vadd.f32 %v486, %v574
  %576 = vmatmul.bf16.gmra.mxu0 %v281
  %v577 = vpop.f32.mrf.mxu0
  %v578 = vadd.f32 %v489, %v577
  %v579 = vpop.f32.mrf.mxu0
  %v580 = vadd.f32 %v491, %v579
  %581 = vmatmul.bf16.gmra.mxu0 %v283
  %v582 = vpop.f32.mrf.mxu0
  %v583 = vadd.f32 %v494, %v582
  %v584 = vpop.f32.mrf.mxu0
  %v585 = vadd.f32 %v496, %v584
  %586 = vmatmul.bf16.gmra.mxu0 %v285
  %v587 = vpop.f32.mrf.mxu0
  %v588 = vadd.f32 %v499, %v587
  %v589 = vpop.f32.mrf.mxu0
  %v590 = vadd.f32 %v501, %v589
  %591 = vdwg.mxu0
  %v592 = vadd.f32 %v62, %v513
  %v593 = vadd.f32 %v63, %v515
  %v594 = vadd.f32 %v64, %v518
  %v595 = vadd.f32 %v65, %v520
  %v596 = vadd.f32 %v66, %v523
  %v597 = vadd.f32 %v67, %v525
  %v598 = vadd.f32 %v68, %v528
  %v599 = vadd.f32 %v69, %v530
  %v600 = vadd.f32 %v70, %v533
  %v601 = vadd.f32 %v71, %v535
  %v602 = vadd.f32 %v72, %v538
  %v603 = vadd.f32 %v73, %v540
  %v604 = vadd.f32 %v74, %v543
  %v605 = vadd.f32 %v75, %v545
  %v606 = vadd.f32 %v76, %v548
  %v607 = vadd.f32 %v77, %v550
  %v608 = vadd.f32 %v78, %v553
  %v609 = vadd.f32 %v79, %v555
  %v610 = vadd.f32 %v80, %v558
  %v611 = vadd.f32 %v81, %v560
  %v612 = vadd.f32 %v82, %v563
  %v613 = vadd.f32 %v83, %v565
  %v614 = vadd.f32 %v84, %v568
  %v615 = vadd.f32 %v85, %v570
  %v616 = vadd.f32 %v86, %v573
  %v617 = vadd.f32 %v87, %v575
  %v618 = vadd.f32 %v88, %v578
  %v619 = vadd.f32 %v89, %v580
  %v620 = vadd.f32 %v90, %v583
  %v621 = vadd.f32 %v91, %v585
  %v622 = vadd.f32 %v92, %v588
  %v623 = vadd.f32 %v93, %v590
  %624 = vst [vmem:[#allocation2] sm:$0xff] %v592
  %625 = vst [vmem:[#allocation2 + $0x8] sm:$0xff] %v593
  %626 = vst [vmem:[#allocation2 + $0x10] sm:$0xff] %v594
  %627 = vst [vmem:[#allocation2 + $0x18] sm:$0xff] %v595
  %628 = vst [vmem:[#allocation2 + $0x20] sm:$0xff] %v596
  %629 = vst [vmem:[#allocation2 + $0x28] sm:$0xff] %v597
  %630 = vst [vmem:[#allocation2 + $0x30] sm:$0xff] %v598
  %631 = vst [vmem:[#allocation2 + $0x38] sm:$0xff] %v599
  %632 = vst [vmem:[#allocation2 + $0x40] sm:$0xff] %v600
  %633 = vst [vmem:[#allocation2 + $0x48] sm:$0xff] %v601
  %634 = vst [vmem:[#allocation2 + $0x50] sm:$0xff] %v602
  %635 = vst [vmem:[#allocation2 + $0x58] sm:$0xff] %v603
  %636 = vst [vmem:[#allocation2 + $0x60] sm:$0xff] %v604
  %637 = vst [vmem:[#allocation2 + $0x68] sm:$0xff] %v605
  %638 = vst [vmem:[#allocation2 + $0x70] sm:$0xff] %v606
  %639 = vst [vmem:[#allocation2 + $0x78] sm:$0xff] %v607
  %640 = vst [vmem:[#allocation2 + $0x80] sm:$0xff] %v608
  %641 = vst [vmem:[#allocation2 + $0x88] sm:$0xff] %v609
  %642 = vst [vmem:[#allocation2 + $0x90] sm:$0xff] %v610
  %643 = vst [vmem:[#allocation2 + $0x98] sm:$0xff] %v611
  %644 = vst [vmem:[#allocation2 + $0xa0] sm:$0xff] %v612
  %645 = vst [vmem:[#allocation2 + $0xa8] sm:$0xff] %v613
  %646 = vst [vmem:[#allocation2 + $0xb0] sm:$0xff] %v614
  %647 = vst [vmem:[#allocation2 + $0xb8] sm:$0xff] %v615
  %648 = vst [vmem:[#allocation2 + $0xc0] sm:$0xff] %v616
  %649 = vst [vmem:[#allocation2 + $0xc8] sm:$0xff] %v617
  %650 = vst [vmem:[#allocation2 + $0xd0] sm:$0xff] %v618
  %651 = vst [vmem:[#allocation2 + $0xd8] sm:$0xff] %v619
  %652 = vst [vmem:[#allocation2 + $0xe0] sm:$0xff] %v620
  %653 = vst [vmem:[#allocation2 + $0xe8] sm:$0xff] %v621
  %654 = vst [vmem:[#allocation2 + $0xf0] sm:$0xff] %v622
  %655 = vst [vmem:[#allocation2 + $0xf8] sm:$0xff] %v623
  // Predicated region
  $region34: #{graphsage_forward.7} parent=0 // pred_check
    %p656 = pneg %p26
  $region35: #{graphsage_forward.7} parent=0 // pred_check_branch
    %658 = sbr.rel (%p656) target = $region37
  $region36: #{graphsage_forward.7} parent=0 // pred_region
    %v659 = vld [vmem:[#allocation2] sm:$0xff]
    %v660 = vld [vmem:[#allocation2 + $0x8] sm:$0xff]
    %v661 = vld [vmem:[#allocation2 + $0x10] sm:$0xff]
    %v662 = vld [vmem:[#allocation2 + $0x18] sm:$0xff]
    %v663 = vld [vmem:[#allocation2 + $0x20] sm:$0xff]
    %v664 = vld [vmem:[#allocation2 + $0x28] sm:$0xff]
    %v665 = vld [vmem:[#allocation2 + $0x30] sm:$0xff]
    %v666 = vld [vmem:[#allocation2 + $0x38] sm:$0xff]
    %v667 = vld [vmem:[#allocation2 + $0x40] sm:$0xff]
    %v668 = vld [vmem:[#allocation2 + $0x48] sm:$0xff]
    %v669 = vld [vmem:[#allocation2 + $0x50] sm:$0xff]
    %v670 = vld [vmem:[#allocation2 + $0x58] sm:$0xff]
    %v671 = vld [vmem:[#allocation2 + $0x60] sm:$0xff]
    %v672 = vld [vmem:[#allocation2 + $0x68] sm:$0xff]
    %v673 = vld [vmem:[#allocation2 + $0x70] sm:$0xff]
    %v674 = vld [vmem:[#allocation2 + $0x78] sm:$0xff]
    %v675 = vld [vmem:[#allocation2 + $0x80] sm:$0xff]
    %v676 = vld [vmem:[#allocation2 + $0x88] sm:$0xff]
    %v677 = vld [vmem:[#allocation2 + $0x90] sm:$0xff]
    %v678 = vld [vmem:[#allocation2 + $0x98] sm:$0xff]
    %v679 = vld [vmem:[#allocation2 + $0xa0] sm:$0xff]
    %v680 = vld [vmem:[#allocation2 + $0xa8] sm:$0xff]
    %v681 = vld [vmem:[#allocation2 + $0xb0] sm:$0xff]
    %v682 = vld [vmem:[#allocation2 + $0xb8] sm:$0xff]
    %v683 = vld [vmem:[#allocation2 + $0xc0] sm:$0xff]
    %v684 = vld [vmem:[#allocation2 + $0xc8] sm:$0xff]
    %v685 = vld [vmem:[#allocation2 + $0xd0] sm:$0xff]
    %v686 = vld [vmem:[#allocation2 + $0xd8] sm:$0xff]
    %v687 = vld [vmem:[#allocation2 + $0xe0] sm:$0xff]
    %v688 = vld [vmem:[#allocation2 + $0xe8] sm:$0xff]
    %v689 = vld [vmem:[#allocation2 + $0xf0] sm:$0xff]
    %v690 = vld [vmem:[#allocation2 + $0xf8] sm:$0xff]
    %v691 = vld [vmem:[%s2] sm:$0xff]
    %v692 = vld [vmem:[%s2 + $0x8] sm:$0xff]
    %v693 = vld [vmem:[%s2 + $0x10] sm:$0xff]
    %v694 = vld [vmem:[%s2 + $0x18] sm:$0xff]
    %v695 = vld [vmem:[%s2 + $0x20] sm:$0xff]
    %v696 = vld [vmem:[%s2 + $0x28] sm:$0xff]
    %v697 = vld [vmem:[%s2 + $0x30] sm:$0xff]
    %v698 = vld [vmem:[%s2 + $0x38] sm:$0xff]
    %v699 = vld [vmem:[%s2 + $0x40] sm:$0xff]
    %v700 = vld [vmem:[%s2 + $0x48] sm:$0xff]
    %v701 = vld [vmem:[%s2 + $0x50] sm:$0xff]
    %v702 = vld [vmem:[%s2 + $0x58] sm:$0xff]
    %v703 = vld [vmem:[%s2 + $0x60] sm:$0xff]
    %v704 = vld [vmem:[%s2 + $0x68] sm:$0xff]
    %v705 = vld [vmem:[%s2 + $0x70] sm:$0xff]
    %v706 = vld [vmem:[%s2 + $0x78] sm:$0xff]
    %v707 = vld [vmem:[%s2 + $0x80] sm:$0xff]
    %v708 = vld [vmem:[%s2 + $0x88] sm:$0xff]
    %v709 = vld [vmem:[%s2 + $0x90] sm:$0xff]
    %v710 = vld [vmem:[%s2 + $0x98] sm:$0xff]
    %v711 = vld [vmem:[%s2 + $0xa0] sm:$0xff]
    %v712 = vld [vmem:[%s2 + $0xa8] sm:$0xff]
    %v713 = vld [vmem:[%s2 + $0xb0] sm:$0xff]
    %v714 = vld [vmem:[%s2 + $0xb8] sm:$0xff]
    %v715 = vld [vmem:[%s2 + $0xc0] sm:$0xff]
    %v716 = vld [vmem:[%s2 + $0xc8] sm:$0xff]
    %v717 = vld [vmem:[%s2 + $0xd0] sm:$0xff]
    %v718 = vld [vmem:[%s2 + $0xd8] sm:$0xff]
    %v719 = vld [vmem:[%s2 + $0xe0] sm:$0xff]
    %v720 = vld [vmem:[%s2 + $0xe8] sm:$0xff]
    %v721 = vld [vmem:[%s2 + $0xf0] sm:$0xff]
    %v722 = vld [vmem:[%s2 + $0xf8] sm:$0xff]
    %724 = vset.pattern.permute.xlu0 0
    %725 = vperm.xlu0 %724, %v691
    %v726 = vpop.permute.xlu0 %725
    %729 = vset.pattern.permute.xlu0 0
    %730 = vperm.xlu0 %729, %v692
    %v731 = vpop.permute.xlu0 %730
    %734 = vset.pattern.permute.xlu0 0
    %735 = vperm.xlu0 %734, %v693
    %v736 = vpop.permute.xlu0 %735
    %739 = vset.pattern.permute.xlu0 0
    %740 = vperm.xlu0 %739, %v694
    %v741 = vpop.permute.xlu0 %740
    %744 = vset.pattern.permute.xlu0 0
    %745 = vperm.xlu0 %744, %v695
    %v746 = vpop.permute.xlu0 %745
    %749 = vset.pattern.permute.xlu0 0
    %750 = vperm.xlu0 %749, %v696
    %v751 = vpop.permute.xlu0 %750
    %754 = vset.pattern.permute.xlu0 0
    %755 = vperm.xlu0 %754, %v697
    %v756 = vpop.permute.xlu0 %755
    %759 = vset.pattern.permute.xlu0 0
    %760 = vperm.xlu0 %759, %v698
    %v761 = vpop.permute.xlu0 %760
    %764 = vset.pattern.permute.xlu0 0
    %765 = vperm.xlu0 %764, %v699
    %v766 = vpop.permute.xlu0 %765
    %769 = vset.pattern.permute.xlu0 0
    %770 = vperm.xlu0 %769, %v700
    %v771 = vpop.permute.xlu0 %770
    %774 = vset.pattern.permute.xlu0 0
    %775 = vperm.xlu0 %774, %v701
    %v776 = vpop.permute.xlu0 %775
    %779 = vset.pattern.permute.xlu0 0
    %780 = vperm.xlu0 %779, %v702
    %v781 = vpop.permute.xlu0 %780
    %784 = vset.pattern.permute.xlu0 0
    %785 = vperm.xlu0 %784, %v703
    %v786 = vpop.permute.xlu0 %785
    %789 = vset.pattern.permute.xlu0 0
    %790 = vperm.xlu0 %789, %v704
    %v791 = vpop.permute.xlu0 %790
    %794 = vset.pattern.permute.xlu0 0
    %795 = vperm.xlu0 %794, %v705
    %v796 = vpop.permute.xlu0 %795
    %799 = vset.pattern.permute.xlu0 0
    %800 = vperm.xlu0 %799, %v706
    %v801 = vpop.permute.xlu0 %800
    %804 = vset.pattern.permute.xlu0 0
    %805 = vperm.xlu0 %804, %v707
    %v806 = vpop.permute.xlu0 %805
    %809 = vset.pattern.permute.xlu0 0
    %810 = vperm.xlu0 %809, %v708
    %v811 = vpop.permute.xlu0 %810
    %814 = vset.pattern.permute.xlu0 0
    %815 = vperm.xlu0 %814, %v709
    %v816 = vpop.permute.xlu0 %815
    %819 = vset.pattern.permute.xlu0 0
    %820 = vperm.xlu0 %819, %v710
    %v821 = vpop.permute.xlu0 %820
    %824 = vset.pattern.permute.xlu0 0
    %825 = vperm.xlu0 %824, %v711
    %v826 = vpop.permute.xlu0 %825
    %829 = vset.pattern.permute.xlu0 0
    %830 = vperm.xlu0 %829, %v712
    %v831 = vpop.permute.xlu0 %830
    %834 = vset.pattern.permute.xlu0 0
    %835 = vperm.xlu0 %834, %v713
    %v836 = vpop.permute.xlu0 %835
    %839 = vset.pattern.permute.xlu0 0
    %840 = vperm.xlu0 %839, %v714
    %v841 = vpop.permute.xlu0 %840
    %844 = vset.pattern.permute.xlu0 0
    %845 = vperm.xlu0 %844, %v715
    %v846 = vpop.permute.xlu0 %845
    %849 = vset.pattern.permute.xlu0 0
    %850 = vperm.xlu0 %849, %v716
    %v851 = vpop.permute.xlu0 %850
    %854 = vset.pattern.permute.xlu0 0
    %855 = vperm.xlu0 %854, %v717
    %v856 = vpop.permute.xlu0 %855
    %859 = vset.pattern.permute.xlu0 0
    %860 = vperm.xlu0 %859, %v718
    %v861 = vpop.permute.xlu0 %860
    %864 = vset.pattern.permute.xlu0 0
    %865 = vperm.xlu0 %864, %v719
    %v866 = vpop.permute.xlu0 %865
    %869 = vset.pattern.permute.xlu0 0
    %870 = vperm.xlu0 %869, %v720
    %v871 = vpop.permute.xlu0 %870
    %874 = vset.pattern.permute.xlu0 0
    %875 = vperm.xlu0 %874, %v721
    %v876 = vpop.permute.xlu0 %875
    %879 = vset.pattern.permute.xlu0 0
    %880 = vperm.xlu0 %879, %v722
    %v881 = vpop.permute.xlu0 %880
    %v883 = vmul.f32 %v659, %v726
    %v884 = vmul.f32 %v660, %v731
    %v885 = vmul.f32 %v661, %v736
    %v886 = vmul.f32 %v662, %v741
    %v887 = vmul.f32 %v663, %v746
    %v888 = vmul.f32 %v664, %v751
    %v889 = vmul.f32 %v665, %v756
    %v890 = vmul.f32 %v666, %v761
    %v891 = vmul.f32 %v667, %v766
    %v892 = vmul.f32 %v668, %v771
    %v893 = vmul.f32 %v669, %v776
    %v894 = vmul.f32 %v670, %v781
    %v895 = vmul.f32 %v671, %v786
    %v896 = vmul.f32 %v672, %v791
    %v897 = vmul.f32 %v673, %v796
    %v898 = vmul.f32 %v674, %v801
    %v899 = vmul.f32 %v675, %v806
    %v900 = vmul.f32 %v676, %v811
    %v901 = vmul.f32 %v677, %v816
    %v902 = vmul.f32 %v678, %v821
    %v903 = vmul.f32 %v679, %v826
    %v904 = vmul.f32 %v680, %v831
    %v905 = vmul.f32 %v681, %v836
    %v906 = vmul.f32 %v682, %v841
    %v907 = vmul.f32 %v683, %v846
    %v908 = vmul.f32 %v684, %v851
    %v909 = vmul.f32 %v685, %v856
    %v910 = vmul.f32 %v686, %v861
    %v911 = vmul.f32 %v687, %v866
    %v912 = vmul.f32 %v688, %v871
    %v913 = vmul.f32 %v689, %v876
    %v914 = vmul.f32 %v690, %v881
    %v915 = vpack.c.bf16 %v884, %v883
    %v916 = vpack.c.bf16 %v886, %v885
    %v917 = vpack.c.bf16 %v888, %v887
    %v918 = vpack.c.bf16 %v890, %v889
    %v919 = vpack.c.bf16 %v892, %v891
    %v920 = vpack.c.bf16 %v894, %v893
    %v921 = vpack.c.bf16 %v896, %v895
    %v922 = vpack.c.bf16 %v898, %v897
    %v923 = vpack.c.bf16 %v900, %v899
    %v924 = vpack.c.bf16 %v902, %v901
    %v925 = vpack.c.bf16 %v904, %v903
    %v926 = vpack.c.bf16 %v906, %v905
    %v927 = vpack.c.bf16 %v908, %v907
    %v928 = vpack.c.bf16 %v910, %v909
    %v929 = vpack.c.bf16 %v912, %v911
    %v930 = vpack.c.bf16 %v914, %v913
    %v931 = vld [vmem:[%s4] sm:$0xf]
    %v932 = vld [vmem:[%s4 + $0x4] sm:$0xf]
    %v933 = vld [vmem:[%s4 + $0x8] sm:$0xf]
    %v934 = vld [vmem:[%s4 + $0xc] sm:$0xf]
    %v935 = vld [vmem:[%s4 + $0x10] sm:$0xf]
    %v936 = vld [vmem:[%s4 + $0x14] sm:$0xf]
    %v937 = vld [vmem:[%s4 + $0x18] sm:$0xf]
    %v938 = vld [vmem:[%s4 + $0x1c] sm:$0xf]
    %v939 = vld [vmem:[%s4 + $0x20] sm:$0xf]
    %v940 = vld [vmem:[%s4 + $0x24] sm:$0xf]
    %v941 = vld [vmem:[%s4 + $0x28] sm:$0xf]
    %v942 = vld [vmem:[%s4 + $0x2c] sm:$0xf]
    %v943 = vld [vmem:[%s4 + $0x30] sm:$0xf]
    %v944 = vld [vmem:[%s4 + $0x34] sm:$0xf]
    %v945 = vld [vmem:[%s4 + $0x38] sm:$0xf]
    %v946 = vld [vmem:[%s4 + $0x3c] sm:$0xf]
    %v947 = vld [vmem:[%s3] sm:$0xf]
    %v948 = vld [vmem:[%s3 + $0x4] sm:$0xf]
    %v949 = vld [vmem:[%s3 + $0x8] sm:$0xf]
    %v950 = vld [vmem:[%s3 + $0xc] sm:$0xf]
    %v951 = vld [vmem:[%s3 + $0x10] sm:$0xf]
    %v952 = vld [vmem:[%s3 + $0x14] sm:$0xf]
    %v953 = vld [vmem:[%s3 + $0x18] sm:$0xf]
    %v954 = vld [vmem:[%s3 + $0x1c] sm:$0xf]
    %v955 = vld [vmem:[%s3 + $0x20] sm:$0xf]
    %v956 = vld [vmem:[%s3 + $0x24] sm:$0xf]
    %v957 = vld [vmem:[%s3 + $0x28] sm:$0xf]
    %v958 = vld [vmem:[%s3 + $0x2c] sm:$0xf]
    %v959 = vld [vmem:[%s3 + $0x30] sm:$0xf]
    %v960 = vld [vmem:[%s3 + $0x34] sm:$0xf]
    %v961 = vld [vmem:[%s3 + $0x38] sm:$0xf]
    %v962 = vld [vmem:[%s3 + $0x3c] sm:$0xf]
    %v963 = vld [vmem:[%s3 + $0x40] sm:$0xf]
    %v964 = vld [vmem:[%s3 + $0x44] sm:$0xf]
    %v965 = vld [vmem:[%s3 + $0x48] sm:$0xf]
    %v966 = vld [vmem:[%s3 + $0x4c] sm:$0xf]
    %v967 = vld [vmem:[%s3 + $0x50] sm:$0xf]
    %v968 = vld [vmem:[%s3 + $0x54] sm:$0xf]
    %v969 = vld [vmem:[%s3 + $0x58] sm:$0xf]
    %v970 = vld [vmem:[%s3 + $0x5c] sm:$0xf]
    %v971 = vld [vmem:[%s3 + $0x60] sm:$0xf]
    %v972 = vld [vmem:[%s3 + $0x64] sm:$0xf]
    %v973 = vld [vmem:[%s3 + $0x68] sm:$0xf]
    %v974 = vld [vmem:[%s3 + $0x6c] sm:$0xf]
    %v975 = vld [vmem:[%s3 + $0x70] sm:$0xf]
    %v976 = vld [vmem:[%s3 + $0x74] sm:$0xf]
    %v977 = vld [vmem:[%s3 + $0x78] sm:$0xf]
    %v978 = vld [vmem:[%s3 + $0x7c] sm:$0xf]
    %v979 = vld [vmem:[%s5] sm:$0xf]
    %v980 = vld [vmem:[%s5 + $0x4] sm:$0xf]
    %v981 = vld [vmem:[%s5 + $0x8] sm:$0xf]
    %v982 = vld [vmem:[%s5 + $0xc] sm:$0xf]
    %v983 = vld [vmem:[%s5 + $0x10] sm:$0xf]
    %v984 = vld [vmem:[%s5 + $0x14] sm:$0xf]
    %v985 = vld [vmem:[%s5 + $0x18] sm:$0xf]
    %v986 = vld [vmem:[%s5 + $0x1c] sm:$0xf]
    %v987 = vld [vmem:[%s5 + $0x20] sm:$0xf]
    %v988 = vld [vmem:[%s5 + $0x24] sm:$0xf]
    %v989 = vld [vmem:[%s5 + $0x28] sm:$0xf]
    %v990 = vld [vmem:[%s5 + $0x2c] sm:$0xf]
    %v991 = vld [vmem:[%s5 + $0x30] sm:$0xf]
    %v992 = vld [vmem:[%s5 + $0x34] sm:$0xf]
    %v993 = vld [vmem:[%s5 + $0x38] sm:$0xf]
    %v994 = vld [vmem:[%s5 + $0x3c] sm:$0xf]
    %v1027 = vunpack.c.l.b16 %v947
    %v1028 = vunpack.c.l.b16 %v948
    %v1029 = vunpack.c.l.b16 %v949
    %v1030 = vunpack.c.l.b16 %v950
    %v1031 = vunpack.c.l.b16 %v951
    %v1032 = vunpack.c.l.b16 %v952
    %v1033 = vunpack.c.l.b16 %v953
    %v1034 = vunpack.c.l.b16 %v954
    %v1035 = vunpack.c.l.b16 %v955
    %v1036 = vunpack.c.l.b16 %v956
    %v1037 = vunpack.c.l.b16 %v957
    %v1038 = vunpack.c.l.b16 %v958
    %v1039 = vunpack.c.l.b16 %v959
    %v1040 = vunpack.c.l.b16 %v960
    %v1041 = vunpack.c.l.b16 %v961
    %v1042 = vunpack.c.l.b16 %v962
    %v1043 = vunpack.c.l.b16 %v963
    %v1044 = vunpack.c.l.b16 %v964
    %v1045 = vunpack.c.l.b16 %v965
    %v1046 = vunpack.c.l.b16 %v966
    %v1047 = vunpack.c.l.b16 %v967
    %v1048 = vunpack.c.l.b16 %v968
    %v1049 = vunpack.c.l.b16 %v969
    %v1050 = vunpack.c.l.b16 %v970
    %v1051 = vunpack.c.l.b16 %v971
    %v1052 = vunpack.c.l.b16 %v972
    %v1053 = vunpack.c.l.b16 %v973
    %v1054 = vunpack.c.l.b16 %v974
    %v1055 = vunpack.c.l.b16 %v975
    %v1056 = vunpack.c.l.b16 %v976
    %v1057 = vunpack.c.l.b16 %v977
    %v1058 = vunpack.c.l.b16 %v978
    %v1059 = vpack.c.b16 %v1028, %v1027
    %v1060 = vpack.c.b16 %v1030, %v1029
    %v1061 = vpack.c.b16 %v1032, %v1031
    %v1062 = vpack.c.b16 %v1034, %v1033
    %v1063 = vpack.c.b16 %v1036, %v1035
    %v1064 = vpack.c.b16 %v1038, %v1037
    %v1065 = vpack.c.b16 %v1040, %v1039
    %v1066 = vpack.c.b16 %v1042, %v1041
    %v1067 = vpack.c.b16 %v1044, %v1043
    %v1068 = vpack.c.b16 %v1046, %v1045
    %v1069 = vpack.c.b16 %v1048, %v1047
    %v1070 = vpack.c.b16 %v1050, %v1049
    %v1071 = vpack.c.b16 %v1052, %v1051
    %v1072 = vpack.c.b16 %v1054, %v1053
    %v1073 = vpack.c.b16 %v1056, %v1055
    %v1074 = vpack.c.b16 %v1058, %v1057
    %v1107 = vunpack.c.l.b16 %v979
    %v1108 = vunpack.c.l.b16 %v980
    %v1109 = vunpack.c.l.b16 %v981
    %v1110 = vunpack.c.l.b16 %v982
    %v1111 = vunpack.c.l.b16 %v983
    %v1112 = vunpack.c.l.b16 %v984
    %v1113 = vunpack.c.l.b16 %v985
    %v1114 = vunpack.c.l.b16 %v986
    %v1115 = vunpack.c.l.b16 %v987
    %v1116 = vunpack.c.l.b16 %v988
    %v1117 = vunpack.c.l.b16 %v989
    %v1118 = vunpack.c.l.b16 %v990
    %v1119 = vunpack.c.l.b16 %v991
    %v1120 = vunpack.c.l.b16 %v992
    %v1121 = vunpack.c.l.b16 %v993
    %v1122 = vunpack.c.l.b16 %v994
    %v1123 = vpack.c.b16 %v1108, %v1107
    %v1124 = vpack.c.b16 %v1110, %v1109
    %v1125 = vpack.c.b16 %v1112, %v1111
    %v1126 = vpack.c.b16 %v1114, %v1113
    %v1127 = vpack.c.b16 %v1116, %v1115
    %v1128 = vpack.c.b16 %v1118, %v1117
    %v1129 = vpack.c.b16 %v1120, %v1119
    %v1130 = vpack.c.b16 %v1122, %v1121
    %1139 = vmatpush.bf16.msra.mxu0 %v1130
    %1140 = vmatpush.bf16.msra.mxu0 %v1129
    %1141 = vmatpush.bf16.msra.mxu0 %v1128
    %1142 = vmatpush.bf16.msra.mxu0 %v1127
    %1143 = vmatpush.bf16.msra.mxu0 %v1126
    %1144 = vmatpush.bf16.msra.mxu0 %v1125
    %1145 = vmatpush.bf16.msra.mxu0 %v1124
    %1146 = vmatpush.bf16.msra.mxu0 %v1123
    %1147 = vmatmul.bf16.gmra.mxu0 %v1059
    %v1148 = vpop.f32.mrf.mxu0
    %v1149 = vadd.f32 0.0, %v1148
    %v1150 = vpop.f32.mrf.mxu0
    %v1151 = vadd.f32 0.0, %v1150
    %1152 = vmatmul.bf16.gmra.mxu0 %v1060
    %v1153 = vpop.f32.mrf.mxu0
    %v1154 = vadd.f32 0.0, %v1153
    %v1155 = vpop.f32.mrf.mxu0
    %v1156 = vadd.f32 0.0, %v1155
    %1157 = vmatmul.bf16.gmra.mxu0 %v1061
    %v1158 = vpop.f32.mrf.mxu0
    %v1159 = vadd.f32 0.0, %v1158
    %v1160 = vpop.f32.mrf.mxu0
    %v1161 = vadd.f32 0.0, %v1160
    %1162 = vmatmul.bf16.gmra.mxu0 %v1062
    %v1163 = vpop.f32.mrf.mxu0
    %v1164 = vadd.f32 0.0, %v1163
    %v1165 = vpop.f32.mrf.mxu0
    %v1166 = vadd.f32 0.0, %v1165
    %1167 = vmatmul.bf16.gmra.mxu0 %v1063
    %v1168 = vpop.f32.mrf.mxu0
    %v1169 = vadd.f32 0.0, %v1168
    %v1170 = vpop.f32.mrf.mxu0
    %v1171 = vadd.f32 0.0, %v1170
    %1172 = vmatmul.bf16.gmra.mxu0 %v1064
    %v1173 = vpop.f32.mrf.mxu0
    %v1174 = vadd.f32 0.0, %v1173
    %v1175 = vpop.f32.mrf.mxu0
    %v1176 = vadd.f32 0.0, %v1175
    %1177 = vmatmul.bf16.gmra.mxu0 %v1065
    %v1178 = vpop.f32.mrf.mxu0
    %v1179 = vadd.f32 0.0, %v1178
    %v1180 = vpop.f32.mrf.mxu0
    %v1181 = vadd.f32 0.0, %v1180
    %1182 = vmatmul.bf16.gmra.mxu0 %v1066
    %v1183 = vpop.f32.mrf.mxu0
    %v1184 = vadd.f32 0.0, %v1183
    %v1185 = vpop.f32.mrf.mxu0
    %v1186 = vadd.f32 0.0, %v1185
    %1187 = vmatmul.bf16.gmra.mxu0 %v1067
    %v1188 = vpop.f32.mrf.mxu0
    %v1189 = vadd.f32 0.0, %v1188
    %v1190 = vpop.f32.mrf.mxu0
    %v1191 = vadd.f32 0.0, %v1190
    %1192 = vmatmul.bf16.gmra.mxu0 %v1068
    %v1193 = vpop.f32.mrf.mxu0
    %v1194 = vadd.f32 0.0, %v1193
    %v1195 = vpop.f32.mrf.mxu0
    %v1196 = vadd.f32 0.0, %v1195
    %1197 = vmatmul.bf16.gmra.mxu0 %v1069
    %v1198 = vpop.f32.mrf.mxu0
    %v1199 = vadd.f32 0.0, %v1198
    %v1200 = vpop.f32.mrf.mxu0
    %v1201 = vadd.f32 0.0, %v1200
    %1202 = vmatmul.bf16.gmra.mxu0 %v1070
    %v1203 = vpop.f32.mrf.mxu0
    %v1204 = vadd.f32 0.0, %v1203
    %v1205 = vpop.f32.mrf.mxu0
    %v1206 = vadd.f32 0.0, %v1205
    %1207 = vmatmul.bf16.gmra.mxu0 %v1071
    %v1208 = vpop.f32.mrf.mxu0
    %v1209 = vadd.f32 0.0, %v1208
    %v1210 = vpop.f32.mrf.mxu0
    %v1211 = vadd.f32 0.0, %v1210
    %1212 = vmatmul.bf16.gmra.mxu0 %v1072
    %v1213 = vpop.f32.mrf.mxu0
    %v1214 = vadd.f32 0.0, %v1213
    %v1215 = vpop.f32.mrf.mxu0
    %v1216 = vadd.f32 0.0, %v1215
    %1217 = vmatmul.bf16.gmra.mxu0 %v1073
    %v1218 = vpop.f32.mrf.mxu0
    %v1219 = vadd.f32 0.0, %v1218
    %v1220 = vpop.f32.mrf.mxu0
    %v1221 = vadd.f32 0.0, %v1220
    %1222 = vmatmul.bf16.gmra.mxu0 %v1074
    %v1223 = vpop.f32.mrf.mxu0
    %v1224 = vadd.f32 0.0, %v1223
    %v1225 = vpop.f32.mrf.mxu0
    %v1226 = vadd.f32 0.0, %v1225
    %1227 = vdwg.mxu0
    %v1244 = vunpack.c.l.b16 %v931
    %v1245 = vunpack.c.l.b16 %v932
    %v1246 = vunpack.c.l.b16 %v933
    %v1247 = vunpack.c.l.b16 %v934
    %v1248 = vunpack.c.l.b16 %v935
    %v1249 = vunpack.c.l.b16 %v936
    %v1250 = vunpack.c.l.b16 %v937
    %v1251 = vunpack.c.l.b16 %v938
    %v1252 = vunpack.c.l.b16 %v939
    %v1253 = vunpack.c.l.b16 %v940
    %v1254 = vunpack.c.l.b16 %v941
    %v1255 = vunpack.c.l.b16 %v942
    %v1256 = vunpack.c.l.b16 %v943
    %v1257 = vunpack.c.l.b16 %v944
    %v1258 = vunpack.c.l.b16 %v945
    %v1259 = vunpack.c.l.b16 %v946
    %v1260 = vpack.c.b16 %v1245, %v1244
    %v1261 = vpack.c.b16 %v1247, %v1246
    %v1262 = vpack.c.b16 %v1249, %v1248
    %v1263 = vpack.c.b16 %v1251, %v1250
    %v1264 = vpack.c.b16 %v1253, %v1252
    %v1265 = vpack.c.b16 %v1255, %v1254
    %v1266 = vpack.c.b16 %v1257, %v1256
    %v1267 = vpack.c.b16 %v1259, %v1258
    %1276 = vmatpush.bf16.msra.mxu0 %v1267
    %1277 = vmatpush.bf16.msra.mxu0 %v1266
    %1278 = vmatpush.bf16.msra.mxu0 %v1265
    %1279 = vmatpush.bf16.msra.mxu0 %v1264
    %1280 = vmatpush.bf16.msra.mxu0 %v1263
    %1281 = vmatpush.bf16.msra.mxu0 %v1262
    %1282 = vmatpush.bf16.msra.mxu0 %v1261
    %1283 = vmatpush.bf16.msra.mxu0 %v1260
    %1284 = vmatmul.bf16.gmra.mxu0 %v915
    %v1285 = vpop.f32.mrf.mxu0
    %v1286 = vadd.f32 %v1149, %v1285
    %v1287 = vpop.f32.mrf.mxu0
    %v1288 = vadd.f32 %v1151, %v1287
    %1289 = vmatmul.bf16.gmra.mxu0 %v916
    %v1290 = vpop.f32.mrf.mxu0
    %v1291 = vadd.f32 %v1154, %v1290
    %v1292 = vpop.f32.mrf.mxu0
    %v1293 = vadd.f32 %v1156, %v1292
    %1294 = vmatmul.bf16.gmra.mxu0 %v917
    %v1295 = vpop.f32.mrf.mxu0
    %v1296 = vadd.f32 %v1159, %v1295
    %v1297 = vpop.f32.mrf.mxu0
    %v1298 = vadd.f32 %v1161, %v1297
    %1299 = vmatmul.bf16.gmra.mxu0 %v918
    %v1300 = vpop.f32.mrf.mxu0
    %v1301 = vadd.f32 %v1164, %v1300
    %v1302 = vpop.f32.mrf.mxu0
    %v1303 = vadd.f32 %v1166, %v1302
    %1304 = vmatmul.bf16.gmra.mxu0 %v919
    %v1305 = vpop.f32.mrf.mxu0
    %v1306 = vadd.f32 %v1169, %v1305
    %v1307 = vpop.f32.mrf.mxu0
    %v1308 = vadd.f32 %v1171, %v1307
    %1309 = vmatmul.bf16.gmra.mxu0 %v920
    %v1310 = vpop.f32.mrf.mxu0
    %v1311 = vadd.f32 %v1174, %v1310
    %v1312 = vpop.f32.mrf.mxu0
    %v1313 = vadd.f32 %v1176, %v1312
    %1314 = vmatmul.bf16.gmra.mxu0 %v921
    %v1315 = vpop.f32.mrf.mxu0
    %v1316 = vadd.f32 %v1179, %v1315
    %v1317 = vpop.f32.mrf.mxu0
    %v1318 = vadd.f32 %v1181, %v1317
    %1319 = vmatmul.bf16.gmra.mxu0 %v922
    %v1320 = vpop.f32.mrf.mxu0
    %v1321 = vadd.f32 %v1184, %v1320
    %v1322 = vpop.f32.mrf.mxu0
    %v1323 = vadd.f32 %v1186, %v1322
    %1324 = vmatmul.bf16.gmra.mxu0 %v923
    %v1325 = vpop.f32.mrf.mxu0
    %v1326 = vadd.f32 %v1189, %v1325
    %v1327 = vpop.f32.mrf.mxu0
    %v1328 = vadd.f32 %v1191, %v1327
    %1329 = vmatmul.bf16.gmra.mxu0 %v924
    %v1330 = vpop.f32.mrf.mxu0
    %v1331 = vadd.f32 %v1194, %v1330
    %v1332 = vpop.f32.mrf.mxu0
    %v1333 = vadd.f32 %v1196, %v1332
    %1334 = vmatmul.bf16.gmra.mxu0 %v925
    %v1335 = vpop.f32.mrf.mxu0
    %v1336 = vadd.f32 %v1199, %v1335
    %v1337 = vpop.f32.mrf.mxu0
    %v1338 = vadd.f32 %v1201, %v1337
    %1339 = vmatmul.bf16.gmra.mxu0 %v926
    %v1340 = vpop.f32.mrf.mxu0
    %v1341 = vadd.f32 %v1204, %v1340
    %v1342 = vpop.f32.mrf.mxu0
    %v1343 = vadd.f32 %v1206, %v1342
    %1344 = vmatmul.bf16.gmra.mxu0 %v927
    %v1345 = vpop.f32.mrf.mxu0
    %v1346 = vadd.f32 %v1209, %v1345
    %v1347 = vpop.f32.mrf.mxu0
    %v1348 = vadd.f32 %v1211, %v1347
    %1349 = vmatmul.bf16.gmra.mxu0 %v928
    %v1350 = vpop.f32.mrf.mxu0
    %v1351 = vadd.f32 %v1214, %v1350
    %v1352 = vpop.f32.mrf.mxu0
    %v1353 = vadd.f32 %v1216, %v1352
    %1354 = vmatmul.bf16.gmra.mxu0 %v929
    %v1355 = vpop.f32.mrf.mxu0
    %v1356 = vadd.f32 %v1219, %v1355
    %v1357 = vpop.f32.mrf.mxu0
    %v1358 = vadd.f32 %v1221, %v1357
    %1359 = vmatmul.bf16.gmra.mxu0 %v930
    %v1360 = vpop.f32.mrf.mxu0
    %v1361 = vadd.f32 %v1224, %v1360
    %v1362 = vpop.f32.mrf.mxu0
    %v1363 = vadd.f32 %v1226, %v1362
    %1364 = vdwg.mxu0
    %v1365 = vld [vmem:[%s6] sm:$0x1]
    %v1367 = vperm.slane %v1365, 0
    %v1369 = vadd.f32 %v1286, %v1367
    %v1370 = vadd.f32 %v1288, %v1367
    %v1371 = vadd.f32 %v1291, %v1367
    %v1372 = vadd.f32 %v1293, %v1367
    %v1373 = vadd.f32 %v1296, %v1367
    %v1374 = vadd.f32 %v1298, %v1367
    %v1375 = vadd.f32 %v1301, %v1367
    %v1376 = vadd.f32 %v1303, %v1367
    %v1377 = vadd.f32 %v1306, %v1367
    %v1378 = vadd.f32 %v1308, %v1367
    %v1379 = vadd.f32 %v1311, %v1367
    %v1380 = vadd.f32 %v1313, %v1367
    %v1381 = vadd.f32 %v1316, %v1367
    %v1382 = vadd.f32 %v1318, %v1367
    %v1383 = vadd.f32 %v1321, %v1367
    %v1384 = vadd.f32 %v1323, %v1367
    %v1385 = vadd.f32 %v1326, %v1367
    %v1386 = vadd.f32 %v1328, %v1367
    %v1387 = vadd.f32 %v1331, %v1367
    %v1388 = vadd.f32 %v1333, %v1367
    %v1389 = vadd.f32 %v1336, %v1367
    %v1390 = vadd.f32 %v1338, %v1367
    %v1391 = vadd.f32 %v1341, %v1367
    %v1392 = vadd.f32 %v1343, %v1367
    %v1393 = vadd.f32 %v1346, %v1367
    %v1394 = vadd.f32 %v1348, %v1367
    %v1395 = vadd.f32 %v1351, %v1367
    %v1396 = vadd.f32 %v1353, %v1367
    %v1397 = vadd.f32 %v1356, %v1367
    %v1398 = vadd.f32 %v1358, %v1367
    %v1399 = vadd.f32 %v1361, %v1367
    %v1400 = vadd.f32 %v1363, %v1367
    %v1401 = vlaneseq
    %v1402 = vand.u32 %v1401, 127
    %vm1403 = vcmp.lt.s32.totalorder %v1402, 16
    %v1404 = vsel %vm1403, %v1369, -1e+30
    %v1405 = vsel %vm1403, %v1370, -1e+30
    %v1406 = vsel %vm1403, %v1371, -1e+30
    %v1407 = vsel %vm1403, %v1372, -1e+30
    %v1408 = vsel %vm1403, %v1373, -1e+30
    %v1409 = vsel %vm1403, %v1374, -1e+30
    %v1410 = vsel %vm1403, %v1375, -1e+30
    %v1411 = vsel %vm1403, %v1376, -1e+30
    %v1412 = vsel %vm1403, %v1377, -1e+30
    %v1413 = vsel %vm1403, %v1378, -1e+30
    %v1414 = vsel %vm1403, %v1379, -1e+30
    %v1415 = vsel %vm1403, %v1380, -1e+30
    %v1416 = vsel %vm1403, %v1381, -1e+30
    %v1417 = vsel %vm1403, %v1382, -1e+30
    %v1418 = vsel %vm1403, %v1383, -1e+30
    %v1419 = vsel %vm1403, %v1384, -1e+30
    %v1420 = vsel %vm1403, %v1385, -1e+30
    %v1421 = vsel %vm1403, %v1386, -1e+30
    %v1422 = vsel %vm1403, %v1387, -1e+30
    %v1423 = vsel %vm1403, %v1388, -1e+30
    %v1424 = vsel %vm1403, %v1389, -1e+30
    %v1425 = vsel %vm1403, %v1390, -1e+30
    %v1426 = vsel %vm1403, %v1391, -1e+30
    %v1427 = vsel %vm1403, %v1392, -1e+30
    %v1428 = vsel %vm1403, %v1393, -1e+30
    %v1429 = vsel %vm1403, %v1394, -1e+30
    %v1430 = vsel %vm1403, %v1395, -1e+30
    %v1431 = vsel %vm1403, %v1396, -1e+30
    %v1432 = vsel %vm1403, %v1397, -1e+30
    %v1433 = vsel %vm1403, %v1398, -1e+30
    %v1434 = vsel %vm1403, %v1399, -1e+30
    %v1435 = vsel %vm1403, %v1400, -1e+30
    %1436 = vmax.xlane.f32.xlu0 %v1404
    %v1437 = vpop.xlane.xlu0 %1436
    %1438 = vmax.xlane.f32.xlu0 %v1405
    %v1439 = vpop.xlane.xlu0 %1438
    %1440 = vmax.xlane.f32.xlu0 %v1406
    %v1441 = vpop.xlane.xlu0 %1440
    %1442 = vmax.xlane.f32.xlu0 %v1407
    %v1443 = vpop.xlane.xlu0 %1442
    %1444 = vmax.xlane.f32.xlu0 %v1408
    %v1445 = vpop.xlane.xlu0 %1444
    %1446 = vmax.xlane.f32.xlu0 %v1409
    %v1447 = vpop.xlane.xlu0 %1446
    %1448 = vmax.xlane.f32.xlu0 %v1410
    %v1449 = vpop.xlane.xlu0 %1448
    %1450 = vmax.xlane.f32.xlu0 %v1411
    %v1451 = vpop.xlane.xlu0 %1450
    %1452 = vmax.xlane.f32.xlu0 %v1412
    %v1453 = vpop.xlane.xlu0 %1452
    %1454 = vmax.xlane.f32.xlu0 %v1413
    %v1455 = vpop.xlane.xlu0 %1454
    %1456 = vmax.xlane.f32.xlu0 %v1414
    %v1457 = vpop.xlane.xlu0 %1456
    %1458 = vmax.xlane.f32.xlu0 %v1415
    %v1459 = vpop.xlane.xlu0 %1458
    %1460 = vmax.xlane.f32.xlu0 %v1416
    %v1461 = vpop.xlane.xlu0 %1460
    %1462 = vmax.xlane.f32.xlu0 %v1417
    %v1463 = vpop.xlane.xlu0 %1462
    %1464 = vmax.xlane.f32.xlu0 %v1418
    %v1465 = vpop.xlane.xlu0 %1464
    %1466 = vmax.xlane.f32.xlu0 %v1419
    %v1467 = vpop.xlane.xlu0 %1466
    %1468 = vmax.xlane.f32.xlu0 %v1420
    %v1469 = vpop.xlane.xlu0 %1468
    %1470 = vmax.xlane.f32.xlu0 %v1421
    %v1471 = vpop.xlane.xlu0 %1470
    %1472 = vmax.xlane.f32.xlu0 %v1422
    %v1473 = vpop.xlane.xlu0 %1472
    %1474 = vmax.xlane.f32.xlu0 %v1423
    %v1475 = vpop.xlane.xlu0 %1474
    %1476 = vmax.xlane.f32.xlu0 %v1424
    %v1477 = vpop.xlane.xlu0 %1476
    %1478 = vmax.xlane.f32.xlu0 %v1425
    %v1479 = vpop.xlane.xlu0 %1478
    %1480 = vmax.xlane.f32.xlu0 %v1426
    %v1481 = vpop.xlane.xlu0 %1480
    %1482 = vmax.xlane.f32.xlu0 %v1427
    %v1483 = vpop.xlane.xlu0 %1482
    %1484 = vmax.xlane.f32.xlu0 %v1428
    %v1485 = vpop.xlane.xlu0 %1484
    %1486 = vmax.xlane.f32.xlu0 %v1429
    %v1487 = vpop.xlane.xlu0 %1486
    %1488 = vmax.xlane.f32.xlu0 %v1430
    %v1489 = vpop.xlane.xlu0 %1488
    %1490 = vmax.xlane.f32.xlu0 %v1431
    %v1491 = vpop.xlane.xlu0 %1490
    %1492 = vmax.xlane.f32.xlu0 %v1432
    %v1493 = vpop.xlane.xlu0 %1492
    %1494 = vmax.xlane.f32.xlu0 %v1433
    %v1495 = vpop.xlane.xlu0 %1494
    %1496 = vmax.xlane.f32.xlu0 %v1434
    %v1497 = vpop.xlane.xlu0 %1496
    %1498 = vmax.xlane.f32.xlu0 %v1435
    %v1499 = vpop.xlane.xlu0 %1498
    %v1500 = vsub.f32 %v1404, %v1437
    %v1501 = vsub.f32 %v1405, %v1439
    %v1502 = vsub.f32 %v1406, %v1441
    %v1503 = vsub.f32 %v1407, %v1443
    %v1504 = vsub.f32 %v1408, %v1445
    %v1505 = vsub.f32 %v1409, %v1447
    %v1506 = vsub.f32 %v1410, %v1449
    %v1507 = vsub.f32 %v1411, %v1451
    %v1508 = vsub.f32 %v1412, %v1453
    %v1509 = vsub.f32 %v1413, %v1455
    %v1510 = vsub.f32 %v1414, %v1457
    %v1511 = vsub.f32 %v1415, %v1459
    %v1512 = vsub.f32 %v1416, %v1461
    %v1513 = vsub.f32 %v1417, %v1463
    %v1514 = vsub.f32 %v1418, %v1465
    %v1515 = vsub.f32 %v1419, %v1467
    %v1516 = vsub.f32 %v1420, %v1469
    %v1517 = vsub.f32 %v1421, %v1471
    %v1518 = vsub.f32 %v1422, %v1473
    %v1519 = vsub.f32 %v1423, %v1475
    %v1520 = vsub.f32 %v1424, %v1477
    %v1521 = vsub.f32 %v1425, %v1479
    %v1522 = vsub.f32 %v1426, %v1481
    %v1523 = vsub.f32 %v1427, %v1483
    %v1524 = vsub.f32 %v1428, %v1485
    %v1525 = vsub.f32 %v1429, %v1487
    %v1526 = vsub.f32 %v1430, %v1489
    %v1527 = vsub.f32 %v1431, %v1491
    %v1528 = vsub.f32 %v1432, %v1493
    %v1529 = vsub.f32 %v1433, %v1495
    %v1530 = vsub.f32 %v1434, %v1497
    %v1531 = vsub.f32 %v1435, %v1499
    %v1532 = vmul.f32 %v1500, 1.442695
    %v1533 = vpow.pop %v1532
    %v1534 = vmul.f32 %v1501, 1.442695
    %v1535 = vpow.pop %v1534
    %v1536 = vmul.f32 %v1502, 1.442695
    %v1537 = vpow.pop %v1536
    %v1538 = vmul.f32 %v1503, 1.442695
    %v1539 = vpow.pop %v1538
    %v1540 = vmul.f32 %v1504, 1.442695
    %v1541 = vpow.pop %v1540
    %v1542 = vmul.f32 %v1505, 1.442695
    %v1543 = vpow.pop %v1542
    %v1544 = vmul.f32 %v1506, 1.442695
    %v1545 = vpow.pop %v1544
    %v1546 = vmul.f32 %v1507, 1.442695
    %v1547 = vpow.pop %v1546
    %v1548 = vmul.f32 %v1508, 1.442695
    %v1549 = vpow.pop %v1548
    %v1550 = vmul.f32 %v1509, 1.442695
    %v1551 = vpow.pop %v1550
    %v1552 = vmul.f32 %v1510, 1.442695
    %v1553 = vpow.pop %v1552
    %v1554 = vmul.f32 %v1511, 1.442695
    %v1555 = vpow.pop %v1554
    %v1556 = vmul.f32 %v1512, 1.442695
    %v1557 = vpow.pop %v1556
    %v1558 = vmul.f32 %v1513, 1.442695
    %v1559 = vpow.pop %v1558
    %v1560 = vmul.f32 %v1514, 1.442695
    %v1561 = vpow.pop %v1560
    %v1562 = vmul.f32 %v1515, 1.442695
    %v1563 = vpow.pop %v1562
    %v1564 = vmul.f32 %v1516, 1.442695
    %v1565 = vpow.pop %v1564
    %v1566 = vmul.f32 %v1517, 1.442695
    %v1567 = vpow.pop %v1566
    %v1568 = vmul.f32 %v1518, 1.442695
    %v1569 = vpow.pop %v1568
    %v1570 = vmul.f32 %v1519, 1.442695
    %v1571 = vpow.pop %v1570
    %v1572 = vmul.f32 %v1520, 1.442695
    %v1573 = vpow.pop %v1572
    %v1574 = vmul.f32 %v1521, 1.442695
    %v1575 = vpow.pop %v1574
    %v1576 = vmul.f32 %v1522, 1.442695
    %v1577 = vpow.pop %v1576
    %v1578 = vmul.f32 %v1523, 1.442695
    %v1579 = vpow.pop %v1578
    %v1580 = vmul.f32 %v1524, 1.442695
    %v1581 = vpow.pop %v1580
    %v1582 = vmul.f32 %v1525, 1.442695
    %v1583 = vpow.pop %v1582
    %v1584 = vmul.f32 %v1526, 1.442695
    %v1585 = vpow.pop %v1584
    %v1586 = vmul.f32 %v1527, 1.442695
    %v1587 = vpow.pop %v1586
    %v1588 = vmul.f32 %v1528, 1.442695
    %v1589 = vpow.pop %v1588
    %v1590 = vmul.f32 %v1529, 1.442695
    %v1591 = vpow.pop %v1590
    %v1592 = vmul.f32 %v1530, 1.442695
    %v1593 = vpow.pop %v1592
    %v1594 = vmul.f32 %v1531, 1.442695
    %v1595 = vpow.pop %v1594
    %1596 = vadd.xlane.f32.xlu0 %v1533
    %v1597 = vpop.xlane.xlu0 %1596
    %1598 = vadd.xlane.f32.xlu0 %v1535
    %v1599 = vpop.xlane.xlu0 %1598
    %1600 = vadd.xlane.f32.xlu0 %v1537
    %v1601 = vpop.xlane.xlu0 %1600
    %1602 = vadd.xlane.f32.xlu0 %v1539
    %v1603 = vpop.xlane.xlu0 %1602
    %1604 = vadd.xlane.f32.xlu0 %v1541
    %v1605 = vpop.xlane.xlu0 %1604
    %1606 = vadd.xlane.f32.xlu0 %v1543
    %v1607 = vpop.xlane.xlu0 %1606
    %1608 = vadd.xlane.f32.xlu0 %v1545
    %v1609 = vpop.xlane.xlu0 %1608
    %1610 = vadd.xlane.f32.xlu0 %v1547
    %v1611 = vpop.xlane.xlu0 %1610
    %1612 = vadd.xlane.f32.xlu0 %v1549
    %v1613 = vpop.xlane.xlu0 %1612
    %1614 = vadd.xlane.f32.xlu0 %v1551
    %v1615 = vpop.xlane.xlu0 %1614
    %1616 = vadd.xlane.f32.xlu0 %v1553
    %v1617 = vpop.xlane.xlu0 %1616
    %1618 = vadd.xlane.f32.xlu0 %v1555
    %v1619 = vpop.xlane.xlu0 %1618
    %1620 = vadd.xlane.f32.xlu0 %v1557
    %v1621 = vpop.xlane.xlu0 %1620
    %1622 = vadd.xlane.f32.xlu0 %v1559
    %v1623 = vpop.xlane.xlu0 %1622
    %1624 = vadd.xlane.f32.xlu0 %v1561
    %v1625 = vpop.xlane.xlu0 %1624
    %1626 = vadd.xlane.f32.xlu0 %v1563
    %v1627 = vpop.xlane.xlu0 %1626
    %1628 = vadd.xlane.f32.xlu0 %v1565
    %v1629 = vpop.xlane.xlu0 %1628
    %1630 = vadd.xlane.f32.xlu0 %v1567
    %v1631 = vpop.xlane.xlu0 %1630
    %1632 = vadd.xlane.f32.xlu0 %v1569
    %v1633 = vpop.xlane.xlu0 %1632
    %1634 = vadd.xlane.f32.xlu0 %v1571
    %v1635 = vpop.xlane.xlu0 %1634
    %1636 = vadd.xlane.f32.xlu0 %v1573
    %v1637 = vpop.xlane.xlu0 %1636
    %1638 = vadd.xlane.f32.xlu0 %v1575
    %v1639 = vpop.xlane.xlu0 %1638
    %1640 = vadd.xlane.f32.xlu0 %v1577
    %v1641 = vpop.xlane.xlu0 %1640
    %1642 = vadd.xlane.f32.xlu0 %v1579
    %v1643 = vpop.xlane.xlu0 %1642
    %1644 = vadd.xlane.f32.xlu0 %v1581
    %v1645 = vpop.xlane.xlu0 %1644
    %1646 = vadd.xlane.f32.xlu0 %v1583
    %v1647 = vpop.xlane.xlu0 %1646
    %1648 = vadd.xlane.f32.xlu0 %v1585
    %v1649 = vpop.xlane.xlu0 %1648
    %1650 = vadd.xlane.f32.xlu0 %v1587
    %v1651 = vpop.xlane.xlu0 %1650
    %1652 = vadd.xlane.f32.xlu0 %v1589
    %v1653 = vpop.xlane.xlu0 %1652
    %1654 = vadd.xlane.f32.xlu0 %v1591
    %v1655 = vpop.xlane.xlu0 %1654
    %1656 = vadd.xlane.f32.xlu0 %v1593
    %v1657 = vpop.xlane.xlu0 %1656
    %1658 = vadd.xlane.f32.xlu0 %v1595
    %v1659 = vpop.xlane.xlu0 %1658
    %v1660 = vlog2.pop %v1597
    %v1661 = vmul.f32 %v1660, 0.6931472
    %v1662 = vlog2.pop %v1599
    %v1663 = vmul.f32 %v1662, 0.6931472
    %v1664 = vlog2.pop %v1601
    %v1665 = vmul.f32 %v1664, 0.6931472
    %v1666 = vlog2.pop %v1603
    %v1667 = vmul.f32 %v1666, 0.6931472
    %v1668 = vlog2.pop %v1605
    %v1669 = vmul.f32 %v1668, 0.6931472
    %v1670 = vlog2.pop %v1607
    %v1671 = vmul.f32 %v1670, 0.6931472
    %v1672 = vlog2.pop %v1609
    %v1673 = vmul.f32 %v1672, 0.6931472
    %v1674 = vlog2.pop %v1611
    %v1675 = vmul.f32 %v1674, 0.6931472
    %v1676 = vlog2.pop %v1613
    %v1677 = vmul.f32 %v1676, 0.6931472
    %v1678 = vlog2.pop %v1615
    %v1679 = vmul.f32 %v1678, 0.6931472
    %v1680 = vlog2.pop %v1617
    %v1681 = vmul.f32 %v1680, 0.6931472
    %v1682 = vlog2.pop %v1619
    %v1683 = vmul.f32 %v1682, 0.6931472
    %v1684 = vlog2.pop %v1621
    %v1685 = vmul.f32 %v1684, 0.6931472
    %v1686 = vlog2.pop %v1623
    %v1687 = vmul.f32 %v1686, 0.6931472
    %v1688 = vlog2.pop %v1625
    %v1689 = vmul.f32 %v1688, 0.6931472
    %v1690 = vlog2.pop %v1627
    %v1691 = vmul.f32 %v1690, 0.6931472
    %v1692 = vlog2.pop %v1629
    %v1693 = vmul.f32 %v1692, 0.6931472
    %v1694 = vlog2.pop %v1631
    %v1695 = vmul.f32 %v1694, 0.6931472
    %v1696 = vlog2.pop %v1633
    %v1697 = vmul.f32 %v1696, 0.6931472
    %v1698 = vlog2.pop %v1635
    %v1699 = vmul.f32 %v1698, 0.6931472
    %v1700 = vlog2.pop %v1637
    %v1701 = vmul.f32 %v1700, 0.6931472
    %v1702 = vlog2.pop %v1639
    %v1703 = vmul.f32 %v1702, 0.6931472
    %v1704 = vlog2.pop %v1641
    %v1705 = vmul.f32 %v1704, 0.6931472
    %v1706 = vlog2.pop %v1643
    %v1707 = vmul.f32 %v1706, 0.6931472
    %v1708 = vlog2.pop %v1645
    %v1709 = vmul.f32 %v1708, 0.6931472
    %v1710 = vlog2.pop %v1647
    %v1711 = vmul.f32 %v1710, 0.6931472
    %v1712 = vlog2.pop %v1649
    %v1713 = vmul.f32 %v1712, 0.6931472
    %v1714 = vlog2.pop %v1651
    %v1715 = vmul.f32 %v1714, 0.6931472
    %v1716 = vlog2.pop %v1653
    %v1717 = vmul.f32 %v1716, 0.6931472
    %v1718 = vlog2.pop %v1655
    %v1719 = vmul.f32 %v1718, 0.6931472
    %v1720 = vlog2.pop %v1657
    %v1721 = vmul.f32 %v1720, 0.6931472
    %v1722 = vlog2.pop %v1659
    %v1723 = vmul.f32 %v1722, 0.6931472
    %v1724 = vadd.f32 %v1437, %v1661
    %v1725 = vadd.f32 %v1439, %v1663
    %v1726 = vadd.f32 %v1441, %v1665
    %v1727 = vadd.f32 %v1443, %v1667
    %v1728 = vadd.f32 %v1445, %v1669
    %v1729 = vadd.f32 %v1447, %v1671
    %v1730 = vadd.f32 %v1449, %v1673
    %v1731 = vadd.f32 %v1451, %v1675
    %v1732 = vadd.f32 %v1453, %v1677
    %v1733 = vadd.f32 %v1455, %v1679
    %v1734 = vadd.f32 %v1457, %v1681
    %v1735 = vadd.f32 %v1459, %v1683
    %v1736 = vadd.f32 %v1461, %v1685
    %v1737 = vadd.f32 %v1463, %v1687
    %v1738 = vadd.f32 %v1465, %v1689
    %v1739 = vadd.f32 %v1467, %v1691
    %v1740 = vadd.f32 %v1469, %v1693
    %v1741 = vadd.f32 %v1471, %v1695
    %v1742 = vadd.f32 %v1473, %v1697
    %v1743 = vadd.f32 %v1475, %v1699
    %v1744 = vadd.f32 %v1477, %v1701
    %v1745 = vadd.f32 %v1479, %v1703
    %v1746 = vadd.f32 %v1481, %v1705
    %v1747 = vadd.f32 %v1483, %v1707
    %v1748 = vadd.f32 %v1485, %v1709
    %v1749 = vadd.f32 %v1487, %v1711
    %v1750 = vadd.f32 %v1489, %v1713
    %v1751 = vadd.f32 %v1491, %v1715
    %v1752 = vadd.f32 %v1493, %v1717
    %v1753 = vadd.f32 %v1495, %v1719
    %v1754 = vadd.f32 %v1497, %v1721
    %v1755 = vadd.f32 %v1499, %v1723
    %v1756 = vsub.f32 %v1404, %v1724
    %v1757 = vsub.f32 %v1405, %v1725
    %v1758 = vsub.f32 %v1406, %v1726
    %v1759 = vsub.f32 %v1407, %v1727
    %v1760 = vsub.f32 %v1408, %v1728
    %v1761 = vsub.f32 %v1409, %v1729
    %v1762 = vsub.f32 %v1410, %v1730
    %v1763 = vsub.f32 %v1411, %v1731
    %v1764 = vsub.f32 %v1412, %v1732
    %v1765 = vsub.f32 %v1413, %v1733
    %v1766 = vsub.f32 %v1414, %v1734
    %v1767 = vsub.f32 %v1415, %v1735
    %v1768 = vsub.f32 %v1416, %v1736
    %v1769 = vsub.f32 %v1417, %v1737
    %v1770 = vsub.f32 %v1418, %v1738
    %v1771 = vsub.f32 %v1419, %v1739
    %v1772 = vsub.f32 %v1420, %v1740
    %v1773 = vsub.f32 %v1421, %v1741
    %v1774 = vsub.f32 %v1422, %v1742
    %v1775 = vsub.f32 %v1423, %v1743
    %v1776 = vsub.f32 %v1424, %v1744
    %v1777 = vsub.f32 %v1425, %v1745
    %v1778 = vsub.f32 %v1426, %v1746
    %v1779 = vsub.f32 %v1427, %v1747
    %v1780 = vsub.f32 %v1428, %v1748
    %v1781 = vsub.f32 %v1429, %v1749
    %v1782 = vsub.f32 %v1430, %v1750
    %v1783 = vsub.f32 %v1431, %v1751
    %v1784 = vsub.f32 %v1432, %v1752
    %v1785 = vsub.f32 %v1433, %v1753
    %v1786 = vsub.f32 %v1434, %v1754
    %v1787 = vsub.f32 %v1435, %v1755
    %1788 = vst [vmem:[%s7] sm:$0xff] %v1756
    %1789 = vst [vmem:[%s7 + $0x8] sm:$0xff] %v1757
    %1790 = vst [vmem:[%s7 + $0x10] sm:$0xff] %v1758
    %1791 = vst [vmem:[%s7 + $0x18] sm:$0xff] %v1759
    %1792 = vst [vmem:[%s7 + $0x20] sm:$0xff] %v1760
    %1793 = vst [vmem:[%s7 + $0x28] sm:$0xff] %v1761
    %1794 = vst [vmem:[%s7 + $0x30] sm:$0xff] %v1762
    %1795 = vst [vmem:[%s7 + $0x38] sm:$0xff] %v1763
    %1796 = vst [vmem:[%s7 + $0x40] sm:$0xff] %v1764
    %1797 = vst [vmem:[%s7 + $0x48] sm:$0xff] %v1765
    %1798 = vst [vmem:[%s7 + $0x50] sm:$0xff] %v1766
    %1799 = vst [vmem:[%s7 + $0x58] sm:$0xff] %v1767
    %1800 = vst [vmem:[%s7 + $0x60] sm:$0xff] %v1768
    %1801 = vst [vmem:[%s7 + $0x68] sm:$0xff] %v1769
    %1802 = vst [vmem:[%s7 + $0x70] sm:$0xff] %v1770
    %1803 = vst [vmem:[%s7 + $0x78] sm:$0xff] %v1771
    %1804 = vst [vmem:[%s7 + $0x80] sm:$0xff] %v1772
    %1805 = vst [vmem:[%s7 + $0x88] sm:$0xff] %v1773
    %1806 = vst [vmem:[%s7 + $0x90] sm:$0xff] %v1774
    %1807 = vst [vmem:[%s7 + $0x98] sm:$0xff] %v1775
    %1808 = vst [vmem:[%s7 + $0xa0] sm:$0xff] %v1776
    %1809 = vst [vmem:[%s7 + $0xa8] sm:$0xff] %v1777
    %1810 = vst [vmem:[%s7 + $0xb0] sm:$0xff] %v1778
    %1811 = vst [vmem:[%s7 + $0xb8] sm:$0xff] %v1779
    %1812 = vst [vmem:[%s7 + $0xc0] sm:$0xff] %v1780
    %1813 = vst [vmem:[%s7 + $0xc8] sm:$0xff] %v1781
    %1814 = vst [vmem:[%s7 + $0xd0] sm:$0xff] %v1782
    %1815 = vst [vmem:[%s7 + $0xd8] sm:$0xff] %v1783
    %1816 = vst [vmem:[%s7 + $0xe0] sm:$0xff] %v1784
    %1817 = vst [vmem:[%s7 + $0xe8] sm:$0xff] %v1785
    %1818 = vst [vmem:[%s7 + $0xf0] sm:$0xff] %v1786
    %1819 = vst [vmem:[%s7 + $0xf8] sm:$0xff] %v1787
  $region37: #{graphsage_forward.7} parent=0 // pred_fallthru
    _
  // Predicated region
  $region38: #{graphsage_forward.7} parent=0 // pred_check
    _
  $region39: #{graphsage_forward.7} parent=0 // pred_check_branch
    %1821 = sbr.rel (0) target = $region41
  $region40: #{graphsage_forward.7} parent=0 // pred_region
    _
  $region41: #{graphsage_forward.7} parent=0 // pred_fallthru
    _
  // Predicated region
  $region42: #{graphsage_forward.7} parent=0 // pred_check
    _
  $region43: #{graphsage_forward.7} parent=0 // pred_check_branch
    %1823 = sbr.rel (0) target = $region45
  $region44: #{graphsage_forward.7} parent=0 // pred_region
    _
  $region45: #{graphsage_forward.7} parent=0 // pred_fallthru
    _

</llo_original>
